<compile_context>
chip_gen: v7x
topology: tpu7x:2x2x1
jax: 0.10.0
libtpu: 0.0.40
codegen_flags: <defaults>
</compile_context>

<pallas_src>
import functools
import math

import jax
import jax.numpy as jnp
from jax.experimental import pallas as pl
from jax.experimental.pallas import tpu as pltpu

ACT_DTYPE = jnp.bfloat16   # inter-kernel activation dtype
W_DTYPE = jnp.bfloat16     # matmul weight dtype (bf16 MXU path on all TPU gens)
NEG_INF_MASK = -1e9


def _pick_tile(dim, target, align):
    """Largest block size <= target that exactly divides `dim`.

    If the chosen block is smaller than `dim` it is a multiple of `align` (TPU (8,128)
    layout rule); otherwise the full dimension is used (always legal)."""
    if dim <= target:
        return dim
    t = (target // align) * align
    while t >= align:
        if dim % t == 0:
            return t
        t -= align
    return dim


def _heads_per_group(num_heads, head_dim, d_model):
    """Heads packed per attention grid step so the column block is 128-lane aligned."""
    if d_model % 128 != 0:
        return num_heads            # small models: take the full row (== full last dim)
    for g in range(1, num_heads + 1):
        if num_heads % g == 0 and (g * head_dim) % 128 == 0:
            return g
    return num_heads


# ----------------------------- plain matmul + bias ------------------------------


def _matmul_bias_kernel(x_ref, w_ref, b_ref, o_ref, acc_ref, *, activation):
    @pl.when(pl.program_id(2) == 0)
    def _():
        acc_ref[...] = jnp.zeros_like(acc_ref)

    acc_ref[...] += jnp.dot(x_ref[...], w_ref[...], preferred_element_type=jnp.float32)

    @pl.when(pl.program_id(2) == pl.num_programs(2) - 1)
    def _():
        y = acc_ref[...] + b_ref[...].astype(jnp.float32)
        if activation == "relu":
            y = jnp.maximum(y, 0.0)
        o_ref[...] = y.astype(o_ref.dtype)


def matmul_bias(x, w, b, activation=None, out_dtype=ACT_DTYPE,
                tm_target=256, tn_target=256, tk_target=512):
    """x: (M, K), w: (K, N), b: (N,) -> (M, N). Tiled, K-looped, f32 accumulation."""
    # TODO(synk): per-generation tile/vmem tuning (tm=512 + vmem_limit on v5e/v6e, 256 on v7x).
    M, K = x.shape
    N = w.shape[1]
    tm = _pick_tile(M, tm_target, 8)
    tn = _pick_tile(N, tn_target, 128)
    tk = _pick_tile(K, tk_target, 128)
    kern = functools.partial(_matmul_bias_kernel, activation=activation)
    return pl.pallas_call(
        kern,
        out_shape=jax.ShapeDtypeStruct((M, N), out_dtype),
        grid=(M // tm, N // tn, K // tk),
        in_specs=[
            pl.BlockSpec((tm, tk), lambda i, j, k: (i, k)),
            pl.BlockSpec((tk, tn), lambda i, j, k: (k, j)),
            pl.BlockSpec((1, tn), lambda i, j, k: (0, j)),
        ],
        out_specs=pl.BlockSpec((tm, tn), lambda i, j, k: (i, j)),
        scratch_shapes=[pltpu.VMEM((tm, tn), jnp.float32)],
        compiler_params=pltpu.CompilerParams(
            dimension_semantics=("parallel", "parallel", "arbitrary")),
    )(x, w, b.reshape(1, N))


# -------------------- matmul + bias + residual-add + LayerNorm --------------------


def _matmul_bias_ln_kernel(x_ref, w_ref, b_ref, r_ref, g_ref, be_ref, o_ref, acc_ref, *, eps):
    k = pl.program_id(1)

    @pl.when(k == 0)
    def _():
        acc_ref[...] = jnp.zeros_like(acc_ref)

    acc_ref[...] += jnp.dot(x_ref[...], w_ref[...], preferred_element_type=jnp.float32)

    @pl.when(k == pl.num_programs(1) - 1)
    def _():
        y = acc_ref[...] + b_ref[...].astype(jnp.float32) + r_ref[...].astype(jnp.float32)
        mu = jnp.mean(y, axis=-1, keepdims=True)
        var = jnp.mean((y - mu) ** 2, axis=-1, keepdims=True)
        yn = (y - mu) * jax.lax.rsqrt(var + eps)
        o_ref[...] = (yn * g_ref[...].astype(jnp.float32)
                      + be_ref[...].astype(jnp.float32)).astype(o_ref.dtype)


def matmul_bias_add_ln(x, w, b, residual, gamma, beta, eps=1e-5, out_dtype=ACT_DTYPE,
                       tm_target=256, tk_target=512):
    """LN((x @ w + b) + residual).  N is untiled (== d_model) so LN fits the finalize."""
    M, K = x.shape
    N = w.shape[1]
    tm = _pick_tile(M, tm_target, 8)
    tk = _pick_tile(K, tk_target, 128)
    kern = functools.partial(_matmul_bias_ln_kernel, eps=eps)
    return pl.pallas_call(
        kern,
        out_shape=jax.ShapeDtypeStruct((M, N), out_dtype),
        grid=(M // tm, K // tk),
        in_specs=[
            pl.BlockSpec((tm, tk), lambda i, k: (i, k)),
            pl.BlockSpec((tk, N), lambda i, k: (k, 0)),
            pl.BlockSpec((1, N), lambda i, k: (0, 0)),
            pl.BlockSpec((tm, N), lambda i, k: (i, 0)),
            pl.BlockSpec((1, N), lambda i, k: (0, 0)),
            pl.BlockSpec((1, N), lambda i, k: (0, 0)),
        ],
        out_specs=pl.BlockSpec((tm, N), lambda i, k: (i, 0)),
        scratch_shapes=[pltpu.VMEM((tm, N), jnp.float32)],
        compiler_params=pltpu.CompilerParams(
            dimension_semantics=("parallel", "arbitrary")),
    )(x, w, b.reshape(1, N), residual, gamma.reshape(1, N), beta.reshape(1, N))


# ------------------- FFN (hidden-chunked) + residual-add + LayerNorm -------------------


def _ffn_ln_kernel(x_ref, w1_ref, b1_ref, w2_ref, b2_ref, r_ref, g_ref, be_ref,
                   o_ref, acc_ref, *, eps):
    hc = pl.program_id(1)

    @pl.when(hc == 0)
    def _():
        acc_ref[...] = jnp.zeros_like(acc_ref)

    h = jnp.dot(x_ref[...], w1_ref[...], preferred_element_type=jnp.float32)
    h = jnp.maximum(h + b1_ref[...].astype(jnp.float32), 0.0)
    acc_ref[...] += jnp.dot(h.astype(w2_ref.dtype), w2_ref[...],
                            preferred_element_type=jnp.float32)

    @pl.when(hc == pl.num_programs(1) - 1)
    def _():
        y = acc_ref[...] + b2_ref[...].astype(jnp.float32) + r_ref[...].astype(jnp.float32)
        mu = jnp.mean(y, axis=-1, keepdims=True)
        var = jnp.mean((y - mu) ** 2, axis=-1, keepdims=True)
        yn = (y - mu) * jax.lax.rsqrt(var + eps)
        o_ref[...] = (yn * g_ref[...].astype(jnp.float32)
                      + be_ref[...].astype(jnp.float32)).astype(o_ref.dtype)


def ffn_add_ln(x, p, residual, gamma, beta, eps=1e-5, out_dtype=ACT_DTYPE,
               tm_target=256, th_target=512):
    """LN(relu(x @ w1 + b1) @ w2 + b2 + residual) with the hidden dim streamed in chunks."""
    M, D = x.shape
    H = p["w1"].shape[1]
    tm = _pick_tile(M, tm_target, 8)
    th = _pick_tile(H, th_target, 128)
    kern = functools.partial(_ffn_ln_kernel, eps=eps)
    return pl.pallas_call(
        kern,
        out_shape=jax.ShapeDtypeStruct((M, D), out_dtype),
        grid=(M // tm, H // th),
        in_specs=[
            pl.BlockSpec((tm, D), lambda i, h: (i, 0)),
            pl.BlockSpec((D, th), lambda i, h: (0, h)),
            pl.BlockSpec((1, th), lambda i, h: (0, h)),
            pl.BlockSpec((th, D), lambda i, h: (h, 0)),
            pl.BlockSpec((1, D), lambda i, h: (0, 0)),
            pl.BlockSpec((tm, D), lambda i, h: (i, 0)),
            pl.BlockSpec((1, D), lambda i, h: (0, 0)),
            pl.BlockSpec((1, D), lambda i, h: (0, 0)),
        ],
        out_specs=pl.BlockSpec((tm, D), lambda i, h: (i, 0)),
        scratch_shapes=[pltpu.VMEM((tm, D), jnp.float32)],
        compiler_params=pltpu.CompilerParams(
            dimension_semantics=("parallel", "arbitrary")),
    )(x, p["w1"], p["b1"].reshape(1, H), p["w2"], p["b2"].reshape(1, D),
      residual, gamma.reshape(1, D), beta.reshape(1, D))


# ----------------------------- flash attention ------------------------------


def _flash_attn_kernel(q_ref, k_ref, v_ref, kb_ref, o_ref, m_sc, l_sc, acc_sc, *,
                       head_dim, heads_per_group, causal):
    j = pl.program_id(3)

    @pl.when(j == 0)
    def _():
        m_sc[...] = jnp.full_like(m_sc, -jnp.inf)
        l_sc[...] = jnp.zeros_like(l_sc)
        acc_sc[...] = jnp.zeros_like(acc_sc)

    tq = q_ref.shape[1]
    tk = k_ref.shape[1]

    # Additive bias built in-kernel: key-padding from the tiny (1,1,tk) block, causal from iota.
    bias = kb_ref[0].astype(jnp.float32)                       # (1, tk)
    if causal:
        i = pl.program_id(2)
        row = jax.lax.broadcasted_iota(jnp.int32, (tq, tk), 0) + i * tq
        col = jax.lax.broadcasted_iota(jnp.int32, (tq, tk), 1) + j * tk
        bias = bias + jnp.where(col <= row, 0.0, NEG_INF_MASK)
    # TODO(synk): skip fully-masked upper-triangle (i, j) tiles with pl.when.

    for h in range(heads_per_group):
        sl = slice(h * head_dim, (h + 1) * head_dim)
        q = q_ref[0, :, sl]                                    # (tq, Dh) bf16, pre-scaled
        k = k_ref[0, :, sl]                                    # (tk, Dh) bf16
        v = v_ref[0, :, sl]                                    # (tk, Dh) bf16
        s = jax.lax.dot_general(q, k, (((1,), (1,)), ((), ())),
                                preferred_element_type=jnp.float32)
        s = s + bias

        m_prev = m_sc[h]                                       # (tq, 1)
        m_new = jnp.maximum(m_prev, jnp.max(s, axis=-1, keepdims=True))
        alpha = jnp.exp(m_prev - m_new)
        p = jnp.exp(s - m_new)
        l_sc[h] = alpha * l_sc[h] + jnp.sum(p, axis=-1, keepdims=True)
        acc_sc[:, sl] = alpha * acc_sc[:, sl] + jnp.dot(p.astype(v.dtype), v,
                                                        preferred_element_type=jnp.float32)
        m_sc[h] = m_new

    @pl.when(j == pl.num_programs(3) - 1)
    def _():
        for h in range(heads_per_group):
            sl = slice(h * head_dim, (h + 1) * head_dim)
            o_ref[0, :, sl] = (acc_sc[:, sl] / l_sc[h]).astype(o_ref.dtype)


def flash_attention(q, k, v, key_bias, num_heads, causal, out_dtype=ACT_DTYPE,
                    tq_target=256, tk_target=512):
    """q: (B, Lq, D), k/v: (B, Lk, D) with heads interleaved along the last dim
    (head h = columns [h*Dh, (h+1)*Dh)).  key_bias: (B, 1, Lk) additive f32 key-padding
    bias.  Output: (B, Lq, D) in the same interleaved-head layout (no transposes)."""
    B, Lq, D = q.shape
    Lk = k.shape[1]
    Dh = D // num_heads
    G = _heads_per_group(num_heads, Dh, D)
    GW = G * Dh
    n_groups = num_heads // G
    tq = _pick_tile(Lq, tq_target, 8)
    tk = _pick_tile(Lk, tk_target, 128)
    kern = functools.partial(_flash_attn_kernel, head_dim=Dh, heads_per_group=G,
                             causal=causal)
    return pl.pallas_call(
        kern,
        out_shape=jax.ShapeDtypeStruct((B, Lq, D), out_dtype),
        grid=(B, n_groups, Lq // tq, Lk // tk),
        in_specs=[
            pl.BlockSpec((1, tq, GW), lambda b, g, i, j: (b, i, g)),
            pl.BlockSpec((1, tk, GW), lambda b, g, i, j: (b, j, g)),
            pl.BlockSpec((1, tk, GW), lambda b, g, i, j: (b, j, g)),
            pl.BlockSpec((1, 1, tk), lambda b, g, i, j: (b, 0, j)),
        ],
        out_specs=pl.BlockSpec((1, tq, GW), lambda b, g, i, j: (b, i, g)),
        scratch_shapes=[
            pltpu.VMEM((G, tq, 1), jnp.float32),    # running max per head
            pltpu.VMEM((G, tq, 1), jnp.float32),    # running denom per head
            pltpu.VMEM((tq, GW), jnp.float32),      # output accumulator (head-interleaved)
        ],
        compiler_params=pltpu.CompilerParams(
            dimension_semantics=("parallel", "parallel", "parallel", "arbitrary")),
    )(q, k, v, key_bias)


# ----------------------------- model glue (JAX) -----------------------------


def multi_head_attention(x_q, x_kv, key_bias, p, num_heads, causal):
    """x_q: (B, Lq, D), x_kv: (B, Lk, D), key_bias: (B, 1, Lk).  Returns (B*Lq, D)
    (pre output-projection; the wo projection is fused with residual+LN by the caller)."""
    B, Lq, D = x_q.shape
    Lk = x_kv.shape[1]
    Dh = D // num_heads
    scale = 1.0 / math.sqrt(Dh)

    # Fold 1/sqrt(Dh) into the Q projection (one tiny (D,D) scale per call, not per KV step).
    wq = (p["wq"].astype(jnp.float32) * scale).astype(W_DTYPE)
    bq = p["bq"] * scale

    q = matmul_bias(x_q.reshape(B * Lq, D), wq, bq).reshape(B, Lq, D)
    kk = matmul_bias(x_kv.reshape(B * Lk, D), p["wk"], p["bk"]).reshape(B, Lk, D)
    vv = matmul_bias(x_kv.reshape(B * Lk, D), p["wv"], p["bv"]).reshape(B, Lk, D)

    o = flash_attention(q, kk, vv, key_bias, num_heads, causal=causal)
    return o.reshape(B * Lq, D)


def encoder_layer(x2d, src_key_bias, p, num_heads, B, L, D):
    x3 = x2d.reshape(B, L, D)
    o = multi_head_attention(x3, x3, src_key_bias, p["self_attn"], num_heads, causal=False)
    x2d = matmul_bias_add_ln(o, p["self_attn"]["wo"], p["self_attn"]["bo"],
                             x2d, p["ln1_g"], p["ln1_b"])
    x2d = ffn_add_ln(x2d, p["ffn"], x2d, p["ln2_g"], p["ln2_b"])
    return x2d


def decoder_layer(x2d, memory, tgt_key_bias, mem_key_bias, p, num_heads, B, L, D):
    x3 = x2d.reshape(B, L, D)
    o = multi_head_attention(x3, x3, tgt_key_bias, p["self_attn"], num_heads, causal=True)
    x2d = matmul_bias_add_ln(o, p["self_attn"]["wo"], p["self_attn"]["bo"],
                             x2d, p["ln1_g"], p["ln1_b"])
    x3 = x2d.reshape(B, L, D)
    o = multi_head_attention(x3, memory, mem_key_bias, p["cross_attn"], num_heads,
                             causal=False)
    x2d = matmul_bias_add_ln(o, p["cross_attn"]["wo"], p["cross_attn"]["bo"],
                             x2d, p["ln2_g"], p["ln2_b"])
    x2d = ffn_add_ln(x2d, p["ffn"], x2d, p["ln3_g"], p["ln3_b"])
    return x2d


def transformer_forward(params, src, tgt, *, num_heads, src_pad_idx, tgt_pad_idx,
                        n_tgt_vocab):
    B, Ls = src.shape
    _, Lt = tgt.shape
    D = params["enc_seq_emb"].shape[1]

    # Key-padding additive biases, (B, 1, L) f32 — no (B, Lq, Lk) mask ever hits HBM.
    src_key_bias = jnp.where((src != src_pad_idx)[:, None, :], 0.0,
                             NEG_INF_MASK).astype(jnp.float32)
    tgt_key_bias = jnp.where((tgt != tgt_pad_idx)[:, None, :], 0.0,
                             NEG_INF_MASK).astype(jnp.float32)

    # ---- Encoder ----
    # TODO(synk): embedding gathers left to XLA (small, data-dependent).
    enc_in = (jnp.take(params["enc_pos_emb"], jnp.arange(Ls), axis=0)[None]
              + jnp.take(params["enc_seq_emb"], src, axis=0))
    x2d = enc_in.astype(ACT_DTYPE).reshape(B * Ls, D)
    for lp in params["enc_layers"]:
        x2d = encoder_layer(x2d, src_key_bias, lp, num_heads, B, Ls, D)
    memory = x2d.reshape(B, Ls, D)

    # ---- Decoder ----
    dec_in = (jnp.take(params["dec_pos_emb"], jnp.arange(Lt), axis=0)[None]
              + jnp.take(params["dec_seq_emb"], tgt, axis=0))
    y2d = dec_in.astype(ACT_DTYPE).reshape(B * Lt, D)
    for lp in params["dec_layers"]:
        y2d = decoder_layer(y2d, memory, tgt_key_bias, src_key_bias, lp,
                            num_heads, B, Lt, D)

    # ---- Output projection (padded to 128 lanes for lane-dense stores, f32 logits) ----
    logits = matmul_bias(y2d, params["fc_w"], params["fc_b"], out_dtype=jnp.float32)
    logits = logits[:, :n_tgt_vocab]
    return logits.reshape(B, Lt, n_tgt_vocab)


# ----------------------------- parameter init --------------------------------


def _init_attn(key, d_model):
    ks = jax.random.split(key, 4)
    s = 0.02

    def w(k):
        return (s * jax.random.normal(k, (d_model, d_model), jnp.float32)).astype(W_DTYPE)

    z = jnp.zeros((d_model,), jnp.float32)
    return {"wq": w(ks[0]), "bq": z, "wk": w(ks[1]), "bk": z,
            "wv": w(ks[2]), "bv": z, "wo": w(ks[3]), "bo": z}


def _init_ffn(key, d_model, hidden_dim):
    k1, k2 = jax.random.split(key)
    s = 0.02
    return {
        "w1": (s * jax.random.normal(k1, (d_model, hidden_dim), jnp.float32)).astype(W_DTYPE),
        "b1": jnp.zeros((hidden_dim,), jnp.float32),
        "w2": (s * jax.random.normal(k2, (hidden_dim, d_model), jnp.float32)).astype(W_DTYPE),
        "b2": jnp.zeros((d_model,), jnp.float32),
    }


def _init_enc_layer(key, d_model, hidden_dim):
    k1, k2 = jax.random.split(key)
    return {
        "self_attn": _init_attn(k1, d_model),
        "ffn": _init_ffn(k2, d_model, hidden_dim),
        "ln1_g": jnp.ones((d_model,), jnp.float32), "ln1_b": jnp.zeros((d_model,), jnp.float32),
        "ln2_g": jnp.ones((d_model,), jnp.float32), "ln2_b": jnp.zeros((d_model,), jnp.float32),
    }


def _init_dec_layer(key, d_model, hidden_dim):
    k1, k2, k3 = jax.random.split(key, 3)
    return {
        "self_attn": _init_attn(k1, d_model),
        "cross_attn": _init_attn(k2, d_model),
        "ffn": _init_ffn(k3, d_model, hidden_dim),
        "ln1_g": jnp.ones((d_model,), jnp.float32), "ln1_b": jnp.zeros((d_model,), jnp.float32),
        "ln2_g": jnp.ones((d_model,), jnp.float32), "ln2_b": jnp.zeros((d_model,), jnp.float32),
        "ln3_g": jnp.ones((d_model,), jnp.float32), "ln3_b": jnp.zeros((d_model,), jnp.float32),
    }


def init_params(key, n_src_vocab, n_tgt_vocab, src_seq_len, tgt_seq_len,
                d_model, num_layers, hidden_dim, src_pad_idx=0, tgt_pad_idx=0):
    keys = jax.random.split(key, 5 + 2 * num_layers)
    s = 0.02
    enc_pos = s * jax.random.normal(keys[0], (src_seq_len, d_model), jnp.float32)
    dec_pos = s * jax.random.normal(keys[1], (tgt_seq_len, d_model), jnp.float32)
    # nn.Embedding(padding_idx=pad_idx): that row is zero at init.
    enc_pos = enc_pos.at[src_pad_idx].set(0.0)
    dec_pos = dec_pos.at[tgt_pad_idx].set(0.0)

    # Final projection padded to a multiple of 128 lanes (zero columns are sliced off later).
    n_pad = ((n_tgt_vocab + 127) // 128) * 128
    fc_w = s * jax.random.normal(keys[4], (d_model, n_tgt_vocab), jnp.float32)
    fc_w = jnp.pad(fc_w, ((0, 0), (0, n_pad - n_tgt_vocab)))

    return {
        "enc_seq_emb": s * jax.random.normal(keys[2], (n_src_vocab, d_model), jnp.float32),
        "enc_pos_emb": enc_pos,
        "dec_seq_emb": s * jax.random.normal(keys[3], (n_tgt_vocab, d_model), jnp.float32),
        "dec_pos_emb": dec_pos,
        "enc_layers": [_init_enc_layer(keys[5 + i], d_model, hidden_dim)
                       for i in range(num_layers)],
        "dec_layers": [_init_dec_layer(keys[5 + num_layers + i], d_model, hidden_dim)
                       for i in range(num_layers)],
        "fc_w": fc_w.astype(W_DTYPE),
        "fc_b": jnp.zeros((n_pad,), jnp.float32),
    }


# ------------------------------------ main ------------------------------------


if __name__ == "__main__":
    # Small, forward-consistent shapes.
    n_src_vocab, n_tgt_vocab = 50, 60
    src_seq_len, tgt_seq_len = 16, 16
    d_model, num_layers, num_heads, hidden_dim = 32, 2, 4, 64
    batch = 2

    key = jax.random.PRNGKey(0)
    kp, ks, kt = jax.random.split(key, 3)

    params = init_params(kp, n_src_vocab, n_tgt_vocab, src_seq_len, tgt_seq_len,
                         d_model, num_layers, hidden_dim)

    # Token ids; include some padding (0) at the tail of each sequence.
    src = jax.random.randint(ks, (batch, src_seq_len), 1, n_src_vocab, dtype=jnp.int32)
    tgt = jax.random.randint(kt, (batch, tgt_seq_len), 1, n_tgt_vocab, dtype=jnp.int32)
    src = src.at[:, -3:].set(0)
    tgt = tgt.at[:, -2:].set(0)

    fwd = jax.jit(functools.partial(transformer_forward, num_heads=num_heads,
                                    src_pad_idx=0, tgt_pad_idx=0,
                                    n_tgt_vocab=n_tgt_vocab))
    out = fwd(params, src, tgt)
    out = jax.block_until_ready(out)

    assert out.shape == (batch, tgt_seq_len, n_tgt_vocab)
    assert bool(jnp.all(jnp.isfinite(out)))
    print("KERNEL_OK")
</pallas_src>

<mosaic_0001>
module attributes {stable_mosaic.version = 11 : i64} {
  func.func @_matmul_bias_kernel(%arg0: i32, %arg1: i32, %arg2: i32, %arg3: memref<32x32xbf16, #tpu.memory_space<vmem>>, %arg4: memref<32x32xbf16, #tpu.memory_space<vmem>>, %arg5: memref<1x32xf32, #tpu.memory_space<vmem>>, %arg6: memref<32x32xbf16, #tpu.memory_space<vmem>>, %arg7: memref<32x32xf32, #tpu.memory_space<vmem>>) attributes {dimension_semantics = [#tpu.dimension_semantics<parallel>, #tpu.dimension_semantics<parallel>, #tpu.dimension_semantics<arbitrary>], iteration_bounds = array<i64: 1, 1, 1>, scalar_prefetch = 0 : i64, scratch_operands = 1 : i64, tpu.core_type = #tpu.core_type<tc>, window_params = [{transform_indices = @transform_0, window_bounds = array<i64: 32, 32>}, {transform_indices = @transform_1, window_bounds = array<i64: 32, 32>}, {transform_indices = @transform_2, window_bounds = array<i64: 1, 32>}, {transform_indices = @transform_3, window_bounds = array<i64: 32, 32>}]} {
    %c0_i32 = arith.constant 0 : i32
    %0 = arith.cmpi eq, %arg2, %c0_i32 : i32
    %1 = arith.extui %0 : i1 to i32
    %c0_i32_0 = arith.constant 0 : i32
    %2 = arith.cmpi ne, %1, %c0_i32_0 : i32
    scf.if %2 {
      %cst_10 = arith.constant 0.000000e+00 : f32
      %12 = vector.broadcast %cst_10 : f32 to vector<32x32xf32>
      %c0_11 = arith.constant 0 : index
      %c0_12 = arith.constant 0 : index
      %13 = vector.load %arg7[%c0_11, %c0_12] : memref<32x32xf32, #tpu.memory_space<vmem>>, vector<32x32xf32>
      tpu.vector_store %arg7[%c0_11, %c0_12], %12 {strides = array<i32>} : memref<32x32xf32, #tpu.memory_space<vmem>>, vector<32x32xf32>,
    } else {
    }
    %c0 = arith.constant 0 : index
    %c0_1 = arith.constant 0 : index
    %3 = vector.load %arg7[%c0, %c0_1] : memref<32x32xf32, #tpu.memory_space<vmem>>, vector<32x32xf32>
    %c0_2 = arith.constant 0 : index
    %c0_3 = arith.constant 0 : index
    %4 = vector.load %arg3[%c0_2, %c0_3] : memref<32x32xbf16, #tpu.memory_space<vmem>>, vector<32x32xbf16>
    %c0_4 = arith.constant 0 : index
    %c0_5 = arith.constant 0 : index
    %5 = vector.load %arg4[%c0_4, %c0_5] : memref<32x32xbf16, #tpu.memory_space<vmem>>, vector<32x32xbf16>
    %cst = arith.constant dense<0.000000e+00> : vector<32x32xf32>
    %6 = tpu.matmul %4, %5, %cst {dimension_numbers = #tpu.dot_dimension_numbers<[1], [0], [0], [1], [0, 0, 1, 1], [], []>} : vector<32x32xbf16>, vector<32x32xbf16>, vector<32x32xf32> -> vector<32x32xf32>
    %7 = arith.addf %3, %6 : vector<32x32xf32>
    %c0_6 = arith.constant 0 : index
    %c0_7 = arith.constant 0 : index
    %8 = vector.load %arg7[%c0_6, %c0_7] : memref<32x32xf32, #tpu.memory_space<vmem>>, vector<32x32xf32>
    tpu.vector_store %arg7[%c0_6, %c0_7], %7 {strides = array<i32>} : memref<32x32xf32, #tpu.memory_space<vmem>>, vector<32x32xf32>,
    %c0_i32_8 = arith.constant 0 : i32
    %9 = arith.cmpi eq, %arg2, %c0_i32_8 : i32
    %10 = arith.extui %9 : i1 to i32
    %c0_i32_9 = arith.constant 0 : i32
    %11 = arith.cmpi ne, %10, %c0_i32_9 : i32
    scf.if %11 {
      %c0_10 = arith.constant 0 : index
      %c0_11 = arith.constant 0 : index
      %12 = vector.load %arg7[%c0_10, %c0_11] : memref<32x32xf32, #tpu.memory_space<vmem>>, vector<32x32xf32>
      %c0_12 = arith.constant 0 : index
      %c0_13 = arith.constant 0 : index
      %13 = vector.load %arg5[%c0_12, %c0_13] : memref<1x32xf32, #tpu.memory_space<vmem>>, vector<1x32xf32>
      %14 = vector.broadcast %13 : vector<1x32xf32> to vector<32x32xf32>
      %15 = arith.addf %12, %14 : vector<32x32xf32>
      %16 = arith.truncf %15 : vector<32x32xf32> to vector<32x32xbf16>
      %c0_14 = arith.constant 0 : index
      %c0_15 = arith.constant 0 : index
      %17 = vector.load %arg6[%c0_14, %c0_15] : memref<32x32xbf16, #tpu.memory_space<vmem>>, vector<32x32xbf16>
      tpu.vector_store %arg6[%c0_14, %c0_15], %16 {strides = array<i32>} : memref<32x32xbf16, #tpu.memory_space<vmem>>, vector<32x32xbf16>,
    } else {
    }
    return
  }
  func.func @transform_0(%arg0: i32, %arg1: i32, %arg2: i32) -> (i32, i32) {
    %c0_i32 = arith.constant 0 : i32
    return %arg0, %arg2 : i32, i32
  }
  func.func @transform_1(%arg0: i32, %arg1: i32, %arg2: i32) -> (i32, i32) {
    %c0_i32 = arith.constant 0 : i32
    return %arg2, %arg1 : i32, i32
  }
  func.func @transform_2(%arg0: i32, %arg1: i32, %arg2: i32) -> (i32, i32) {
    %c0_i32 = arith.constant 0 : i32
    %c0_i32_0 = arith.constant 0 : i32
    return %c0_i32, %arg1 : i32, i32
  }
  func.func @transform_3(%arg0: i32, %arg1: i32, %arg2: i32) -> (i32, i32) {
    %c0_i32 = arith.constant 0 : i32
    return %arg0, %arg1 : i32, i32
  }
}

module attributes {stable_mosaic.version = 11 : i64} {
  func.func @_matmul_bias_ln_kernel(%arg0: i32, %arg1: i32, %arg2: memref<32x32xbf16, #tpu.memory_space<vmem>>, %arg3: memref<32x32xbf16, #tpu.memory_space<vmem>>, %arg4: memref<1x32xf32, #tpu.memory_space<vmem>>, %arg5: memref<32x32xbf16, #tpu.memory_space<vmem>>, %arg6: memref<1x32xf32, #tpu.memory_space<vmem>>, %arg7: memref<1x32xf32, #tpu.memory_space<vmem>>, %arg8: memref<32x32xbf16, #tpu.memory_space<vmem>>, %arg9: memref<32x32xf32, #tpu.memory_space<vmem>>) attributes {dimension_semantics = [#tpu.dimension_semantics<parallel>, #tpu.dimension_semantics<arbitrary>], iteration_bounds = array<i64: 1, 1>, scalar_prefetch = 0 : i64, scratch_operands = 1 : i64, tpu.core_type = #tpu.core_type<tc>, window_params = [{transform_indices = @transform_0, window_bounds = array<i64: 32, 32>}, {transform_indices = @transform_1, window_bounds = array<i64: 32, 32>}, {pipeline_mode = #tpu.pipeline_mode<synchronous>, transform_indices = @transform_2, window_bounds = array<i64: 1, 32>}, {transform_indices = @transform_3, window_bounds = array<i64: 32, 32>}, {pipeline_mode = #tpu.pipeline_mode<synchronous>, transform_indices = @transform_4, window_bounds = array<i64: 1, 32>}, {pipeline_mode = #tpu.pipeline_mode<synchronous>, transform_indices = @transform_5, window_bounds = array<i64: 1, 32>}, {transform_indices = @transform_6, window_bounds = array<i64: 32, 32>}]} {
    %c0_i32 = arith.constant 0 : i32
    %0 = arith.cmpi eq, %arg1, %c0_i32 : i32
    %1 = arith.extui %0 : i1 to i32
    %c0_i32_0 = arith.constant 0 : i32
    %2 = arith.cmpi ne, %1, %c0_i32_0 : i32
    scf.if %2 {
      %cst_10 = arith.constant 0.000000e+00 : f32
      %12 = vector.broadcast %cst_10 : f32 to vector<32x32xf32>
      %c0_11 = arith.constant 0 : index
      %c0_12 = arith.constant 0 : index
      %13 = vector.load %arg9[%c0_11, %c0_12] : memref<32x32xf32, #tpu.memory_space<vmem>>, vector<32x32xf32>
      tpu.vector_store %arg9[%c0_11, %c0_12], %12 {strides = array<i32>} : memref<32x32xf32, #tpu.memory_space<vmem>>, vector<32x32xf32>,
    } else {
    }
    %c0 = arith.constant 0 : index
    %c0_1 = arith.constant 0 : index
    %3 = vector.load %arg9[%c0, %c0_1] : memref<32x32xf32, #tpu.memory_space<vmem>>, vector<32x32xf32>
    %c0_2 = arith.constant 0 : index
    %c0_3 = arith.constant 0 : index
    %4 = vector.load %arg2[%c0_2, %c0_3] : memref<32x32xbf16, #tpu.memory_space<vmem>>, vector<32x32xbf16>
    %c0_4 = arith.constant 0 : index
    %c0_5 = arith.constant 0 : index
    %5 = vector.load %arg3[%c0_4, %c0_5] : memref<32x32xbf16, #tpu.memory_space<vmem>>, vector<32x32xbf16>
    %cst = arith.constant dense<0.000000e+00> : vector<32x32xf32>
    %6 = tpu.matmul %4, %5, %cst {dimension_numbers = #tpu.dot_dimension_numbers<[1], [0], [0], [1], [0, 0, 1, 1], [], []>} : vector<32x32xbf16>, vector<32x32xbf16>, vector<32x32xf32> -> vector<32x32xf32>
    %7 = arith.addf %3, %6 : vector<32x32xf32>
    %c0_6 = arith.constant 0 : index
    %c0_7 = arith.constant 0 : index
    %8 = vector.load %arg9[%c0_6, %c0_7] : memref<32x32xf32, #tpu.memory_space<vmem>>, vector<32x32xf32>
    tpu.vector_store %arg9[%c0_6, %c0_7], %7 {strides = array<i32>} : memref<32x32xf32, #tpu.memory_space<vmem>>, vector<32x32xf32>,
    %c0_i32_8 = arith.constant 0 : i32
    %9 = arith.cmpi eq, %arg1, %c0_i32_8 : i32
    %10 = arith.extui %9 : i1 to i32
    %c0_i32_9 = arith.constant 0 : i32
    %11 = arith.cmpi ne, %10, %c0_i32_9 : i32
    scf.if %11 {
      %c0_10 = arith.constant 0 : index
      %c0_11 = arith.constant 0 : index
      %12 = vector.load %arg9[%c0_10, %c0_11] : memref<32x32xf32, #tpu.memory_space<vmem>>, vector<32x32xf32>
      %c0_12 = arith.constant 0 : index
      %c0_13 = arith.constant 0 : index
      %13 = vector.load %arg4[%c0_12, %c0_13] : memref<1x32xf32, #tpu.memory_space<vmem>>, vector<1x32xf32>
      %14 = vector.broadcast %13 : vector<1x32xf32> to vector<32x32xf32>
      %15 = arith.addf %12, %14 : vector<32x32xf32>
      %c0_14 = arith.constant 0 : index
      %c0_15 = arith.constant 0 : index
      %16 = vector.load %arg5[%c0_14, %c0_15] : memref<32x32xbf16, #tpu.memory_space<vmem>>, vector<32x32xbf16>
      %17 = arith.extf %16 : vector<32x32xbf16> to vector<32x32xf32>
      %18 = arith.addf %15, %17 : vector<32x32xf32>
      %cst_16 = arith.constant dense<0.000000e+00> : vector<32xf32>
      %19 = vector.multi_reduction <add>, %18, %cst_16 [1] : vector<32x32xf32> to vector<32xf32>
      %20 = vector.shape_cast %19 : vector<32xf32> to vector<32x1xf32>
      %cst_17 = arith.constant 3.200000e+01 : f32
      %21 = vector.broadcast %cst_17 : f32 to vector<32x1xf32>
      %22 = arith.divf %20, %21 : vector<32x1xf32>
      %23 = vector.broadcast %22 : vector<32x1xf32> to vector<32x32xf32>
      %24 = arith.subf %18, %23 : vector<32x32xf32>
      %25 = arith.mulf %24, %24 : vector<32x32xf32>
      %cst_18 = arith.constant dense<0.000000e+00> : vector<32xf32>
      %26 = vector.multi_reduction <add>, %25, %cst_18 [1] : vector<32x32xf32> to vector<32xf32>
      %27 = vector.shape_cast %26 : vector<32xf32> to vector<32x1xf32>
      %cst_19 = arith.constant 3.200000e+01 : f32
      %28 = vector.broadcast %cst_19 : f32 to vector<32x1xf32>
      %29 = arith.divf %27, %28 : vector<32x1xf32>
      %30 = vector.broadcast %22 : vector<32x1xf32> to vector<32x32xf32>
      %31 = arith.subf %18, %30 : vector<32x32xf32>
      %cst_20 = arith.constant 9.99999974E-6 : f32
      %32 = vector.broadcast %cst_20 : f32 to vector<32x1xf32>
      %33 = arith.addf %29, %32 : vector<32x1xf32>
      %34 = math.rsqrt %33 : vector<32x1xf32>
      %35 = vector.broadcast %34 : vector<32x1xf32> to vector<32x32xf32>
      %36 = arith.mulf %31, %35 : vector<32x32xf32>
      %c0_21 = arith.constant 0 : index
      %c0_22 = arith.constant 0 : index
      %37 = vector.load %arg6[%c0_21, %c0_22] : memref<1x32xf32, #tpu.memory_space<vmem>>, vector<1x32xf32>
      %38 = vector.broadcast %37 : vector<1x32xf32> to vector<32x32xf32>
      %39 = arith.mulf %36, %38 : vector<32x32xf32>
      %c0_23 = arith.constant 0 : index
      %c0_24 = arith.constant 0 : index
      %40 = vector.load %arg7[%c0_23, %c0_24] : memref<1x32xf32, #tpu.memory_space<vmem>>, vector<1x32xf32>
      %41 = vector.broadcast %40 : vector<1x32xf32> to vector<32x32xf32>
      %42 = arith.addf %39, %41 : vector<32x32xf32>
      %43 = arith.truncf %42 : vector<32x32xf32> to vector<32x32xbf16>
      %c0_25 = arith.constant 0 : index
      %c0_26 = arith.constant 0 : index
      %44 = vector.load %arg8[%c0_25, %c0_26] : memref<32x32xbf16, #tpu.memory_space<vmem>>, vector<32x32xbf16>
      tpu.vector_store %arg8[%c0_25, %c0_26], %43 {strides = array<i32>} : memref<32x32xbf16, #tpu.memory_space<vmem>>, vector<32x32xbf16>,
    } else {
    }
    return
  }
  func.func @transform_0(%arg0: i32, %arg1: i32) -> (i32, i32) {
    %c0_i32 = arith.constant 0 : i32
    return %arg0, %arg1 : i32, i32
  }
  func.func @transform_1(%arg0: i32, %arg1: i32) -> (i32, i32) {
    %c0_i32 = arith.constant 0 : i32
    %c0_i32_0 = arith.constant 0 : i32
    return %arg1, %c0_i32 : i32, i32
  }
  func.func @transform_2(%arg0: i32, %arg1: i32) -> (i32, i32) {
    %c0_i32 = arith.constant 0 : i32
    %c0_i32_0 = arith.constant 0 : i32
    %c0_i32_1 = arith.constant 0 : i32
    return %c0_i32, %c0_i32_0 : i32, i32
  }
  func.func @transform_3(%arg0: i32, %arg1: i32) -> (i32, i32) {
    %c0_i32 = arith.constant 0 : i32
    %c0_i32_0 = arith.constant 0 : i32
    return %arg0, %c0_i32 : i32, i32
  }
  func.func @transform_4(%arg0: i32, %arg1: i32) -> (i32, i32) {
    %c0_i32 = arith.constant 0 : i32
    %c0_i32_0 = arith.constant 0 : i32
    %c0_i32_1 = arith.constant 0 : i32
    return %c0_i32, %c0_i32_0 : i32, i32
  }
  func.func @transform_5(%arg0: i32, %arg1: i32) -> (i32, i32) {
    %c0_i32 = arith.constant 0 : i32
    %c0_i32_0 = arith.constant 0 : i32
    %c0_i32_1 = arith.constant 0 : i32
    return %c0_i32, %c0_i32_0 : i32, i32
  }
  func.func @transform_6(%arg0: i32, %arg1: i32) -> (i32, i32) {
    %c0_i32 = arith.constant 0 : i32
    %c0_i32_0 = arith.constant 0 : i32
    return %arg0, %c0_i32 : i32, i32
  }
}

module attributes {stable_mosaic.version = 11 : i64} {
  func.func @_flash_attn_kernel(%arg0: i32, %arg1: i32, %arg2: i32, %arg3: i32, %arg4: memref<1x16x32xbf16, #tpu.memory_space<vmem>>, %arg5: memref<1x16x32xbf16, #tpu.memory_space<vmem>>, %arg6: memref<1x16x32xbf16, #tpu.memory_space<vmem>>, %arg7: memref<1x1x16xf32, #tpu.memory_space<vmem>>, %arg8: memref<1x16x32xbf16, #tpu.memory_space<vmem>>, %arg9: memref<4x16x1xf32, #tpu.memory_space<vmem>>, %arg10: memref<4x16x1xf32, #tpu.memory_space<vmem>>, %arg11: memref<16x32xf32, #tpu.memory_space<vmem>>) attributes {dimension_semantics = [#tpu.dimension_semantics<parallel>, #tpu.dimension_semantics<parallel>, #tpu.dimension_semantics<parallel>, #tpu.dimension_semantics<arbitrary>], iteration_bounds = array<i64: 2, 1, 1, 1>, scalar_prefetch = 0 : i64, scratch_operands = 3 : i64, tpu.core_type = #tpu.core_type<tc>, window_params = [{transform_indices = @transform_0, window_bounds = array<i64: 1, 16, 32>}, {transform_indices = @transform_1, window_bounds = array<i64: 1, 16, 32>}, {transform_indices = @transform_2, window_bounds = array<i64: 1, 16, 32>}, {transform_indices = @transform_3, window_bounds = array<i64: 1, 1, 16>}, {transform_indices = @transform_4, window_bounds = array<i64: 1, 16, 32>}]} {
    %c0_i32 = arith.constant 0 : i32
    %0 = arith.cmpi eq, %arg3, %c0_i32 : i32
    %1 = arith.extui %0 : i1 to i32
    %c0_i32_0 = arith.constant 0 : i32
    %2 = arith.cmpi ne, %1, %c0_i32_0 : i32
    scf.if %2 {
      %cst_117 = arith.constant 0xFF800000 : f32
      %170 = vector.broadcast %cst_117 : f32 to vector<4x16x1xf32>
      %c0_118 = arith.constant 0 : index
      %c0_119 = arith.constant 0 : index
      %c0_120 = arith.constant 0 : index
      %171 = vector.load %arg9[%c0_118, %c0_119, %c0_120] : memref<4x16x1xf32, #tpu.memory_space<vmem>>, vector<4x16x1xf32>
      tpu.vector_store %arg9[%c0_118, %c0_119, %c0_120], %170 {strides = array<i32>} : memref<4x16x1xf32, #tpu.memory_space<vmem>>, vector<4x16x1xf32>,
      %cst_121 = arith.constant 0.000000e+00 : f32
      %172 = vector.broadcast %cst_121 : f32 to vector<4x16x1xf32>
      %c0_122 = arith.constant 0 : index
      %c0_123 = arith.constant 0 : index
      %c0_124 = arith.constant 0 : index
      %173 = vector.load %arg10[%c0_122, %c0_123, %c0_124] : memref<4x16x1xf32, #tpu.memory_space<vmem>>, vector<4x16x1xf32>
      tpu.vector_store %arg10[%c0_122, %c0_123, %c0_124], %172 {strides = array<i32>} : memref<4x16x1xf32, #tpu.memory_space<vmem>>, vector<4x16x1xf32>,
      %cst_125 = arith.constant 0.000000e+00 : f32
      %174 = vector.broadcast %cst_125 : f32 to vector<16x32xf32>
      %c0_126 = arith.constant 0 : index
      %c0_127 = arith.constant 0 : index
      %175 = vector.load %arg11[%c0_126, %c0_127] : memref<16x32xf32, #tpu.memory_space<vmem>>, vector<16x32xf32>
      tpu.vector_store %arg11[%c0_126, %c0_127], %174 {strides = array<i32>} : memref<16x32xf32, #tpu.memory_space<vmem>>, vector<16x32xf32>,
    } else {
    }
    %c0 = arith.constant 0 : index
    %c0_1 = arith.constant 0 : index
    %c0_2 = arith.constant 0 : index
    %3 = vector.load %arg7[%c0, %c0_1, %c0_2] : memref<1x1x16xf32, #tpu.memory_space<vmem>>, vector<1x1x16xf32>
    %4 = vector.shape_cast %3 : vector<1x1x16xf32> to vector<1x16xf32>
    %5 = tpu.iota {dimensions = array<i32: 0>} : vector<16x16xi32>
    %c16_i32 = arith.constant 16 : i32
    %6 = arith.muli %arg2, %c16_i32 : i32
    %7 = vector.broadcast %6 : i32 to vector<16x16xi32>
    %8 = arith.addi %5, %7 : vector<16x16xi32>
    %9 = tpu.iota {dimensions = array<i32: 1>} : vector<16x16xi32>
    %c16_i32_3 = arith.constant 16 : i32
    %10 = arith.muli %arg3, %c16_i32_3 : i32
    %11 = vector.broadcast %10 : i32 to vector<16x16xi32>
    %12 = arith.addi %9, %11 : vector<16x16xi32>
    %13 = arith.cmpi sle, %12, %8 : vector<16x16xi32>
    %cst = arith.constant 0.000000e+00 : f32
    %cst_4 = arith.constant -1.000000e+09 : f32
    %14 = vector.broadcast %cst : f32 to vector<16x16xf32>
    %15 = vector.broadcast %cst_4 : f32 to vector<16x16xf32>
    %16 = arith.select %13, %14, %15 : vector<16x16xi1>, vector<16x16xf32>
    %17 = vector.broadcast %4 : vector<1x16xf32> to vector<16x16xf32>
    %18 = arith.addf %17, %16 : vector<16x16xf32>
    %c0_5 = arith.constant 0 : index
    %c0_6 = arith.constant 0 : index
    %c0_7 = arith.constant 0 : index
    %19 = vector.load %arg4[%c0_5, %c0_6, %c0_7] : memref<1x16x32xbf16, #tpu.memory_space<vmem>>, vector<1x16x8xbf16>
    %20 = vector.shape_cast %19 : vector<1x16x8xbf16> to vector<16x8xbf16>
    %c0_8 = arith.constant 0 : index
    %c0_9 = arith.constant 0 : index
    %c0_10 = arith.constant 0 : index
    %21 = vector.load %arg5[%c0_8, %c0_9, %c0_10] : memref<1x16x32xbf16, #tpu.memory_space<vmem>>, vector<1x16x8xbf16>
    %22 = vector.shape_cast %21 : vector<1x16x8xbf16> to vector<16x8xbf16>
    %c0_11 = arith.constant 0 : index
    %c0_12 = arith.constant 0 : index
    %c0_13 = arith.constant 0 : index
    %23 = vector.load %arg6[%c0_11, %c0_12, %c0_13] : memref<1x16x32xbf16, #tpu.memory_space<vmem>>, vector<1x16x8xbf16>
    %24 = vector.shape_cast %23 : vector<1x16x8xbf16> to vector<16x8xbf16>
    %cst_14 = arith.constant dense<0.000000e+00> : vector<16x16xf32>
    %25 = tpu.matmul %20, %22, %cst_14 {dimension_numbers = #tpu.dot_dimension_numbers<[1], [1], [0], [0], [0, 0, 1, 0], [], []>} : vector<16x8xbf16>, vector<16x8xbf16>, vector<16x16xf32> -> vector<16x16xf32>
    %26 = arith.addf %25, %18 : vector<16x16xf32>
    %c0_15 = arith.constant 0 : index
    %c0_16 = arith.constant 0 : index
    %c0_17 = arith.constant 0 : index
    %27 = vector.load %arg9[%c0_15, %c0_16, %c0_17] : memref<4x16x1xf32, #tpu.memory_space<vmem>>, vector<1x16x1xf32>
    %28 = vector.shape_cast %27 : vector<1x16x1xf32> to vector<16x1xf32>
    %cst_18 = arith.constant dense<0xFF800000> : vector<16xf32>
    %29 = vector.multi_reduction <maximumf>, %26, %cst_18 [1] : vector<16x16xf32> to vector<16xf32>
    %30 = vector.shape_cast %29 : vector<16xf32> to vector<16x1xf32>
    %31 = arith.maximumf %28, %30 : vector<16x1xf32>
    %32 = arith.subf %28, %31 : vector<16x1xf32>
    %33 = math.exp %32 : vector<16x1xf32>
    %34 = vector.broadcast %31 : vector<16x1xf32> to vector<16x16xf32>
    %35 = arith.subf %26, %34 : vector<16x16xf32>
    %36 = math.exp %35 : vector<16x16xf32>
    %c0_19 = arith.constant 0 : index
    %c0_20 = arith.constant 0 : index
    %c0_21 = arith.constant 0 : index
    %37 = vector.load %arg10[%c0_19, %c0_20, %c0_21] : memref<4x16x1xf32, #tpu.memory_space<vmem>>, vector<1x16x1xf32>
    %38 = vector.shape_cast %37 : vector<1x16x1xf32> to vector<16x1xf32>
    %39 = arith.mulf %33, %38 : vector<16x1xf32>
    %cst_22 = arith.constant dense<0.000000e+00> : vector<16xf32>
    %40 = vector.multi_reduction <add>, %36, %cst_22 [1] : vector<16x16xf32> to vector<16xf32>
    %41 = vector.shape_cast %40 : vector<16xf32> to vector<16x1xf32>
    %42 = arith.addf %39, %41 : vector<16x1xf32>
    %c0_23 = arith.constant 0 : index
    %c0_24 = arith.constant 0 : index
    %c0_25 = arith.constant 0 : index
    %43 = vector.load %arg10[%c0_23, %c0_24, %c0_25] : memref<4x16x1xf32, #tpu.memory_space<vmem>>, vector<1x16x1xf32>
    %44 = vector.shape_cast %43 : vector<1x16x1xf32> to vector<16x1xf32>
    %45 = vector.shape_cast %42 : vector<16x1xf32> to vector<1x16x1xf32>
    tpu.vector_store %arg10[%c0_23, %c0_24, %c0_25], %45 {strides = array<i32>} : memref<4x16x1xf32, #tpu.memory_space<vmem>>, vector<1x16x1xf32>,
    %c0_26 = arith.constant 0 : index
    %c0_27 = arith.constant 0 : index
    %46 = vector.load %arg11[%c0_26, %c0_27] : memref<16x32xf32, #tpu.memory_space<vmem>>, vector<16x8xf32>
    %47 = vector.broadcast %33 : vector<16x1xf32> to vector<16x8xf32>
    %48 = arith.mulf %47, %46 : vector<16x8xf32>
    %49 = arith.truncf %36 : vector<16x16xf32> to vector<16x16xbf16>
    %cst_28 = arith.constant dense<0.000000e+00> : vector<16x8xf32>
    %50 = tpu.matmul %49, %24, %cst_28 {dimension_numbers = #tpu.dot_dimension_numbers<[1], [0], [0], [1], [0, 0, 1, 1], [], []>} : vector<16x16xbf16>, vector<16x8xbf16>, vector<16x8xf32> -> vector<16x8xf32>
    %51 = arith.addf %48, %50 : vector<16x8xf32>
    %c0_29 = arith.constant 0 : index
    %c0_30 = arith.constant 0 : index
    %52 = vector.load %arg11[%c0_29, %c0_30] : memref<16x32xf32, #tpu.memory_space<vmem>>, vector<16x8xf32>
    tpu.vector_store %arg11[%c0_29, %c0_30], %51 {strides = array<i32>} : memref<16x32xf32, #tpu.memory_space<vmem>>, vector<16x8xf32>,
    %c0_31 = arith.constant 0 : index
    %c0_32 = arith.constant 0 : index
    %c0_33 = arith.constant 0 : index
    %53 = vector.load %arg9[%c0_31, %c0_32, %c0_33] : memref<4x16x1xf32, #tpu.memory_space<vmem>>, vector<1x16x1xf32>
    %54 = vector.shape_cast %53 : vector<1x16x1xf32> to vector<16x1xf32>
    %55 = vector.shape_cast %31 : vector<16x1xf32> to vector<1x16x1xf32>
    tpu.vector_store %arg9[%c0_31, %c0_32, %c0_33], %55 {strides = array<i32>} : memref<4x16x1xf32, #tpu.memory_space<vmem>>, vector<1x16x1xf32>,
    %c0_34 = arith.constant 0 : index
    %c0_35 = arith.constant 0 : index
    %c8 = arith.constant 8 : index
    %56 = vector.load %arg4[%c0_34, %c0_35, %c8] : memref<1x16x32xbf16, #tpu.memory_space<vmem>>, vector<1x16x8xbf16>
    %57 = vector.shape_cast %56 : vector<1x16x8xbf16> to vector<16x8xbf16>
    %c0_36 = arith.constant 0 : index
    %c0_37 = arith.constant 0 : index
    %c8_38 = arith.constant 8 : index
    %58 = vector.load %arg5[%c0_36, %c0_37, %c8_38] : memref<1x16x32xbf16, #tpu.memory_space<vmem>>, vector<1x16x8xbf16>
    %59 = vector.shape_cast %58 : vector<1x16x8xbf16> to vector<16x8xbf16>
    %c0_39 = arith.constant 0 : index
    %c0_40 = arith.constant 0 : index
    %c8_41 = arith.constant 8 : index
    %60 = vector.load %arg6[%c0_39, %c0_40, %c8_41] : memref<1x16x32xbf16, #tpu.memory_space<vmem>>, vector<1x16x8xbf16>
    %61 = vector.shape_cast %60 : vector<1x16x8xbf16> to vector<16x8xbf16>
    %cst_42 = arith.constant dense<0.000000e+00> : vector<16x16xf32>
    %62 = tpu.matmul %57, %59, %cst_42 {dimension_numbers = #tpu.dot_dimension_numbers<[1], [1], [0], [0], [0, 0, 1, 0], [], []>} : vector<16x8xbf16>, vector<16x8xbf16>, vector<16x16xf32> -> vector<16x16xf32>
    %63 = arith.addf %62, %18 : vector<16x16xf32>
    %c1 = arith.constant 1 : index
    %c0_43 = arith.constant 0 : index
    %c0_44 = arith.constant 0 : index
    %64 = vector.load %arg9[%c1, %c0_43, %c0_44] : memref<4x16x1xf32, #tpu.memory_space<vmem>>, vector<1x16x1xf32>
    %65 = vector.shape_cast %64 : vector<1x16x1xf32> to vector<16x1xf32>
    %cst_45 = arith.constant dense<0xFF800000> : vector<16xf32>
    %66 = vector.multi_reduction <maximumf>, %63, %cst_45 [1] : vector<16x16xf32> to vector<16xf32>
    %67 = vector.shape_cast %66 : vector<16xf32> to vector<16x1xf32>
    %68 = arith.maximumf %65, %67 : vector<16x1xf32>
    %69 = arith.subf %65, %68 : vector<16x1xf32>
    %70 = math.exp %69 : vector<16x1xf32>
    %71 = vector.broadcast %68 : vector<16x1xf32> to vector<16x16xf32>
    %72 = arith.subf %63, %71 : vector<16x16xf32>
    %73 = math.exp %72 : vector<16x16xf32>
    %c1_46 = arith.constant 1 : index
    %c0_47 = arith.constant 0 : index
    %c0_48 = arith.constant 0 : index
    %74 = vector.load %arg10[%c1_46, %c0_47, %c0_48] : memref<4x16x1xf32, #tpu.memory_space<vmem>>, vector<1x16x1xf32>
    %75 = vector.shape_cast %74 : vector<1x16x1xf32> to vector<16x1xf32>
    %76 = arith.mulf %70, %75 : vector<16x1xf32>
    %cst_49 = arith.constant dense<0.000000e+00> : vector<16xf32>
    %77 = vector.multi_reduction <add>, %73, %cst_49 [1] : vector<16x16xf32> to vector<16xf32>
    %78 = vector.shape_cast %77 : vector<16xf32> to vector<16x1xf32>
    %79 = arith.addf %76, %78 : vector<16x1xf32>
    %c1_50 = arith.constant 1 : index
    %c0_51 = arith.constant 0 : index
    %c0_52 = arith.constant 0 : index
    %80 = vector.load %arg10[%c1_50, %c0_51, %c0_52] : memref<4x16x1xf32, #tpu.memory_space<vmem>>, vector<1x16x1xf32>
    %81 = vector.shape_cast %80 : vector<1x16x1xf32> to vector<16x1xf32>
    %82 = vector.shape_cast %79 : vector<16x1xf32> to vector<1x16x1xf32>
    tpu.vector_store %arg10[%c1_50, %c0_51, %c0_52], %82 {strides = array<i32>} : memref<4x16x1xf32, #tpu.memory_space<vmem>>, vector<1x16x1xf32>,
    %c0_53 = arith.constant 0 : index
    %c8_54 = arith.constant 8 : index
    %83 = vector.load %arg11[%c0_53, %c8_54] : memref<16x32xf32, #tpu.memory_space<vmem>>, vector<16x8xf32>
    %84 = vector.broadcast %70 : vector<16x1xf32> to vector<16x8xf32>
    %85 = arith.mulf %84, %83 : vector<16x8xf32>
    %86 = arith.truncf %73 : vector<16x16xf32> to vector<16x16xbf16>
    %cst_55 = arith.constant dense<0.000000e+00> : vector<16x8xf32>
    %87 = tpu.matmul %86, %61, %cst_55 {dimension_numbers = #tpu.dot_dimension_numbers<[1], [0], [0], [1], [0, 0, 1, 1], [], []>} : vector<16x16xbf16>, vector<16x8xbf16>, vector<16x8xf32> -> vector<16x8xf32>
    %88 = arith.addf %85, %87 : vector<16x8xf32>
    %c0_56 = arith.constant 0 : index
    %c8_57 = arith.constant 8 : index
    %89 = vector.load %arg11[%c0_56, %c8_57] : memref<16x32xf32, #tpu.memory_space<vmem>>, vector<16x8xf32>
    tpu.vector_store %arg11[%c0_56, %c8_57], %88 {strides = array<i32>} : memref<16x32xf32, #tpu.memory_space<vmem>>, vector<16x8xf32>,
    %c1_58 = arith.constant 1 : index
    %c0_59 = arith.constant 0 : index
    %c0_60 = arith.constant 0 : index
    %90 = vector.load %arg9[%c1_58, %c0_59, %c0_60] : memref<4x16x1xf32, #tpu.memory_space<vmem>>, vector<1x16x1xf32>
    %91 = vector.shape_cast %90 : vector<1x16x1xf32> to vector<16x1xf32>
    %92 = vector.shape_cast %68 : vector<16x1xf32> to vector<1x16x1xf32>
    tpu.vector_store %arg9[%c1_58, %c0_59, %c0_60], %92 {strides = array<i32>} : memref<4x16x1xf32, #tpu.memory_space<vmem>>, vector<1x16x1xf32>,
    %c0_61 = arith.constant 0 : index
    %c0_62 = arith.constant 0 : index
    %c16 = arith.constant 16 : index
    %93 = vector.load %arg4[%c0_61, %c0_62, %c16] : memref<1x16x32xbf16, #tpu.memory_space<vmem>>, vector<1x16x8xbf16>
    %94 = vector.shape_cast %93 : vector<1x16x8xbf16> to vector<16x8xbf16>
    %c0_63 = arith.constant 0 : index
    %c0_64 = arith.constant 0 : index
    %c16_65 = arith.constant 16 : index
    %95 = vector.load %arg5[%c0_63, %c0_64, %c16_65] : memref<1x16x32xbf16, #tpu.memory_space<vmem>>, vector<1x16x8xbf16>
    %96 = vector.shape_cast %95 : vector<1x16x8xbf16> to vector<16x8xbf16>
    %c0_66 = arith.constant 0 : index
    %c0_67 = arith.constant 0 : index
    %c16_68 = arith.constant 16 : index
    %97 = vector.load %arg6[%c0_66, %c0_67, %c16_68] : memref<1x16x32xbf16, #tpu.memory_space<vmem>>, vector<1x16x8xbf16>
    %98 = vector.shape_cast %97 : vector<1x16x8xbf16> to vector<16x8xbf16>
    %cst_69 = arith.constant dense<0.000000e+00> : vector<16x16xf32>
    %99 = tpu.matmul %94, %96, %cst_69 {dimension_numbers = #tpu.dot_dimension_numbers<[1], [1], [0], [0], [0, 0, 1, 0], [], []>} : vector<16x8xbf16>, vector<16x8xbf16>, vector<16x16xf32> -> vector<16x16xf32>
    %100 = arith.addf %99, %18 : vector<16x16xf32>
    %c2 = arith.constant 2 : index
    %c0_70 = arith.constant 0 : index
    %c0_71 = arith.constant 0 : index
    %101 = vector.load %arg9[%c2, %c0_70, %c0_71] : memref<4x16x1xf32, #tpu.memory_space<vmem>>, vector<1x16x1xf32>
    %102 = vector.shape_cast %101 : vector<1x16x1xf32> to vector<16x1xf32>
    %cst_72 = arith.constant dense<0xFF800000> : vector<16xf32>
    %103 = vector.multi_reduction <maximumf>, %100, %cst_72 [1] : vector<16x16xf32> to vector<16xf32>
    %104 = vector.shape_cast %103 : vector<16xf32> to vector<16x1xf32>
    %105 = arith.maximumf %102, %104 : vector<16x1xf32>
    %106 = arith.subf %102, %105 : vector<16x1xf32>
    %107 = math.exp %106 : vector<16x1xf32>
    %108 = vector.broadcast %105 : vector<16x1xf32> to vector<16x16xf32>
    %109 = arith.subf %100, %108 : vector<16x16xf32>
    %110 = math.exp %109 : vector<16x16xf32>
    %c2_73 = arith.constant 2 : index
    %c0_74 = arith.constant 0 : index
    %c0_75 = arith.constant 0 : index
    %111 = vector.load %arg10[%c2_73, %c0_74, %c0_75] : memref<4x16x1xf32, #tpu.memory_space<vmem>>, vector<1x16x1xf32>
    %112 = vector.shape_cast %111 : vector<1x16x1xf32> to vector<16x1xf32>
    %113 = arith.mulf %107, %112 : vector<16x1xf32>
    %cst_76 = arith.constant dense<0.000000e+00> : vector<16xf32>
    %114 = vector.multi_reduction <add>, %110, %cst_76 [1] : vector<16x16xf32> to vector<16xf32>
    %115 = vector.shape_cast %114 : vector<16xf32> to vector<16x1xf32>
    %116 = arith.addf %113, %115 : vector<16x1xf32>
    %c2_77 = arith.constant 2 : index
    %c0_78 = arith.constant 0 : index
    %c0_79 = arith.constant 0 : index
    %117 = vector.load %arg10[%c2_77, %c0_78, %c0_79] : memref<4x16x1xf32, #tpu.memory_space<vmem>>, vector<1x16x1xf32>
    %118 = vector.shape_cast %117 : vector<1x16x1xf32> to vector<16x1xf32>
    %119 = vector.shape_cast %116 : vector<16x1xf32> to vector<1x16x1xf32>
    tpu.vector_store %arg10[%c2_77, %c0_78, %c0_79], %119 {strides = array<i32>} : memref<4x16x1xf32, #tpu.memory_space<vmem>>, vector<1x16x1xf32>,
    %c0_80 = arith.constant 0 : index
    %c16_81 = arith.constant 16 : index
    %120 = vector.load %arg11[%c0_80, %c16_81] : memref<16x32xf32, #tpu.memory_space<vmem>>, vector<16x8xf32>
    %121 = vector.broadcast %107 : vector<16x1xf32> to vector<16x8xf32>
    %122 = arith.mulf %121, %120 : vector<16x8xf32>
    %123 = arith.truncf %110 : vector<16x16xf32> to vector<16x16xbf16>
    %cst_82 = arith.constant dense<0.000000e+00> : vector<16x8xf32>
    %124 = tpu.matmul %123, %98, %cst_82 {dimension_numbers = #tpu.dot_dimension_numbers<[1], [0], [0], [1], [0, 0, 1, 1], [], []>} : vector<16x16xbf16>, vector<16x8xbf16>, vector<16x8xf32> -> vector<16x8xf32>
    %125 = arith.addf %122, %124 : vector<16x8xf32>
    %c0_83 = arith.constant 0 : index
    %c16_84 = arith.constant 16 : index
    %126 = vector.load %arg11[%c0_83, %c16_84] : memref<16x32xf32, #tpu.memory_space<vmem>>, vector<16x8xf32>
    tpu.vector_store %arg11[%c0_83, %c16_84], %125 {strides = array<i32>} : memref<16x32xf32, #tpu.memory_space<vmem>>, vector<16x8xf32>,
    %c2_85 = arith.constant 2 : index
    %c0_86 = arith.constant 0 : index
    %c0_87 = arith.constant 0 : index
    %127 = vector.load %arg9[%c2_85, %c0_86, %c0_87] : memref<4x16x1xf32, #tpu.memory_space<vmem>>, vector<1x16x1xf32>
    %128 = vector.shape_cast %127 : vector<1x16x1xf32> to vector<16x1xf32>
    %129 = vector.shape_cast %105 : vector<16x1xf32> to vector<1x16x1xf32>
    tpu.vector_store %arg9[%c2_85, %c0_86, %c0_87], %129 {strides = array<i32>} : memref<4x16x1xf32, #tpu.memory_space<vmem>>, vector<1x16x1xf32>,
    %c0_88 = arith.constant 0 : index
    %c0_89 = arith.constant 0 : index
    %c24 = arith.constant 24 : index
    %130 = vector.load %arg4[%c0_88, %c0_89, %c24] : memref<1x16x32xbf16, #tpu.memory_space<vmem>>, vector<1x16x8xbf16>
    %131 = vector.shape_cast %130 : vector<1x16x8xbf16> to vector<16x8xbf16>
    %c0_90 = arith.constant 0 : index
    %c0_91 = arith.constant 0 : index
    %c24_92 = arith.constant 24 : index
    %132 = vector.load %arg5[%c0_90, %c0_91, %c24_92] : memref<1x16x32xbf16, #tpu.memory_space<vmem>>, vector<1x16x8xbf16>
    %133 = vector.shape_cast %132 : vector<1x16x8xbf16> to vector<16x8xbf16>
    %c0_93 = arith.constant 0 : index
    %c0_94 = arith.constant 0 : index
    %c24_95 = arith.constant 24 : index
    %134 = vector.load %arg6[%c0_93, %c0_94, %c24_95] : memref<1x16x32xbf16, #tpu.memory_space<vmem>>, vector<1x16x8xbf16>
    %135 = vector.shape_cast %134 : vector<1x16x8xbf16> to vector<16x8xbf16>
    %cst_96 = arith.constant dense<0.000000e+00> : vector<16x16xf32>
    %136 = tpu.matmul %131, %133, %cst_96 {dimension_numbers = #tpu.dot_dimension_numbers<[1], [1], [0], [0], [0, 0, 1, 0], [], []>} : vector<16x8xbf16>, vector<16x8xbf16>, vector<16x16xf32> -> vector<16x16xf32>
    %137 = arith.addf %136, %18 : vector<16x16xf32>
    %c3 = arith.constant 3 : index
    %c0_97 = arith.constant 0 : index
    %c0_98 = arith.constant 0 : index
    %138 = vector.load %arg9[%c3, %c0_97, %c0_98] : memref<4x16x1xf32, #tpu.memory_space<vmem>>, vector<1x16x1xf32>
    %139 = vector.shape_cast %138 : vector<1x16x1xf32> to vector<16x1xf32>
    %cst_99 = arith.constant dense<0xFF800000> : vector<16xf32>
    %140 = vector.multi_reduction <maximumf>, %137, %cst_99 [1] : vector<16x16xf32> to vector<16xf32>
    %141 = vector.shape_cast %140 : vector<16xf32> to vector<16x1xf32>
    %142 = arith.maximumf %139, %141 : vector<16x1xf32>
    %143 = arith.subf %139, %142 : vector<16x1xf32>
    %144 = math.exp %143 : vector<16x1xf32>
    %145 = vector.broadcast %142 : vector<16x1xf32> to vector<16x16xf32>
    %146 = arith.subf %137, %145 : vector<16x16xf32>
    %147 = math.exp %146 : vector<16x16xf32>
    %c3_100 = arith.constant 3 : index
    %c0_101 = arith.constant 0 : index
    %c0_102 = arith.constant 0 : index
    %148 = vector.load %arg10[%c3_100, %c0_101, %c0_102] : memref<4x16x1xf32, #tpu.memory_space<vmem>>, vector<1x16x1xf32>
    %149 = vector.shape_cast %148 : vector<1x16x1xf32> to vector<16x1xf32>
    %150 = arith.mulf %144, %149 : vector<16x1xf32>
    %cst_103 = arith.constant dense<0.000000e+00> : vector<16xf32>
    %151 = vector.multi_reduction <add>, %147, %cst_103 [1] : vector<16x16xf32> to vector<16xf32>
    %152 = vector.shape_cast %151 : vector<16xf32> to vector<16x1xf32>
    %153 = arith.addf %150, %152 : vector<16x1xf32>
    %c3_104 = arith.constant 3 : index
    %c0_105 = arith.constant 0 : index
    %c0_106 = arith.constant 0 : index
    %154 = vector.load %arg10[%c3_104, %c0_105, %c0_106] : memref<4x16x1xf32, #tpu.memory_space<vmem>>, vector<1x16x1xf32>
    %155 = vector.shape_cast %154 : vector<1x16x1xf32> to vector<16x1xf32>
    %156 = vector.shape_cast %153 : vector<16x1xf32> to vector<1x16x1xf32>
    tpu.vector_store %arg10[%c3_104, %c0_105, %c0_106], %156 {strides = array<i32>} : memref<4x16x1xf32, #tpu.memory_space<vmem>>, vector<1x16x1xf32>,
    %c0_107 = arith.constant 0 : index
    %c24_108 = arith.constant 24 : index
    %157 = vector.load %arg11[%c0_107, %c24_108] : memref<16x32xf32, #tpu.memory_space<vmem>>, vector<16x8xf32>
    %158 = vector.broadcast %144 : vector<16x1xf32> to vector<16x8xf32>
    %159 = arith.mulf %158, %157 : vector<16x8xf32>
    %160 = arith.truncf %147 : vector<16x16xf32> to vector<16x16xbf16>
    %cst_109 = arith.constant dense<0.000000e+00> : vector<16x8xf32>
    %161 = tpu.matmul %160, %135, %cst_109 {dimension_numbers = #tpu.dot_dimension_numbers<[1], [0], [0], [1], [0, 0, 1, 1], [], []>} : vector<16x16xbf16>, vector<16x8xbf16>, vector<16x8xf32> -> vector<16x8xf32>
    %162 = arith.addf %159, %161 : vector<16x8xf32>
    %c0_110 = arith.constant 0 : index
    %c24_111 = arith.constant 24 : index
    %163 = vector.load %arg11[%c0_110, %c24_111] : memref<16x32xf32, #tpu.memory_space<vmem>>, vector<16x8xf32>
    tpu.vector_store %arg11[%c0_110, %c24_111], %162 {strides = array<i32>} : memref<16x32xf32, #tpu.memory_space<vmem>>, vector<16x8xf32>,
    %c3_112 = arith.constant 3 : index
    %c0_113 = arith.constant 0 : index
    %c0_114 = arith.constant 0 : index
    %164 = vector.load %arg9[%c3_112, %c0_113, %c0_114] : memref<4x16x1xf32, #tpu.memory_space<vmem>>, vector<1x16x1xf32>
    %165 = vector.shape_cast %164 : vector<1x16x1xf32> to vector<16x1xf32>
    %166 = vector.shape_cast %142 : vector<16x1xf32> to vector<1x16x1xf32>
    tpu.vector_store %arg9[%c3_112, %c0_113, %c0_114], %166 {strides = array<i32>} : memref<4x16x1xf32, #tpu.memory_space<vmem>>, vector<1x16x1xf32>,
    %c0_i32_115 = arith.constant 0 : i32
    %167 = arith.cmpi eq, %arg3, %c0_i32_115 : i32
    %168 = arith.extui %167 : i1 to i32
    %c0_i32_116 = arith.constant 0 : i32
    %169 = arith.cmpi ne, %168, %c0_i32_116 : i32
    scf.if %169 {
      %c0_117 = arith.constant 0 : index
      %c0_118 = arith.constant 0 : index
      %170 = vector.load %arg11[%c0_117, %c0_118] : memref<16x32xf32, #tpu.memory_space<vmem>>, vector<16x8xf32>
      %c0_119 = arith.constant 0 : index
      %c0_120 = arith.constant 0 : index
      %c0_121 = arith.constant 0 : index
      %171 = vector.load %arg10[%c0_119, %c0_120, %c0_121] : memref<4x16x1xf32, #tpu.memory_space<vmem>>, vector<1x16x1xf32>
      %172 = vector.shape_cast %171 : vector<1x16x1xf32> to vector<16x1xf32>
      %173 = vector.broadcast %172 : vector<16x1xf32> to vector<16x8xf32>
      %174 = arith.divf %170, %173 : vector<16x8xf32>
      %175 = arith.truncf %174 : vector<16x8xf32> to vector<16x8xbf16>
      %c0_122 = arith.constant 0 : index
      %c0_123 = arith.constant 0 : index
      %c0_124 = arith.constant 0 : index
      %176 = vector.load %arg8[%c0_122, %c0_123, %c0_124] : memref<1x16x32xbf16, #tpu.memory_space<vmem>>, vector<1x16x8xbf16>
      %177 = vector.shape_cast %176 : vector<1x16x8xbf16> to vector<16x8xbf16>
      %178 = vector.shape_cast %175 : vector<16x8xbf16> to vector<1x16x8xbf16>
      tpu.vector_store %arg8[%c0_122, %c0_123, %c0_124], %178 {strides = array<i32>} : memref<1x16x32xbf16, #tpu.memory_space<vmem>>, vector<1x16x8xbf16>,
      %c0_125 = arith.constant 0 : index
      %c8_126 = arith.constant 8 : index
      %179 = vector.load %arg11[%c0_125, %c8_126] : memref<16x32xf32, #tpu.memory_space<vmem>>, vector<16x8xf32>
      %c1_127 = arith.constant 1 : index
      %c0_128 = arith.constant 0 : index
      %c0_129 = arith.constant 0 : index
      %180 = vector.load %arg10[%c1_127, %c0_128, %c0_129] : memref<4x16x1xf32, #tpu.memory_space<vmem>>, vector<1x16x1xf32>
      %181 = vector.shape_cast %180 : vector<1x16x1xf32> to vector<16x1xf32>
      %182 = vector.broadcast %181 : vector<16x1xf32> to vector<16x8xf32>
      %183 = arith.divf %179, %182 : vector<16x8xf32>
      %184 = arith.truncf %183 : vector<16x8xf32> to vector<16x8xbf16>
      %c0_130 = arith.constant 0 : index
      %c0_131 = arith.constant 0 : index
      %c8_132 = arith.constant 8 : index
      %185 = vector.load %arg8[%c0_130, %c0_131, %c8_132] : memref<1x16x32xbf16, #tpu.memory_space<vmem>>, vector<1x16x8xbf16>
      %186 = vector.shape_cast %185 : vector<1x16x8xbf16> to vector<16x8xbf16>
      %187 = vector.shape_cast %184 : vector<16x8xbf16> to vector<1x16x8xbf16>
      tpu.vector_store %arg8[%c0_130, %c0_131, %c8_132], %187 {strides = array<i32>} : memref<1x16x32xbf16, #tpu.memory_space<vmem>>, vector<1x16x8xbf16>,
      %c0_133 = arith.constant 0 : index
      %c16_134 = arith.constant 16 : index
      %188 = vector.load %arg11[%c0_133, %c16_134] : memref<16x32xf32, #tpu.memory_space<vmem>>, vector<16x8xf32>
      %c2_135 = arith.constant 2 : index
      %c0_136 = arith.constant 0 : index
      %c0_137 = arith.constant 0 : index
      %189 = vector.load %arg10[%c2_135, %c0_136, %c0_137] : memref<4x16x1xf32, #tpu.memory_space<vmem>>, vector<1x16x1xf32>
      %190 = vector.shape_cast %189 : vector<1x16x1xf32> to vector<16x1xf32>
      %191 = vector.broadcast %190 : vector<16x1xf32> to vector<16x8xf32>
      %192 = arith.divf %188, %191 : vector<16x8xf32>
      %193 = arith.truncf %192 : vector<16x8xf32> to vector<16x8xbf16>
      %c0_138 = arith.constant 0 : index
      %c0_139 = arith.constant 0 : index
      %c16_140 = arith.constant 16 : index
      %194 = vector.load %arg8[%c0_138, %c0_139, %c16_140] : memref<1x16x32xbf16, #tpu.memory_space<vmem>>, vector<1x16x8xbf16>
      %195 = vector.shape_cast %194 : vector<1x16x8xbf16> to vector<16x8xbf16>
      %196 = vector.shape_cast %193 : vector<16x8xbf16> to vector<1x16x8xbf16>
      tpu.vector_store %arg8[%c0_138, %c0_139, %c16_140], %196 {strides = array<i32>} : memref<1x16x32xbf16, #tpu.memory_space<vmem>>, vector<1x16x8xbf16>,
      %c0_141 = arith.constant 0 : index
      %c24_142 = arith.constant 24 : index
      %197 = vector.load %arg11[%c0_141, %c24_142] : memref<16x32xf32, #tpu.memory_space<vmem>>, vector<16x8xf32>
      %c3_143 = arith.constant 3 : index
      %c0_144 = arith.constant 0 : index
      %c0_145 = arith.constant 0 : index
      %198 = vector.load %arg10[%c3_143, %c0_144, %c0_145] : memref<4x16x1xf32, #tpu.memory_space<vmem>>, vector<1x16x1xf32>
      %199 = vector.shape_cast %198 : vector<1x16x1xf32> to vector<16x1xf32>
      %200 = vector.broadcast %199 : vector<16x1xf32> to vector<16x8xf32>
      %201 = arith.divf %197, %200 : vector<16x8xf32>
      %202 = arith.truncf %201 : vector<16x8xf32> to vector<16x8xbf16>
      %c0_146 = arith.constant 0 : index
      %c0_147 = arith.constant 0 : index
      %c24_148 = arith.constant 24 : index
      %203 = vector.load %arg8[%c0_146, %c0_147, %c24_148] : memref<1x16x32xbf16, #tpu.memory_space<vmem>>, vector<1x16x8xbf16>
      %204 = vector.shape_cast %203 : vector<1x16x8xbf16> to vector<16x8xbf16>
      %205 = vector.shape_cast %202 : vector<16x8xbf16> to vector<1x16x8xbf16>
      tpu.vector_store %arg8[%c0_146, %c0_147, %c24_148], %205 {strides = array<i32>} : memref<1x16x32xbf16, #tpu.memory_space<vmem>>, vector<1x16x8xbf16>,
    } else {
    }
    return
  }
  func.func @transform_0(%arg0: i32, %arg1: i32, %arg2: i32, %arg3: i32) -> (i32, i32, i32) {
    %c0_i32 = arith.constant 0 : i32
    return %arg0, %arg2, %arg1 : i32, i32, i32
  }
  func.func @transform_1(%arg0: i32, %arg1: i32, %arg2: i32, %arg3: i32) -> (i32, i32, i32) {
    %c0_i32 = arith.constant 0 : i32
    return %arg0, %arg3, %arg1 : i32, i32, i32
  }
  func.func @transform_2(%arg0: i32, %arg1: i32, %arg2: i32, %arg3: i32) -> (i32, i32, i32) {
    %c0_i32 = arith.constant 0 : i32
    return %arg0, %arg3, %arg1 : i32, i32, i32
  }
  func.func @transform_3(%arg0: i32, %arg1: i32, %arg2: i32, %arg3: i32) -> (i32, i32, i32) {
    %c0_i32 = arith.constant 0 : i32
    %c0_i32_0 = arith.constant 0 : i32
    return %arg0, %c0_i32, %arg3 : i32, i32, i32
  }
  func.func @transform_4(%arg0: i32, %arg1: i32, %arg2: i32, %arg3: i32) -> (i32, i32, i32) {
    %c0_i32 = arith.constant 0 : i32
    return %arg0, %arg2, %arg1 : i32, i32, i32
  }
}

module attributes {stable_mosaic.version = 11 : i64} {
  func.func @_flash_attn_kernel(%arg0: i32, %arg1: i32, %arg2: i32, %arg3: i32, %arg4: memref<1x16x32xbf16, #tpu.memory_space<vmem>>, %arg5: memref<1x16x32xbf16, #tpu.memory_space<vmem>>, %arg6: memref<1x16x32xbf16, #tpu.memory_space<vmem>>, %arg7: memref<1x1x16xf32, #tpu.memory_space<vmem>>, %arg8: memref<1x16x32xbf16, #tpu.memory_space<vmem>>, %arg9: memref<4x16x1xf32, #tpu.memory_space<vmem>>, %arg10: memref<4x16x1xf32, #tpu.memory_space<vmem>>, %arg11: memref<16x32xf32, #tpu.memory_space<vmem>>) attributes {dimension_semantics = [#tpu.dimension_semantics<parallel>, #tpu.dimension_semantics<parallel>, #tpu.dimension_semantics<parallel>, #tpu.dimension_semantics<arbitrary>], iteration_bounds = array<i64: 2, 1, 1, 1>, scalar_prefetch = 0 : i64, scratch_operands = 3 : i64, tpu.core_type = #tpu.core_type<tc>, window_params = [{transform_indices = @transform_0, window_bounds = array<i64: 1, 16, 32>}, {transform_indices = @transform_1, window_bounds = array<i64: 1, 16, 32>}, {transform_indices = @transform_2, window_bounds = array<i64: 1, 16, 32>}, {transform_indices = @transform_3, window_bounds = array<i64: 1, 1, 16>}, {transform_indices = @transform_4, window_bounds = array<i64: 1, 16, 32>}]} {
    %c0_i32 = arith.constant 0 : i32
    %0 = arith.cmpi eq, %arg3, %c0_i32 : i32
    %1 = arith.extui %0 : i1 to i32
    %c0_i32_0 = arith.constant 0 : i32
    %2 = arith.cmpi ne, %1, %c0_i32_0 : i32
    scf.if %2 {
      %cst_114 = arith.constant 0xFF800000 : f32
      %160 = vector.broadcast %cst_114 : f32 to vector<4x16x1xf32>
      %c0_115 = arith.constant 0 : index
      %c0_116 = arith.constant 0 : index
      %c0_117 = arith.constant 0 : index
      %161 = vector.load %arg9[%c0_115, %c0_116, %c0_117] : memref<4x16x1xf32, #tpu.memory_space<vmem>>, vector<4x16x1xf32>
      tpu.vector_store %arg9[%c0_115, %c0_116, %c0_117], %160 {strides = array<i32>} : memref<4x16x1xf32, #tpu.memory_space<vmem>>, vector<4x16x1xf32>,
      %cst_118 = arith.constant 0.000000e+00 : f32
      %162 = vector.broadcast %cst_118 : f32 to vector<4x16x1xf32>
      %c0_119 = arith.constant 0 : index
      %c0_120 = arith.constant 0 : index
      %c0_121 = arith.constant 0 : index
      %163 = vector.load %arg10[%c0_119, %c0_120, %c0_121] : memref<4x16x1xf32, #tpu.memory_space<vmem>>, vector<4x16x1xf32>
      tpu.vector_store %arg10[%c0_119, %c0_120, %c0_121], %162 {strides = array<i32>} : memref<4x16x1xf32, #tpu.memory_space<vmem>>, vector<4x16x1xf32>,
      %cst_122 = arith.constant 0.000000e+00 : f32
      %164 = vector.broadcast %cst_122 : f32 to vector<16x32xf32>
      %c0_123 = arith.constant 0 : index
      %c0_124 = arith.constant 0 : index
      %165 = vector.load %arg11[%c0_123, %c0_124] : memref<16x32xf32, #tpu.memory_space<vmem>>, vector<16x32xf32>
      tpu.vector_store %arg11[%c0_123, %c0_124], %164 {strides = array<i32>} : memref<16x32xf32, #tpu.memory_space<vmem>>, vector<16x32xf32>,
    } else {
    }
    %c0 = arith.constant 0 : index
    %c0_1 = arith.constant 0 : index
    %c0_2 = arith.constant 0 : index
    %3 = vector.load %arg7[%c0, %c0_1, %c0_2] : memref<1x1x16xf32, #tpu.memory_space<vmem>>, vector<1x1x16xf32>
    %4 = vector.shape_cast %3 : vector<1x1x16xf32> to vector<1x16xf32>
    %c0_3 = arith.constant 0 : index
    %c0_4 = arith.constant 0 : index
    %c0_5 = arith.constant 0 : index
    %5 = vector.load %arg4[%c0_3, %c0_4, %c0_5] : memref<1x16x32xbf16, #tpu.memory_space<vmem>>, vector<1x16x8xbf16>
    %6 = vector.shape_cast %5 : vector<1x16x8xbf16> to vector<16x8xbf16>
    %c0_6 = arith.constant 0 : index
    %c0_7 = arith.constant 0 : index
    %c0_8 = arith.constant 0 : index
    %7 = vector.load %arg5[%c0_6, %c0_7, %c0_8] : memref<1x16x32xbf16, #tpu.memory_space<vmem>>, vector<1x16x8xbf16>
    %8 = vector.shape_cast %7 : vector<1x16x8xbf16> to vector<16x8xbf16>
    %c0_9 = arith.constant 0 : index
    %c0_10 = arith.constant 0 : index
    %c0_11 = arith.constant 0 : index
    %9 = vector.load %arg6[%c0_9, %c0_10, %c0_11] : memref<1x16x32xbf16, #tpu.memory_space<vmem>>, vector<1x16x8xbf16>
    %10 = vector.shape_cast %9 : vector<1x16x8xbf16> to vector<16x8xbf16>
    %cst = arith.constant dense<0.000000e+00> : vector<16x16xf32>
    %11 = tpu.matmul %6, %8, %cst {dimension_numbers = #tpu.dot_dimension_numbers<[1], [1], [0], [0], [0, 0, 1, 0], [], []>} : vector<16x8xbf16>, vector<16x8xbf16>, vector<16x16xf32> -> vector<16x16xf32>
    %12 = vector.broadcast %4 : vector<1x16xf32> to vector<16x16xf32>
    %13 = arith.addf %11, %12 : vector<16x16xf32>
    %c0_12 = arith.constant 0 : index
    %c0_13 = arith.constant 0 : index
    %c0_14 = arith.constant 0 : index
    %14 = vector.load %arg9[%c0_12, %c0_13, %c0_14] : memref<4x16x1xf32, #tpu.memory_space<vmem>>, vector<1x16x1xf32>
    %15 = vector.shape_cast %14 : vector<1x16x1xf32> to vector<16x1xf32>
    %cst_15 = arith.constant dense<0xFF800000> : vector<16xf32>
    %16 = vector.multi_reduction <maximumf>, %13, %cst_15 [1] : vector<16x16xf32> to vector<16xf32>
    %17 = vector.shape_cast %16 : vector<16xf32> to vector<16x1xf32>
    %18 = arith.maximumf %15, %17 : vector<16x1xf32>
    %19 = arith.subf %15, %18 : vector<16x1xf32>
    %20 = math.exp %19 : vector<16x1xf32>
    %21 = vector.broadcast %18 : vector<16x1xf32> to vector<16x16xf32>
    %22 = arith.subf %13, %21 : vector<16x16xf32>
    %23 = math.exp %22 : vector<16x16xf32>
    %c0_16 = arith.constant 0 : index
    %c0_17 = arith.constant 0 : index
    %c0_18 = arith.constant 0 : index
    %24 = vector.load %arg10[%c0_16, %c0_17, %c0_18] : memref<4x16x1xf32, #tpu.memory_space<vmem>>, vector<1x16x1xf32>
    %25 = vector.shape_cast %24 : vector<1x16x1xf32> to vector<16x1xf32>
    %26 = arith.mulf %20, %25 : vector<16x1xf32>
    %cst_19 = arith.constant dense<0.000000e+00> : vector<16xf32>
    %27 = vector.multi_reduction <add>, %23, %cst_19 [1] : vector<16x16xf32> to vector<16xf32>
    %28 = vector.shape_cast %27 : vector<16xf32> to vector<16x1xf32>
    %29 = arith.addf %26, %28 : vector<16x1xf32>
    %c0_20 = arith.constant 0 : index
    %c0_21 = arith.constant 0 : index
    %c0_22 = arith.constant 0 : index
    %30 = vector.load %arg10[%c0_20, %c0_21, %c0_22] : memref<4x16x1xf32, #tpu.memory_space<vmem>>, vector<1x16x1xf32>
    %31 = vector.shape_cast %30 : vector<1x16x1xf32> to vector<16x1xf32>
    %32 = vector.shape_cast %29 : vector<16x1xf32> to vector<1x16x1xf32>
    tpu.vector_store %arg10[%c0_20, %c0_21, %c0_22], %32 {strides = array<i32>} : memref<4x16x1xf32, #tpu.memory_space<vmem>>, vector<1x16x1xf32>,
    %c0_23 = arith.constant 0 : index
    %c0_24 = arith.constant 0 : index
    %33 = vector.load %arg11[%c0_23, %c0_24] : memref<16x32xf32, #tpu.memory_space<vmem>>, vector<16x8xf32>
    %34 = vector.broadcast %20 : vector<16x1xf32> to vector<16x8xf32>
    %35 = arith.mulf %34, %33 : vector<16x8xf32>
    %36 = arith.truncf %23 : vector<16x16xf32> to vector<16x16xbf16>
    %cst_25 = arith.constant dense<0.000000e+00> : vector<16x8xf32>
    %37 = tpu.matmul %36, %10, %cst_25 {dimension_numbers = #tpu.dot_dimension_numbers<[1], [0], [0], [1], [0, 0, 1, 1], [], []>} : vector<16x16xbf16>, vector<16x8xbf16>, vector<16x8xf32> -> vector<16x8xf32>
    %38 = arith.addf %35, %37 : vector<16x8xf32>
    %c0_26 = arith.constant 0 : index
    %c0_27 = arith.constant 0 : index
    %39 = vector.load %arg11[%c0_26, %c0_27] : memref<16x32xf32, #tpu.memory_space<vmem>>, vector<16x8xf32>
    tpu.vector_store %arg11[%c0_26, %c0_27], %38 {strides = array<i32>} : memref<16x32xf32, #tpu.memory_space<vmem>>, vector<16x8xf32>,
    %c0_28 = arith.constant 0 : index
    %c0_29 = arith.constant 0 : index
    %c0_30 = arith.constant 0 : index
    %40 = vector.load %arg9[%c0_28, %c0_29, %c0_30] : memref<4x16x1xf32, #tpu.memory_space<vmem>>, vector<1x16x1xf32>
    %41 = vector.shape_cast %40 : vector<1x16x1xf32> to vector<16x1xf32>
    %42 = vector.shape_cast %18 : vector<16x1xf32> to vector<1x16x1xf32>
    tpu.vector_store %arg9[%c0_28, %c0_29, %c0_30], %42 {strides = array<i32>} : memref<4x16x1xf32, #tpu.memory_space<vmem>>, vector<1x16x1xf32>,
    %c0_31 = arith.constant 0 : index
    %c0_32 = arith.constant 0 : index
    %c8 = arith.constant 8 : index
    %43 = vector.load %arg4[%c0_31, %c0_32, %c8] : memref<1x16x32xbf16, #tpu.memory_space<vmem>>, vector<1x16x8xbf16>
    %44 = vector.shape_cast %43 : vector<1x16x8xbf16> to vector<16x8xbf16>
    %c0_33 = arith.constant 0 : index
    %c0_34 = arith.constant 0 : index
    %c8_35 = arith.constant 8 : index
    %45 = vector.load %arg5[%c0_33, %c0_34, %c8_35] : memref<1x16x32xbf16, #tpu.memory_space<vmem>>, vector<1x16x8xbf16>
    %46 = vector.shape_cast %45 : vector<1x16x8xbf16> to vector<16x8xbf16>
    %c0_36 = arith.constant 0 : index
    %c0_37 = arith.constant 0 : index
    %c8_38 = arith.constant 8 : index
    %47 = vector.load %arg6[%c0_36, %c0_37, %c8_38] : memref<1x16x32xbf16, #tpu.memory_space<vmem>>, vector<1x16x8xbf16>
    %48 = vector.shape_cast %47 : vector<1x16x8xbf16> to vector<16x8xbf16>
    %cst_39 = arith.constant dense<0.000000e+00> : vector<16x16xf32>
    %49 = tpu.matmul %44, %46, %cst_39 {dimension_numbers = #tpu.dot_dimension_numbers<[1], [1], [0], [0], [0, 0, 1, 0], [], []>} : vector<16x8xbf16>, vector<16x8xbf16>, vector<16x16xf32> -> vector<16x16xf32>
    %50 = vector.broadcast %4 : vector<1x16xf32> to vector<16x16xf32>
    %51 = arith.addf %49, %50 : vector<16x16xf32>
    %c1 = arith.constant 1 : index
    %c0_40 = arith.constant 0 : index
    %c0_41 = arith.constant 0 : index
    %52 = vector.load %arg9[%c1, %c0_40, %c0_41] : memref<4x16x1xf32, #tpu.memory_space<vmem>>, vector<1x16x1xf32>
    %53 = vector.shape_cast %52 : vector<1x16x1xf32> to vector<16x1xf32>
    %cst_42 = arith.constant dense<0xFF800000> : vector<16xf32>
    %54 = vector.multi_reduction <maximumf>, %51, %cst_42 [1] : vector<16x16xf32> to vector<16xf32>
    %55 = vector.shape_cast %54 : vector<16xf32> to vector<16x1xf32>
    %56 = arith.maximumf %53, %55 : vector<16x1xf32>
    %57 = arith.subf %53, %56 : vector<16x1xf32>
    %58 = math.exp %57 : vector<16x1xf32>
    %59 = vector.broadcast %56 : vector<16x1xf32> to vector<16x16xf32>
    %60 = arith.subf %51, %59 : vector<16x16xf32>
    %61 = math.exp %60 : vector<16x16xf32>
    %c1_43 = arith.constant 1 : index
    %c0_44 = arith.constant 0 : index
    %c0_45 = arith.constant 0 : index
    %62 = vector.load %arg10[%c1_43, %c0_44, %c0_45] : memref<4x16x1xf32, #tpu.memory_space<vmem>>, vector<1x16x1xf32>
    %63 = vector.shape_cast %62 : vector<1x16x1xf32> to vector<16x1xf32>
    %64 = arith.mulf %58, %63 : vector<16x1xf32>
    %cst_46 = arith.constant dense<0.000000e+00> : vector<16xf32>
    %65 = vector.multi_reduction <add>, %61, %cst_46 [1] : vector<16x16xf32> to vector<16xf32>
    %66 = vector.shape_cast %65 : vector<16xf32> to vector<16x1xf32>
    %67 = arith.addf %64, %66 : vector<16x1xf32>
    %c1_47 = arith.constant 1 : index
    %c0_48 = arith.constant 0 : index
    %c0_49 = arith.constant 0 : index
    %68 = vector.load %arg10[%c1_47, %c0_48, %c0_49] : memref<4x16x1xf32, #tpu.memory_space<vmem>>, vector<1x16x1xf32>
    %69 = vector.shape_cast %68 : vector<1x16x1xf32> to vector<16x1xf32>
    %70 = vector.shape_cast %67 : vector<16x1xf32> to vector<1x16x1xf32>
    tpu.vector_store %arg10[%c1_47, %c0_48, %c0_49], %70 {strides = array<i32>} : memref<4x16x1xf32, #tpu.memory_space<vmem>>, vector<1x16x1xf32>,
    %c0_50 = arith.constant 0 : index
    %c8_51 = arith.constant 8 : index
    %71 = vector.load %arg11[%c0_50, %c8_51] : memref<16x32xf32, #tpu.memory_space<vmem>>, vector<16x8xf32>
    %72 = vector.broadcast %58 : vector<16x1xf32> to vector<16x8xf32>
    %73 = arith.mulf %72, %71 : vector<16x8xf32>
    %74 = arith.truncf %61 : vector<16x16xf32> to vector<16x16xbf16>
    %cst_52 = arith.constant dense<0.000000e+00> : vector<16x8xf32>
    %75 = tpu.matmul %74, %48, %cst_52 {dimension_numbers = #tpu.dot_dimension_numbers<[1], [0], [0], [1], [0, 0, 1, 1], [], []>} : vector<16x16xbf16>, vector<16x8xbf16>, vector<16x8xf32> -> vector<16x8xf32>
    %76 = arith.addf %73, %75 : vector<16x8xf32>
    %c0_53 = arith.constant 0 : index
    %c8_54 = arith.constant 8 : index
    %77 = vector.load %arg11[%c0_53, %c8_54] : memref<16x32xf32, #tpu.memory_space<vmem>>, vector<16x8xf32>
    tpu.vector_store %arg11[%c0_53, %c8_54], %76 {strides = array<i32>} : memref<16x32xf32, #tpu.memory_space<vmem>>, vector<16x8xf32>,
    %c1_55 = arith.constant 1 : index
    %c0_56 = arith.constant 0 : index
    %c0_57 = arith.constant 0 : index
    %78 = vector.load %arg9[%c1_55, %c0_56, %c0_57] : memref<4x16x1xf32, #tpu.memory_space<vmem>>, vector<1x16x1xf32>
    %79 = vector.shape_cast %78 : vector<1x16x1xf32> to vector<16x1xf32>
    %80 = vector.shape_cast %56 : vector<16x1xf32> to vector<1x16x1xf32>
    tpu.vector_store %arg9[%c1_55, %c0_56, %c0_57], %80 {strides = array<i32>} : memref<4x16x1xf32, #tpu.memory_space<vmem>>, vector<1x16x1xf32>,
    %c0_58 = arith.constant 0 : index
    %c0_59 = arith.constant 0 : index
    %c16 = arith.constant 16 : index
    %81 = vector.load %arg4[%c0_58, %c0_59, %c16] : memref<1x16x32xbf16, #tpu.memory_space<vmem>>, vector<1x16x8xbf16>
    %82 = vector.shape_cast %81 : vector<1x16x8xbf16> to vector<16x8xbf16>
    %c0_60 = arith.constant 0 : index
    %c0_61 = arith.constant 0 : index
    %c16_62 = arith.constant 16 : index
    %83 = vector.load %arg5[%c0_60, %c0_61, %c16_62] : memref<1x16x32xbf16, #tpu.memory_space<vmem>>, vector<1x16x8xbf16>
    %84 = vector.shape_cast %83 : vector<1x16x8xbf16> to vector<16x8xbf16>
    %c0_63 = arith.constant 0 : index
    %c0_64 = arith.constant 0 : index
    %c16_65 = arith.constant 16 : index
    %85 = vector.load %arg6[%c0_63, %c0_64, %c16_65] : memref<1x16x32xbf16, #tpu.memory_space<vmem>>, vector<1x16x8xbf16>
    %86 = vector.shape_cast %85 : vector<1x16x8xbf16> to vector<16x8xbf16>
    %cst_66 = arith.constant dense<0.000000e+00> : vector<16x16xf32>
    %87 = tpu.matmul %82, %84, %cst_66 {dimension_numbers = #tpu.dot_dimension_numbers<[1], [1], [0], [0], [0, 0, 1, 0], [], []>} : vector<16x8xbf16>, vector<16x8xbf16>, vector<16x16xf32> -> vector<16x16xf32>
    %88 = vector.broadcast %4 : vector<1x16xf32> to vector<16x16xf32>
    %89 = arith.addf %87, %88 : vector<16x16xf32>
    %c2 = arith.constant 2 : index
    %c0_67 = arith.constant 0 : index
    %c0_68 = arith.constant 0 : index
    %90 = vector.load %arg9[%c2, %c0_67, %c0_68] : memref<4x16x1xf32, #tpu.memory_space<vmem>>, vector<1x16x1xf32>
    %91 = vector.shape_cast %90 : vector<1x16x1xf32> to vector<16x1xf32>
    %cst_69 = arith.constant dense<0xFF800000> : vector<16xf32>
    %92 = vector.multi_reduction <maximumf>, %89, %cst_69 [1] : vector<16x16xf32> to vector<16xf32>
    %93 = vector.shape_cast %92 : vector<16xf32> to vector<16x1xf32>
    %94 = arith.maximumf %91, %93 : vector<16x1xf32>
    %95 = arith.subf %91, %94 : vector<16x1xf32>
    %96 = math.exp %95 : vector<16x1xf32>
    %97 = vector.broadcast %94 : vector<16x1xf32> to vector<16x16xf32>
    %98 = arith.subf %89, %97 : vector<16x16xf32>
    %99 = math.exp %98 : vector<16x16xf32>
    %c2_70 = arith.constant 2 : index
    %c0_71 = arith.constant 0 : index
    %c0_72 = arith.constant 0 : index
    %100 = vector.load %arg10[%c2_70, %c0_71, %c0_72] : memref<4x16x1xf32, #tpu.memory_space<vmem>>, vector<1x16x1xf32>
    %101 = vector.shape_cast %100 : vector<1x16x1xf32> to vector<16x1xf32>
    %102 = arith.mulf %96, %101 : vector<16x1xf32>
    %cst_73 = arith.constant dense<0.000000e+00> : vector<16xf32>
    %103 = vector.multi_reduction <add>, %99, %cst_73 [1] : vector<16x16xf32> to vector<16xf32>
    %104 = vector.shape_cast %103 : vector<16xf32> to vector<16x1xf32>
    %105 = arith.addf %102, %104 : vector<16x1xf32>
    %c2_74 = arith.constant 2 : index
    %c0_75 = arith.constant 0 : index
    %c0_76 = arith.constant 0 : index
    %106 = vector.load %arg10[%c2_74, %c0_75, %c0_76] : memref<4x16x1xf32, #tpu.memory_space<vmem>>, vector<1x16x1xf32>
    %107 = vector.shape_cast %106 : vector<1x16x1xf32> to vector<16x1xf32>
    %108 = vector.shape_cast %105 : vector<16x1xf32> to vector<1x16x1xf32>
    tpu.vector_store %arg10[%c2_74, %c0_75, %c0_76], %108 {strides = array<i32>} : memref<4x16x1xf32, #tpu.memory_space<vmem>>, vector<1x16x1xf32>,
    %c0_77 = arith.constant 0 : index
    %c16_78 = arith.constant 16 : index
    %109 = vector.load %arg11[%c0_77, %c16_78] : memref<16x32xf32, #tpu.memory_space<vmem>>, vector<16x8xf32>
    %110 = vector.broadcast %96 : vector<16x1xf32> to vector<16x8xf32>
    %111 = arith.mulf %110, %109 : vector<16x8xf32>
    %112 = arith.truncf %99 : vector<16x16xf32> to vector<16x16xbf16>
    %cst_79 = arith.constant dense<0.000000e+00> : vector<16x8xf32>
    %113 = tpu.matmul %112, %86, %cst_79 {dimension_numbers = #tpu.dot_dimension_numbers<[1], [0], [0], [1], [0, 0, 1, 1], [], []>} : vector<16x16xbf16>, vector<16x8xbf16>, vector<16x8xf32> -> vector<16x8xf32>
    %114 = arith.addf %111, %113 : vector<16x8xf32>
    %c0_80 = arith.constant 0 : index
    %c16_81 = arith.constant 16 : index
    %115 = vector.load %arg11[%c0_80, %c16_81] : memref<16x32xf32, #tpu.memory_space<vmem>>, vector<16x8xf32>
    tpu.vector_store %arg11[%c0_80, %c16_81], %114 {strides = array<i32>} : memref<16x32xf32, #tpu.memory_space<vmem>>, vector<16x8xf32>,
    %c2_82 = arith.constant 2 : index
    %c0_83 = arith.constant 0 : index
    %c0_84 = arith.constant 0 : index
    %116 = vector.load %arg9[%c2_82, %c0_83, %c0_84] : memref<4x16x1xf32, #tpu.memory_space<vmem>>, vector<1x16x1xf32>
    %117 = vector.shape_cast %116 : vector<1x16x1xf32> to vector<16x1xf32>
    %118 = vector.shape_cast %94 : vector<16x1xf32> to vector<1x16x1xf32>
    tpu.vector_store %arg9[%c2_82, %c0_83, %c0_84], %118 {strides = array<i32>} : memref<4x16x1xf32, #tpu.memory_space<vmem>>, vector<1x16x1xf32>,
    %c0_85 = arith.constant 0 : index
    %c0_86 = arith.constant 0 : index
    %c24 = arith.constant 24 : index
    %119 = vector.load %arg4[%c0_85, %c0_86, %c24] : memref<1x16x32xbf16, #tpu.memory_space<vmem>>, vector<1x16x8xbf16>
    %120 = vector.shape_cast %119 : vector<1x16x8xbf16> to vector<16x8xbf16>
    %c0_87 = arith.constant 0 : index
    %c0_88 = arith.constant 0 : index
    %c24_89 = arith.constant 24 : index
    %121 = vector.load %arg5[%c0_87, %c0_88, %c24_89] : memref<1x16x32xbf16, #tpu.memory_space<vmem>>, vector<1x16x8xbf16>
    %122 = vector.shape_cast %121 : vector<1x16x8xbf16> to vector<16x8xbf16>
    %c0_90 = arith.constant 0 : index
    %c0_91 = arith.constant 0 : index
    %c24_92 = arith.constant 24 : index
    %123 = vector.load %arg6[%c0_90, %c0_91, %c24_92] : memref<1x16x32xbf16, #tpu.memory_space<vmem>>, vector<1x16x8xbf16>
    %124 = vector.shape_cast %123 : vector<1x16x8xbf16> to vector<16x8xbf16>
    %cst_93 = arith.constant dense<0.000000e+00> : vector<16x16xf32>
    %125 = tpu.matmul %120, %122, %cst_93 {dimension_numbers = #tpu.dot_dimension_numbers<[1], [1], [0], [0], [0, 0, 1, 0], [], []>} : vector<16x8xbf16>, vector<16x8xbf16>, vector<16x16xf32> -> vector<16x16xf32>
    %126 = vector.broadcast %4 : vector<1x16xf32> to vector<16x16xf32>
    %127 = arith.addf %125, %126 : vector<16x16xf32>
    %c3 = arith.constant 3 : index
    %c0_94 = arith.constant 0 : index
    %c0_95 = arith.constant 0 : index
    %128 = vector.load %arg9[%c3, %c0_94, %c0_95] : memref<4x16x1xf32, #tpu.memory_space<vmem>>, vector<1x16x1xf32>
    %129 = vector.shape_cast %128 : vector<1x16x1xf32> to vector<16x1xf32>
    %cst_96 = arith.constant dense<0xFF800000> : vector<16xf32>
    %130 = vector.multi_reduction <maximumf>, %127, %cst_96 [1] : vector<16x16xf32> to vector<16xf32>
    %131 = vector.shape_cast %130 : vector<16xf32> to vector<16x1xf32>
    %132 = arith.maximumf %129, %131 : vector<16x1xf32>
    %133 = arith.subf %129, %132 : vector<16x1xf32>
    %134 = math.exp %133 : vector<16x1xf32>
    %135 = vector.broadcast %132 : vector<16x1xf32> to vector<16x16xf32>
    %136 = arith.subf %127, %135 : vector<16x16xf32>
    %137 = math.exp %136 : vector<16x16xf32>
    %c3_97 = arith.constant 3 : index
    %c0_98 = arith.constant 0 : index
    %c0_99 = arith.constant 0 : index
    %138 = vector.load %arg10[%c3_97, %c0_98, %c0_99] : memref<4x16x1xf32, #tpu.memory_space<vmem>>, vector<1x16x1xf32>
    %139 = vector.shape_cast %138 : vector<1x16x1xf32> to vector<16x1xf32>
    %140 = arith.mulf %134, %139 : vector<16x1xf32>
    %cst_100 = arith.constant dense<0.000000e+00> : vector<16xf32>
    %141 = vector.multi_reduction <add>, %137, %cst_100 [1] : vector<16x16xf32> to vector<16xf32>
    %142 = vector.shape_cast %141 : vector<16xf32> to vector<16x1xf32>
    %143 = arith.addf %140, %142 : vector<16x1xf32>
    %c3_101 = arith.constant 3 : index
    %c0_102 = arith.constant 0 : index
    %c0_103 = arith.constant 0 : index
    %144 = vector.load %arg10[%c3_101, %c0_102, %c0_103] : memref<4x16x1xf32, #tpu.memory_space<vmem>>, vector<1x16x1xf32>
    %145 = vector.shape_cast %144 : vector<1x16x1xf32> to vector<16x1xf32>
    %146 = vector.shape_cast %143 : vector<16x1xf32> to vector<1x16x1xf32>
    tpu.vector_store %arg10[%c3_101, %c0_102, %c0_103], %146 {strides = array<i32>} : memref<4x16x1xf32, #tpu.memory_space<vmem>>, vector<1x16x1xf32>,
    %c0_104 = arith.constant 0 : index
    %c24_105 = arith.constant 24 : index
    %147 = vector.load %arg11[%c0_104, %c24_105] : memref<16x32xf32, #tpu.memory_space<vmem>>, vector<16x8xf32>
    %148 = vector.broadcast %134 : vector<16x1xf32> to vector<16x8xf32>
    %149 = arith.mulf %148, %147 : vector<16x8xf32>
    %150 = arith.truncf %137 : vector<16x16xf32> to vector<16x16xbf16>
    %cst_106 = arith.constant dense<0.000000e+00> : vector<16x8xf32>
    %151 = tpu.matmul %150, %124, %cst_106 {dimension_numbers = #tpu.dot_dimension_numbers<[1], [0], [0], [1], [0, 0, 1, 1], [], []>} : vector<16x16xbf16>, vector<16x8xbf16>, vector<16x8xf32> -> vector<16x8xf32>
    %152 = arith.addf %149, %151 : vector<16x8xf32>
    %c0_107 = arith.constant 0 : index
    %c24_108 = arith.constant 24 : index
    %153 = vector.load %arg11[%c0_107, %c24_108] : memref<16x32xf32, #tpu.memory_space<vmem>>, vector<16x8xf32>
    tpu.vector_store %arg11[%c0_107, %c24_108], %152 {strides = array<i32>} : memref<16x32xf32, #tpu.memory_space<vmem>>, vector<16x8xf32>,
    %c3_109 = arith.constant 3 : index
    %c0_110 = arith.constant 0 : index
    %c0_111 = arith.constant 0 : index
    %154 = vector.load %arg9[%c3_109, %c0_110, %c0_111] : memref<4x16x1xf32, #tpu.memory_space<vmem>>, vector<1x16x1xf32>
    %155 = vector.shape_cast %154 : vector<1x16x1xf32> to vector<16x1xf32>
    %156 = vector.shape_cast %132 : vector<16x1xf32> to vector<1x16x1xf32>
    tpu.vector_store %arg9[%c3_109, %c0_110, %c0_111], %156 {strides = array<i32>} : memref<4x16x1xf32, #tpu.memory_space<vmem>>, vector<1x16x1xf32>,
    %c0_i32_112 = arith.constant 0 : i32
    %157 = arith.cmpi eq, %arg3, %c0_i32_112 : i32
    %158 = arith.extui %157 : i1 to i32
    %c0_i32_113 = arith.constant 0 : i32
    %159 = arith.cmpi ne, %158, %c0_i32_113 : i32
    scf.if %159 {
      %c0_114 = arith.constant 0 : index
      %c0_115 = arith.constant 0 : index
      %160 = vector.load %arg11[%c0_114, %c0_115] : memref<16x32xf32, #tpu.memory_space<vmem>>, vector<16x8xf32>
      %c0_116 = arith.constant 0 : index
      %c0_117 = arith.constant 0 : index
      %c0_118 = arith.constant 0 : index
      %161 = vector.load %arg10[%c0_116, %c0_117, %c0_118] : memref<4x16x1xf32, #tpu.memory_space<vmem>>, vector<1x16x1xf32>
      %162 = vector.shape_cast %161 : vector<1x16x1xf32> to vector<16x1xf32>
      %163 = vector.broadcast %162 : vector<16x1xf32> to vector<16x8xf32>
      %164 = arith.divf %160, %163 : vector<16x8xf32>
      %165 = arith.truncf %164 : vector<16x8xf32> to vector<16x8xbf16>
      %c0_119 = arith.constant 0 : index
      %c0_120 = arith.constant 0 : index
      %c0_121 = arith.constant 0 : index
      %166 = vector.load %arg8[%c0_119, %c0_120, %c0_121] : memref<1x16x32xbf16, #tpu.memory_space<vmem>>, vector<1x16x8xbf16>
      %167 = vector.shape_cast %166 : vector<1x16x8xbf16> to vector<16x8xbf16>
      %168 = vector.shape_cast %165 : vector<16x8xbf16> to vector<1x16x8xbf16>
      tpu.vector_store %arg8[%c0_119, %c0_120, %c0_121], %168 {strides = array<i32>} : memref<1x16x32xbf16, #tpu.memory_space<vmem>>, vector<1x16x8xbf16>,
      %c0_122 = arith.constant 0 : index
      %c8_123 = arith.constant 8 : index
      %169 = vector.load %arg11[%c0_122, %c8_123] : memref<16x32xf32, #tpu.memory_space<vmem>>, vector<16x8xf32>
      %c1_124 = arith.constant 1 : index
      %c0_125 = arith.constant 0 : index
      %c0_126 = arith.constant 0 : index
      %170 = vector.load %arg10[%c1_124, %c0_125, %c0_126] : memref<4x16x1xf32, #tpu.memory_space<vmem>>, vector<1x16x1xf32>
      %171 = vector.shape_cast %170 : vector<1x16x1xf32> to vector<16x1xf32>
      %172 = vector.broadcast %171 : vector<16x1xf32> to vector<16x8xf32>
      %173 = arith.divf %169, %172 : vector<16x8xf32>
      %174 = arith.truncf %173 : vector<16x8xf32> to vector<16x8xbf16>
      %c0_127 = arith.constant 0 : index
      %c0_128 = arith.constant 0 : index
      %c8_129 = arith.constant 8 : index
      %175 = vector.load %arg8[%c0_127, %c0_128, %c8_129] : memref<1x16x32xbf16, #tpu.memory_space<vmem>>, vector<1x16x8xbf16>
      %176 = vector.shape_cast %175 : vector<1x16x8xbf16> to vector<16x8xbf16>
      %177 = vector.shape_cast %174 : vector<16x8xbf16> to vector<1x16x8xbf16>
      tpu.vector_store %arg8[%c0_127, %c0_128, %c8_129], %177 {strides = array<i32>} : memref<1x16x32xbf16, #tpu.memory_space<vmem>>, vector<1x16x8xbf16>,
      %c0_130 = arith.constant 0 : index
      %c16_131 = arith.constant 16 : index
      %178 = vector.load %arg11[%c0_130, %c16_131] : memref<16x32xf32, #tpu.memory_space<vmem>>, vector<16x8xf32>
      %c2_132 = arith.constant 2 : index
      %c0_133 = arith.constant 0 : index
      %c0_134 = arith.constant 0 : index
      %179 = vector.load %arg10[%c2_132, %c0_133, %c0_134] : memref<4x16x1xf32, #tpu.memory_space<vmem>>, vector<1x16x1xf32>
      %180 = vector.shape_cast %179 : vector<1x16x1xf32> to vector<16x1xf32>
      %181 = vector.broadcast %180 : vector<16x1xf32> to vector<16x8xf32>
      %182 = arith.divf %178, %181 : vector<16x8xf32>
      %183 = arith.truncf %182 : vector<16x8xf32> to vector<16x8xbf16>
      %c0_135 = arith.constant 0 : index
      %c0_136 = arith.constant 0 : index
      %c16_137 = arith.constant 16 : index
      %184 = vector.load %arg8[%c0_135, %c0_136, %c16_137] : memref<1x16x32xbf16, #tpu.memory_space<vmem>>, vector<1x16x8xbf16>
      %185 = vector.shape_cast %184 : vector<1x16x8xbf16> to vector<16x8xbf16>
      %186 = vector.shape_cast %183 : vector<16x8xbf16> to vector<1x16x8xbf16>
      tpu.vector_store %arg8[%c0_135, %c0_136, %c16_137], %186 {strides = array<i32>} : memref<1x16x32xbf16, #tpu.memory_space<vmem>>, vector<1x16x8xbf16>,
      %c0_138 = arith.constant 0 : index
      %c24_139 = arith.constant 24 : index
      %187 = vector.load %arg11[%c0_138, %c24_139] : memref<16x32xf32, #tpu.memory_space<vmem>>, vector<16x8xf32>
      %c3_140 = arith.constant 3 : index
      %c0_141 = arith.constant 0 : index
      %c0_142 = arith.constant 0 : index
      %188 = vector.load %arg10[%c3_140, %c0_141, %c0_142] : memref<4x16x1xf32, #tpu.memory_space<vmem>>, vector<1x16x1xf32>
      %189 = vector.shape_cast %188 : vector<1x16x1xf32> to vector<16x1xf32>
      %190 = vector.broadcast %189 : vector<16x1xf32> to vector<16x8xf32>
      %191 = arith.divf %187, %190 : vector<16x8xf32>
      %192 = arith.truncf %191 : vector<16x8xf32> to vector<16x8xbf16>
      %c0_143 = arith.constant 0 : index
      %c0_144 = arith.constant 0 : index
      %c24_145 = arith.constant 24 : index
      %193 = vector.load %arg8[%c0_143, %c0_144, %c24_145] : memref<1x16x32xbf16, #tpu.memory_space<vmem>>, vector<1x16x8xbf16>
      %194 = vector.shape_cast %193 : vector<1x16x8xbf16> to vector<16x8xbf16>
      %195 = vector.shape_cast %192 : vector<16x8xbf16> to vector<1x16x8xbf16>
      tpu.vector_store %arg8[%c0_143, %c0_144, %c24_145], %195 {strides = array<i32>} : memref<1x16x32xbf16, #tpu.memory_space<vmem>>, vector<1x16x8xbf16>,
    } else {
    }
    return
  }
  func.func @transform_0(%arg0: i32, %arg1: i32, %arg2: i32, %arg3: i32) -> (i32, i32, i32) {
    %c0_i32 = arith.constant 0 : i32
    return %arg0, %arg2, %arg1 : i32, i32, i32
  }
  func.func @transform_1(%arg0: i32, %arg1: i32, %arg2: i32, %arg3: i32) -> (i32, i32, i32) {
    %c0_i32 = arith.constant 0 : i32
    return %arg0, %arg3, %arg1 : i32, i32, i32
  }
  func.func @transform_2(%arg0: i32, %arg1: i32, %arg2: i32, %arg3: i32) -> (i32, i32, i32) {
    %c0_i32 = arith.constant 0 : i32
    return %arg0, %arg3, %arg1 : i32, i32, i32
  }
  func.func @transform_3(%arg0: i32, %arg1: i32, %arg2: i32, %arg3: i32) -> (i32, i32, i32) {
    %c0_i32 = arith.constant 0 : i32
    %c0_i32_0 = arith.constant 0 : i32
    return %arg0, %c0_i32, %arg3 : i32, i32, i32
  }
  func.func @transform_4(%arg0: i32, %arg1: i32, %arg2: i32, %arg3: i32) -> (i32, i32, i32) {
    %c0_i32 = arith.constant 0 : i32
    return %arg0, %arg2, %arg1 : i32, i32, i32
  }
}

module attributes {stable_mosaic.version = 11 : i64} {
  func.func @_ffn_ln_kernel(%arg0: i32, %arg1: i32, %arg2: memref<32x32xbf16, #tpu.memory_space<vmem>>, %arg3: memref<32x64xbf16, #tpu.memory_space<vmem>>, %arg4: memref<1x64xf32, #tpu.memory_space<vmem>>, %arg5: memref<64x32xbf16, #tpu.memory_space<vmem>>, %arg6: memref<1x32xf32, #tpu.memory_space<vmem>>, %arg7: memref<32x32xbf16, #tpu.memory_space<vmem>>, %arg8: memref<1x32xf32, #tpu.memory_space<vmem>>, %arg9: memref<1x32xf32, #tpu.memory_space<vmem>>, %arg10: memref<32x32xbf16, #tpu.memory_space<vmem>>, %arg11: memref<32x32xf32, #tpu.memory_space<vmem>>) attributes {dimension_semantics = [#tpu.dimension_semantics<parallel>, #tpu.dimension_semantics<arbitrary>], iteration_bounds = array<i64: 1, 1>, scalar_prefetch = 0 : i64, scratch_operands = 1 : i64, tpu.core_type = #tpu.core_type<tc>, window_params = [{transform_indices = @transform_0, window_bounds = array<i64: 32, 32>}, {transform_indices = @transform_1, window_bounds = array<i64: 32, 64>}, {transform_indices = @transform_2, window_bounds = array<i64: 1, 64>}, {transform_indices = @transform_3, window_bounds = array<i64: 64, 32>}, {pipeline_mode = #tpu.pipeline_mode<synchronous>, transform_indices = @transform_4, window_bounds = array<i64: 1, 32>}, {transform_indices = @transform_5, window_bounds = array<i64: 32, 32>}, {pipeline_mode = #tpu.pipeline_mode<synchronous>, transform_indices = @transform_6, window_bounds = array<i64: 1, 32>}, {pipeline_mode = #tpu.pipeline_mode<synchronous>, transform_indices = @transform_7, window_bounds = array<i64: 1, 32>}, {transform_indices = @transform_8, window_bounds = array<i64: 32, 32>}]} {
    %c0_i32 = arith.constant 0 : i32
    %0 = arith.cmpi eq, %arg1, %c0_i32 : i32
    %1 = arith.extui %0 : i1 to i32
    %c0_i32_0 = arith.constant 0 : i32
    %2 = arith.cmpi ne, %1, %c0_i32_0 : i32
    scf.if %2 {
      %cst_16 = arith.constant 0.000000e+00 : f32
      %20 = vector.broadcast %cst_16 : f32 to vector<32x32xf32>
      %c0_17 = arith.constant 0 : index
      %c0_18 = arith.constant 0 : index
      %21 = vector.load %arg11[%c0_17, %c0_18] : memref<32x32xf32, #tpu.memory_space<vmem>>, vector<32x32xf32>
      tpu.vector_store %arg11[%c0_17, %c0_18], %20 {strides = array<i32>} : memref<32x32xf32, #tpu.memory_space<vmem>>, vector<32x32xf32>,
    } else {
    }
    %c0 = arith.constant 0 : index
    %c0_1 = arith.constant 0 : index
    %3 = vector.load %arg2[%c0, %c0_1] : memref<32x32xbf16, #tpu.memory_space<vmem>>, vector<32x32xbf16>
    %c0_2 = arith.constant 0 : index
    %c0_3 = arith.constant 0 : index
    %4 = vector.load %arg3[%c0_2, %c0_3] : memref<32x64xbf16, #tpu.memory_space<vmem>>, vector<32x64xbf16>
    %cst = arith.constant dense<0.000000e+00> : vector<32x64xf32>
    %5 = tpu.matmul %3, %4, %cst {dimension_numbers = #tpu.dot_dimension_numbers<[1], [0], [0], [1], [0, 0, 1, 1], [], []>} : vector<32x32xbf16>, vector<32x64xbf16>, vector<32x64xf32> -> vector<32x64xf32>
    %c0_4 = arith.constant 0 : index
    %c0_5 = arith.constant 0 : index
    %6 = vector.load %arg4[%c0_4, %c0_5] : memref<1x64xf32, #tpu.memory_space<vmem>>, vector<1x64xf32>
    %7 = vector.broadcast %6 : vector<1x64xf32> to vector<32x64xf32>
    %8 = arith.addf %5, %7 : vector<32x64xf32>
    %cst_6 = arith.constant 0.000000e+00 : f32
    %9 = vector.broadcast %cst_6 : f32 to vector<32x64xf32>
    %10 = arith.maximumf %8, %9 : vector<32x64xf32>
    %c0_7 = arith.constant 0 : index
    %c0_8 = arith.constant 0 : index
    %11 = vector.load %arg11[%c0_7, %c0_8] : memref<32x32xf32, #tpu.memory_space<vmem>>, vector<32x32xf32>
    %12 = arith.truncf %10 : vector<32x64xf32> to vector<32x64xbf16>
    %c0_9 = arith.constant 0 : index
    %c0_10 = arith.constant 0 : index
    %13 = vector.load %arg5[%c0_9, %c0_10] : memref<64x32xbf16, #tpu.memory_space<vmem>>, vector<64x32xbf16>
    %cst_11 = arith.constant dense<0.000000e+00> : vector<32x32xf32>
    %14 = tpu.matmul %12, %13, %cst_11 {dimension_numbers = #tpu.dot_dimension_numbers<[1], [0], [0], [1], [0, 0, 1, 1], [], []>} : vector<32x64xbf16>, vector<64x32xbf16>, vector<32x32xf32> -> vector<32x32xf32>
    %15 = arith.addf %11, %14 : vector<32x32xf32>
    %c0_12 = arith.constant 0 : index
    %c0_13 = arith.constant 0 : index
    %16 = vector.load %arg11[%c0_12, %c0_13] : memref<32x32xf32, #tpu.memory_space<vmem>>, vector<32x32xf32>
    tpu.vector_store %arg11[%c0_12, %c0_13], %15 {strides = array<i32>} : memref<32x32xf32, #tpu.memory_space<vmem>>, vector<32x32xf32>,
    %c0_i32_14 = arith.constant 0 : i32
    %17 = arith.cmpi eq, %arg1, %c0_i32_14 : i32
    %18 = arith.extui %17 : i1 to i32
    %c0_i32_15 = arith.constant 0 : i32
    %19 = arith.cmpi ne, %18, %c0_i32_15 : i32
    scf.if %19 {
      %c0_16 = arith.constant 0 : index
      %c0_17 = arith.constant 0 : index
      %20 = vector.load %arg11[%c0_16, %c0_17] : memref<32x32xf32, #tpu.memory_space<vmem>>, vector<32x32xf32>
      %c0_18 = arith.constant 0 : index
      %c0_19 = arith.constant 0 : index
      %21 = vector.load %arg6[%c0_18, %c0_19] : memref<1x32xf32, #tpu.memory_space<vmem>>, vector<1x32xf32>
      %22 = vector.broadcast %21 : vector<1x32xf32> to vector<32x32xf32>
      %23 = arith.addf %20, %22 : vector<32x32xf32>
      %c0_20 = arith.constant 0 : index
      %c0_21 = arith.constant 0 : index
      %24 = vector.load %arg7[%c0_20, %c0_21] : memref<32x32xbf16, #tpu.memory_space<vmem>>, vector<32x32xbf16>
      %25 = arith.extf %24 : vector<32x32xbf16> to vector<32x32xf32>
      %26 = arith.addf %23, %25 : vector<32x32xf32>
      %cst_22 = arith.constant dense<0.000000e+00> : vector<32xf32>
      %27 = vector.multi_reduction <add>, %26, %cst_22 [1] : vector<32x32xf32> to vector<32xf32>
      %28 = vector.shape_cast %27 : vector<32xf32> to vector<32x1xf32>
      %cst_23 = arith.constant 3.200000e+01 : f32
      %29 = vector.broadcast %cst_23 : f32 to vector<32x1xf32>
      %30 = arith.divf %28, %29 : vector<32x1xf32>
      %31 = vector.broadcast %30 : vector<32x1xf32> to vector<32x32xf32>
      %32 = arith.subf %26, %31 : vector<32x32xf32>
      %33 = arith.mulf %32, %32 : vector<32x32xf32>
      %cst_24 = arith.constant dense<0.000000e+00> : vector<32xf32>
      %34 = vector.multi_reduction <add>, %33, %cst_24 [1] : vector<32x32xf32> to vector<32xf32>
      %35 = vector.shape_cast %34 : vector<32xf32> to vector<32x1xf32>
      %cst_25 = arith.constant 3.200000e+01 : f32
      %36 = vector.broadcast %cst_25 : f32 to vector<32x1xf32>
      %37 = arith.divf %35, %36 : vector<32x1xf32>
      %38 = vector.broadcast %30 : vector<32x1xf32> to vector<32x32xf32>
      %39 = arith.subf %26, %38 : vector<32x32xf32>
      %cst_26 = arith.constant 9.99999974E-6 : f32
      %40 = vector.broadcast %cst_26 : f32 to vector<32x1xf32>
      %41 = arith.addf %37, %40 : vector<32x1xf32>
      %42 = math.rsqrt %41 : vector<32x1xf32>
      %43 = vector.broadcast %42 : vector<32x1xf32> to vector<32x32xf32>
      %44 = arith.mulf %39, %43 : vector<32x32xf32>
      %c0_27 = arith.constant 0 : index
      %c0_28 = arith.constant 0 : index
      %45 = vector.load %arg8[%c0_27, %c0_28] : memref<1x32xf32, #tpu.memory_space<vmem>>, vector<1x32xf32>
      %46 = vector.broadcast %45 : vector<1x32xf32> to vector<32x32xf32>
      %47 = arith.mulf %44, %46 : vector<32x32xf32>
      %c0_29 = arith.constant 0 : index
      %c0_30 = arith.constant 0 : index
      %48 = vector.load %arg9[%c0_29, %c0_30] : memref<1x32xf32, #tpu.memory_space<vmem>>, vector<1x32xf32>
      %49 = vector.broadcast %48 : vector<1x32xf32> to vector<32x32xf32>
      %50 = arith.addf %47, %49 : vector<32x32xf32>
      %51 = arith.truncf %50 : vector<32x32xf32> to vector<32x32xbf16>
      %c0_31 = arith.constant 0 : index
      %c0_32 = arith.constant 0 : index
      %52 = vector.load %arg10[%c0_31, %c0_32] : memref<32x32xbf16, #tpu.memory_space<vmem>>, vector<32x32xbf16>
      tpu.vector_store %arg10[%c0_31, %c0_32], %51 {strides = array<i32>} : memref<32x32xbf16, #tpu.memory_space<vmem>>, vector<32x32xbf16>,
    } else {
    }
    return
  }
  func.func @transform_0(%arg0: i32, %arg1: i32) -> (i32, i32) {
    %c0_i32 = arith.constant 0 : i32
    %c0_i32_0 = arith.constant 0 : i32
    return %arg0, %c0_i32 : i32, i32
  }
  func.func @transform_1(%arg0: i32, %arg1: i32) -> (i32, i32) {
    %c0_i32 = arith.constant 0 : i32
    %c0_i32_0 = arith.constant 0 : i32
    return %c0_i32, %arg1 : i32, i32
  }
  func.func @transform_2(%arg0: i32, %arg1: i32) -> (i32, i32) {
    %c0_i32 = arith.constant 0 : i32
    %c0_i32_0 = arith.constant 0 : i32
    return %c0_i32, %arg1 : i32, i32
  }
  func.func @transform_3(%arg0: i32, %arg1: i32) -> (i32, i32) {
    %c0_i32 = arith.constant 0 : i32
    %c0_i32_0 = arith.constant 0 : i32
    return %arg1, %c0_i32 : i32, i32
  }
  func.func @transform_4(%arg0: i32, %arg1: i32) -> (i32, i32) {
    %c0_i32 = arith.constant 0 : i32
    %c0_i32_0 = arith.constant 0 : i32
    %c0_i32_1 = arith.constant 0 : i32
    return %c0_i32, %c0_i32_0 : i32, i32
  }
  func.func @transform_5(%arg0: i32, %arg1: i32) -> (i32, i32) {
    %c0_i32 = arith.constant 0 : i32
    %c0_i32_0 = arith.constant 0 : i32
    return %arg0, %c0_i32 : i32, i32
  }
  func.func @transform_6(%arg0: i32, %arg1: i32) -> (i32, i32) {
    %c0_i32 = arith.constant 0 : i32
    %c0_i32_0 = arith.constant 0 : i32
    %c0_i32_1 = arith.constant 0 : i32
    return %c0_i32, %c0_i32_0 : i32, i32
  }
  func.func @transform_7(%arg0: i32, %arg1: i32) -> (i32, i32) {
    %c0_i32 = arith.constant 0 : i32
    %c0_i32_0 = arith.constant 0 : i32
    %c0_i32_1 = arith.constant 0 : i32
    return %c0_i32, %c0_i32_0 : i32, i32
  }
  func.func @transform_8(%arg0: i32, %arg1: i32) -> (i32, i32) {
    %c0_i32 = arith.constant 0 : i32
    %c0_i32_0 = arith.constant 0 : i32
    return %arg0, %c0_i32 : i32, i32
  }
}

module attributes {stable_mosaic.version = 11 : i64} {
  func.func @_matmul_bias_kernel(%arg0: i32, %arg1: i32, %arg2: i32, %arg3: memref<32x32xbf16, #tpu.memory_space<vmem>>, %arg4: memref<32x128xbf16, #tpu.memory_space<vmem>>, %arg5: memref<1x128xf32, #tpu.memory_space<vmem>>, %arg6: memref<32x128xf32, #tpu.memory_space<vmem>>, %arg7: memref<32x128xf32, #tpu.memory_space<vmem>>) attributes {dimension_semantics = [#tpu.dimension_semantics<parallel>, #tpu.dimension_semantics<parallel>, #tpu.dimension_semantics<arbitrary>], iteration_bounds = array<i64: 1, 1, 1>, scalar_prefetch = 0 : i64, scratch_operands = 1 : i64, tpu.core_type = #tpu.core_type<tc>, window_params = [{transform_indices = @transform_0, window_bounds = array<i64: 32, 32>}, {transform_indices = @transform_1, window_bounds = array<i64: 32, 128>}, {transform_indices = @transform_2, window_bounds = array<i64: 1, 128>}, {transform_indices = @transform_3, window_bounds = array<i64: 32, 128>}]} {
    %c0_i32 = arith.constant 0 : i32
    %0 = arith.cmpi eq, %arg2, %c0_i32 : i32
    %1 = arith.extui %0 : i1 to i32
    %c0_i32_0 = arith.constant 0 : i32
    %2 = arith.cmpi ne, %1, %c0_i32_0 : i32
    scf.if %2 {
      %cst_10 = arith.constant 0.000000e+00 : f32
      %12 = vector.broadcast %cst_10 : f32 to vector<32x128xf32>
      %c0_11 = arith.constant 0 : index
      %c0_12 = arith.constant 0 : index
      %13 = vector.load %arg7[%c0_11, %c0_12] : memref<32x128xf32, #tpu.memory_space<vmem>>, vector<32x128xf32>
      tpu.vector_store %arg7[%c0_11, %c0_12], %12 {strides = array<i32>} : memref<32x128xf32, #tpu.memory_space<vmem>>, vector<32x128xf32>,
    } else {
    }
    %c0 = arith.constant 0 : index
    %c0_1 = arith.constant 0 : index
    %3 = vector.load %arg7[%c0, %c0_1] : memref<32x128xf32, #tpu.memory_space<vmem>>, vector<32x128xf32>
    %c0_2 = arith.constant 0 : index
    %c0_3 = arith.constant 0 : index
    %4 = vector.load %arg3[%c0_2, %c0_3] : memref<32x32xbf16, #tpu.memory_space<vmem>>, vector<32x32xbf16>
    %c0_4 = arith.constant 0 : index
    %c0_5 = arith.constant 0 : index
    %5 = vector.load %arg4[%c0_4, %c0_5] : memref<32x128xbf16, #tpu.memory_space<vmem>>, vector<32x128xbf16>
    %cst = arith.constant dense<0.000000e+00> : vector<32x128xf32>
    %6 = tpu.matmul %4, %5, %cst {dimension_numbers = #tpu.dot_dimension_numbers<[1], [0], [0], [1], [0, 0, 1, 1], [], []>} : vector<32x32xbf16>, vector<32x128xbf16>, vector<32x128xf32> -> vector<32x128xf32>
    %7 = arith.addf %3, %6 : vector<32x128xf32>
    %c0_6 = arith.constant 0 : index
    %c0_7 = arith.constant 0 : index
    %8 = vector.load %arg7[%c0_6, %c0_7] : memref<32x128xf32, #tpu.memory_space<vmem>>, vector<32x128xf32>
    tpu.vector_store %arg7[%c0_6, %c0_7], %7 {strides = array<i32>} : memref<32x128xf32, #tpu.memory_space<vmem>>, vector<32x128xf32>,
    %c0_i32_8 = arith.constant 0 : i32
    %9 = arith.cmpi eq, %arg2, %c0_i32_8 : i32
    %10 = arith.extui %9 : i1 to i32
    %c0_i32_9 = arith.constant 0 : i32
    %11 = arith.cmpi ne, %10, %c0_i32_9 : i32
    scf.if %11 {
      %c0_10 = arith.constant 0 : index
      %c0_11 = arith.constant 0 : index
      %12 = vector.load %arg7[%c0_10, %c0_11] : memref<32x128xf32, #tpu.memory_space<vmem>>, vector<32x128xf32>
      %c0_12 = arith.constant 0 : index
      %c0_13 = arith.constant 0 : index
      %13 = vector.load %arg5[%c0_12, %c0_13] : memref<1x128xf32, #tpu.memory_space<vmem>>, vector<1x128xf32>
      %14 = vector.broadcast %13 : vector<1x128xf32> to vector<32x128xf32>
      %15 = arith.addf %12, %14 : vector<32x128xf32>
      %c0_14 = arith.constant 0 : index
      %c0_15 = arith.constant 0 : index
      %16 = vector.load %arg6[%c0_14, %c0_15] : memref<32x128xf32, #tpu.memory_space<vmem>>, vector<32x128xf32>
      tpu.vector_store %arg6[%c0_14, %c0_15], %15 {strides = array<i32>} : memref<32x128xf32, #tpu.memory_space<vmem>>, vector<32x128xf32>,
    } else {
    }
    return
  }
  func.func @transform_0(%arg0: i32, %arg1: i32, %arg2: i32) -> (i32, i32) {
    %c0_i32 = arith.constant 0 : i32
    return %arg0, %arg2 : i32, i32
  }
  func.func @transform_1(%arg0: i32, %arg1: i32, %arg2: i32) -> (i32, i32) {
    %c0_i32 = arith.constant 0 : i32
    return %arg2, %arg1 : i32, i32
  }
  func.func @transform_2(%arg0: i32, %arg1: i32, %arg2: i32) -> (i32, i32) {
    %c0_i32 = arith.constant 0 : i32
    %c0_i32_0 = arith.constant 0 : i32
    return %c0_i32, %arg1 : i32, i32
  }
  func.func @transform_3(%arg0: i32, %arg1: i32, %arg2: i32) -> (i32, i32) {
    %c0_i32 = arith.constant 0 : i32
    return %arg0, %arg1 : i32, i32
  }
}

</mosaic_0001>

<llo_original>
// kernel: transformer_forward.51
$region0: #{transformer_forward.51}
  #allocation0 [shape = 'u32[]', space=smem, size = 0x4, offset = 0x4, fixed_abs, tag = 'smem constant byte address 0x4 - core index']
  #allocation1 [shape = 'u32[144,128]{1,0:T(1,128)}', space=vmem, size = 0x12000, scoped, tag = 'internal scratch']
  #allocation2 [shape = 'f32[32,32]{1,0:T(8,128)}', space=vmem, size = 0x4000, scoped, tag = 'scratch operand']
  %s0 = inlined_call_operand.vmem [shape: bf16[32,32], index: 0, kind: input, shape index: {}]
  %s1 = inlined_call_operand.vmem [shape: bf16[32,32], index: 1, kind: input, shape index: {}]
  %s2 = inlined_call_operand.vmem [shape: f32[1,32], index: 2, kind: input, shape index: {}]
  %s3 = inlined_call_operand.vmem [shape: bf16[32,32], index: 3, kind: input, shape index: {}]
  %s4 = inlined_call_operand.vmem [shape: f32[1,32], index: 4, kind: input, shape index: {}]
  %s5 = inlined_call_operand.vmem [shape: f32[1,32], index: 5, kind: input, shape index: {}]
  %s6 = inlined_call_operand.vmem [shape: bf16[32,32], index: 6, kind: output, shape index: {}]
  %s7 = sld [smem:[#allocation0]]
  $region42: #{transformer_forward.51} parent=0
    _
  %s9 = ssub.s32 1, %s7
  %s10 = scalar_select 0, %s9, %s7
  // Predicated region
  $region2: #{transformer_forward.51} parent=0 // pred_check
    _
  $region3: #{transformer_forward.51} parent=0 // pred_check_branch
    %12 = sbr.rel (0) target = $region5
  $region4: #{transformer_forward.51} parent=0 // pred_region
    _
  $region5: #{transformer_forward.51} parent=0 // pred_fallthru
    _
  // Predicated region
  $region6: #{transformer_forward.51} parent=0 // pred_check
    _
  $region7: #{transformer_forward.51} parent=0 // pred_check_branch
    %14 = sbr.rel (0) target = $region9
  $region8: #{transformer_forward.51} parent=0 // pred_region
    _
  $region9: #{transformer_forward.51} parent=0 // pred_fallthru
    _
  // Predicated region
  $region10: #{transformer_forward.51} parent=0 // pred_check
    _
  $region11: #{transformer_forward.51} parent=0 // pred_check_branch
    %16 = sbr.rel (0) target = $region13
  $region12: #{transformer_forward.51} parent=0 // pred_region
    _
  $region13: #{transformer_forward.51} parent=0 // pred_fallthru
    _
  // Predicated region
  $region14: #{transformer_forward.51} parent=0 // pred_check
    _
  $region15: #{transformer_forward.51} parent=0 // pred_check_branch
    %18 = sbr.rel (0) target = $region17
  $region16: #{transformer_forward.51} parent=0 // pred_region
    _
  $region17: #{transformer_forward.51} parent=0 // pred_fallthru
    _
  // Predicated region
  $region18: #{transformer_forward.51} parent=0 // pred_check
    _
  $region19: #{transformer_forward.51} parent=0 // pred_check_branch
    %20 = sbr.rel (0) target = $region21
  $region20: #{transformer_forward.51} parent=0 // pred_region
    _
  $region21: #{transformer_forward.51} parent=0 // pred_fallthru
    _
  // Predicated region
  $region22: #{transformer_forward.51} parent=0 // pred_check
    _
  $region23: #{transformer_forward.51} parent=0 // pred_check_branch
    %22 = sbr.rel (0) target = $region25
  $region24: #{transformer_forward.51} parent=0 // pred_region
    _
  $region25: #{transformer_forward.51} parent=0 // pred_fallthru
    _
  %p24 = scmp.eq.s32.totalorder 0, 0
  // Predicated region
  $region26: #{transformer_forward.51} parent=0 // pred_check
    %p25 = pneg %p24
  $region27: #{transformer_forward.51} parent=0 // pred_check_branch
    %27 = sbr.rel (%p25) target = $region29
  $region28: #{transformer_forward.51} parent=0 // pred_region
    %vm28 = vcmask 261120
    %29 = vst.msk [vmem:[#allocation2] sm:$0xff] %vm28, 0.0
    %30 = vst.msk [vmem:[#allocation2 + $0x8] sm:$0xff] %vm28, 0.0
    %31 = vst.msk [vmem:[#allocation2 + $0x10] sm:$0xff] %vm28, 0.0
    %32 = vst.msk [vmem:[#allocation2 + $0x18] sm:$0xff] %vm28, 0.0
  $region29: #{transformer_forward.51} parent=0 // pred_fallthru
    _
  %v33 = vld [vmem:[#allocation2] sm:$0xff]
  %v34 = vld [vmem:[#allocation2 + $0x8] sm:$0xff]
  %v35 = vld [vmem:[#allocation2 + $0x10] sm:$0xff]
  %v36 = vld [vmem:[#allocation2 + $0x18] sm:$0xff]
  %v37 = vld [vmem:[%s0] sm:$0xf]
  %v38 = vld [vmem:[%s0 + $0x4] sm:$0xf]
  %v39 = vld [vmem:[%s0 + $0x8] sm:$0xf]
  %v40 = vld [vmem:[%s0 + $0xc] sm:$0xf]
  %v41 = vld [vmem:[%s1] sm:$0xf]
  %v42 = vld [vmem:[%s1 + $0x4] sm:$0xf]
  %v43 = vld [vmem:[%s1 + $0x8] sm:$0xf]
  %v44 = vld [vmem:[%s1 + $0xc] sm:$0xf]
  %v49 = vunpack.c.l.b16 %v37
  %v50 = vunpack.c.l.b16 %v38
  %v51 = vunpack.c.l.b16 %v39
  %v52 = vunpack.c.l.b16 %v40
  %v53 = vpack.c.b16 %v50, %v49
  %v54 = vpack.c.b16 %v52, %v51
  %v59 = vunpack.c.l.b16 %v41
  %v60 = vunpack.c.l.b16 %v42
  %v61 = vunpack.c.l.b16 %v43
  %v62 = vunpack.c.l.b16 %v44
  %v63 = vpack.c.b16 %v60, %v59
  %v64 = vpack.c.b16 %v62, %v61
  %vm67 = vcmask 261120
  %v69 = vsel %vm67, %v53, 0
  %v72 = vsel %vm67, %v54, 0
  %74 = vmatprep.subr.bf16.mxu0 0
  %75 = vmatpush1.bf16.msra.mxu0 %v63
  %76 = vmatprep.subr.bf16.mxu0 0
  %77 = vmatpush1.bf16.msra.mxu0 %v64
  %78 = vmatprep.subr.bf16.mxu0 0
  %79 = vmatpush1.bf16.msra.mxu0 0
  %80 = vmatprep.subr.bf16.mxu0 0
  %81 = vmatpush1.bf16.msra.mxu0 0
  %82 = vmatprep.subr.bf16.mxu0 0
  %83 = vmatpush1.bf16.msra.mxu0 0
  %84 = vmatprep.subr.bf16.mxu0 0
  %85 = vmatpush1.bf16.msra.mxu0 0
  %86 = vmatprep.subr.bf16.mxu0 0
  %87 = vmatpush1.bf16.msra.mxu0 0
  %88 = vmatprep.subr.bf16.mxu0 0
  %89 = vmatpush1.bf16.msra.mxu0 0
  %90 = vmatprep.subr.bf16.mxu0 0
  %91 = vmatpush1.bf16.msra.mxu0 0
  %92 = vmatprep.subr.bf16.mxu0 0
  %93 = vmatpush1.bf16.msra.mxu0 0
  %94 = vmatprep.subr.bf16.mxu0 0
  %95 = vmatpush1.bf16.msra.mxu0 0
  %96 = vmatprep.subr.bf16.mxu0 0
  %97 = vmatpush1.bf16.msra.mxu0 0
  %98 = vmatprep.subr.bf16.mxu0 0
  %99 = vmatpush1.bf16.msra.mxu0 0
  %100 = vmatprep.subr.bf16.mxu0 0
  %101 = vmatpush1.bf16.msra.mxu0 0
  %102 = vmatprep.subr.bf16.mxu0 0
  %103 = vmatpush1.bf16.msra.mxu0 0
  %104 = vmatprep.subr.bf16.mxu0 0
  %105 = vmatpush1.bf16.msra.mxu0 0
  %106 = vmatprep.mubr.bf16.mxu0 0
  %107 = vmatmul.mubr.bf16.gmra.mrb[0].mxu0 %v69
  %v108 = vpop.f32.mrb[0].mxu0
  %v109 = vadd.f32 0.0, %v108
  %v110 = vpop.f32.mrb[0].mxu0
  %v111 = vpop.f32.mrb[0].mxu0
  %v112 = vadd.f32 0.0, %v111
  %v113 = vpop.f32.mrb[0].mxu0
  %114 = vmatprep.mubr.bf16.mxu0 0
  %115 = vmatmul.mubr.bf16.gmra.mrb[0].mxu0 %v72
  %v116 = vpop.f32.mrb[0].mxu0
  %v117 = vadd.f32 0.0, %v116
  %v118 = vpop.f32.mrb[0].mxu0
  %v119 = vpop.f32.mrb[0].mxu0
  %v120 = vadd.f32 0.0, %v119
  %v121 = vpop.f32.mrb[0].mxu0
  %122 = vdwg.mxu0
  %v123 = vadd.f32 %v33, %v109
  %v124 = vadd.f32 %v34, %v112
  %v125 = vadd.f32 %v35, %v117
  %v126 = vadd.f32 %v36, %v120
  %127 = vst.msk [vmem:[#allocation2] sm:$0xff] %vm67, %v123
  %128 = vst.msk [vmem:[#allocation2 + $0x8] sm:$0xff] %vm67, %v124
  %129 = vst.msk [vmem:[#allocation2 + $0x10] sm:$0xff] %vm67, %v125
  %130 = vst.msk [vmem:[#allocation2 + $0x18] sm:$0xff] %vm67, %v126
  // Predicated region
  $region30: #{transformer_forward.51} parent=0 // pred_check
    %p131 = pneg %p24
  $region31: #{transformer_forward.51} parent=0 // pred_check_branch
    %133 = sbr.rel (%p131) target = $region33
  $region32: #{transformer_forward.51} parent=0 // pred_region
    %v134 = vld [vmem:[#allocation2] sm:$0xff]
    %v135 = vld [vmem:[#allocation2 + $0x8] sm:$0xff]
    %v136 = vld [vmem:[#allocation2 + $0x10] sm:$0xff]
    %v137 = vld [vmem:[#allocation2 + $0x18] sm:$0xff]
    %v138 = vld [vmem:[%s2] sm:$0x1]
    %v140 = vlaneseq
    %v141 = vshrl.u32 %v140, 7
    %v142 = vsub.s32 0, %v141
    %v143 = vrot.slane %v138, %v142
    %v145 = vadd.f32 %v134, %v143
    %v146 = vadd.f32 %v135, %v143
    %v147 = vadd.f32 %v136, %v143
    %v148 = vadd.f32 %v137, %v143
    %v149 = vld [vmem:[%s3] sm:$0xf]
    %v150 = vld [vmem:[%s3 + $0x4] sm:$0xf]
    %v151 = vld [vmem:[%s3 + $0x8] sm:$0xf]
    %v152 = vld [vmem:[%s3 + $0xc] sm:$0xf]
    %v153 = vunpack.c.l.bf16 %v149
    %v154 = vunpack.c.l.bf16 %v150
    %v155 = vunpack.c.l.bf16 %v151
    %v156 = vunpack.c.l.bf16 %v152
    %v157 = vadd.f32 %v145, %v153
    %v158 = vadd.f32 %v146, %v154
    %v159 = vadd.f32 %v147, %v155
    %v160 = vadd.f32 %v148, %v156
    %v161 = vsel %vm67, %v157, 0.0
    %162 = vadd.xlane.f32.xlu0 %v161
    %v163 = vpop.xlane.xlu0 %162
    %v164 = vsel %vm67, %v158, 0.0
    %165 = vadd.xlane.f32.xlu0 %v164
    %v166 = vpop.xlane.xlu0 %165
    %v167 = vsel %vm67, %v159, 0.0
    %168 = vadd.xlane.f32.xlu0 %v167
    %v169 = vpop.xlane.xlu0 %168
    %v170 = vsel %vm67, %v160, 0.0
    %171 = vadd.xlane.f32.xlu0 %v170
    %v172 = vpop.xlane.xlu0 %171
    %v173 = vrcp.pop 32.0
    %v174 = vmul.f32 %v163, %v173
    %v175 = vmul.f32 %v166, %v173
    %v176 = vmul.f32 %v169, %v173
    %v177 = vmul.f32 %v172, %v173
    %v178 = vsub.f32 %v157, %v174
    %v179 = vsub.f32 %v158, %v175
    %v180 = vsub.f32 %v159, %v176
    %v181 = vsub.f32 %v160, %v177
    %v182 = vmul.f32 %v178, %v178
    %v183 = vmul.f32 %v179, %v179
    %v184 = vmul.f32 %v180, %v180
    %v185 = vmul.f32 %v181, %v181
    %v186 = vsel %vm67, %v182, 0.0
    %187 = vadd.xlane.f32.xlu0 %v186
    %v188 = vpop.xlane.xlu0 %187
    %v189 = vsel %vm67, %v183, 0.0
    %190 = vadd.xlane.f32.xlu0 %v189
    %v191 = vpop.xlane.xlu0 %190
    %v192 = vsel %vm67, %v184, 0.0
    %193 = vadd.xlane.f32.xlu0 %v192
    %v194 = vpop.xlane.xlu0 %193
    %v195 = vsel %vm67, %v185, 0.0
    %196 = vadd.xlane.f32.xlu0 %v195
    %v197 = vpop.xlane.xlu0 %196
    %v198 = vmul.f32 %v188, %v173
    %v199 = vmul.f32 %v191, %v173
    %v200 = vmul.f32 %v194, %v173
    %v201 = vmul.f32 %v197, %v173
    %v202 = vadd.f32 %v198, 1e-05
    %v203 = vadd.f32 %v199, 1e-05
    %v204 = vadd.f32 %v200, 1e-05
    %v205 = vadd.f32 %v201, 1e-05
    %v206 = vrsqrt.pop %v202
    %v207 = vrsqrt.pop %v203
    %v208 = vrsqrt.pop %v204
    %v209 = vrsqrt.pop %v205
    %v210 = vmul.f32 %v178, %v206
    %v211 = vmul.f32 %v179, %v207
    %v212 = vmul.f32 %v180, %v208
    %v213 = vmul.f32 %v181, %v209
    %v214 = vld [vmem:[%s4] sm:$0x1]
    %v216 = vlaneseq
    %v217 = vshrl.u32 %v216, 7
    %v218 = vsub.s32 0, %v217
    %v219 = vrot.slane %v214, %v218
    %v221 = vmul.f32 %v210, %v219
    %v222 = vmul.f32 %v211, %v219
    %v223 = vmul.f32 %v212, %v219
    %v224 = vmul.f32 %v213, %v219
    %v225 = vld [vmem:[%s5] sm:$0x1]
    %v227 = vlaneseq
    %v228 = vshrl.u32 %v227, 7
    %v229 = vsub.s32 0, %v228
    %v230 = vrot.slane %v225, %v229
    %v232 = vadd.f32 %v221, %v230
    %v233 = vadd.f32 %v222, %v230
    %v234 = vadd.f32 %v223, %v230
    %v235 = vadd.f32 %v224, %v230
    %v236 = vpack.c.bf16 %v233, %v232
    %v237 = vpack.c.bf16 %v235, %v234
    %v240 = vunpack.c.l.b16 %v236
    %v241 = vunpack.c.h.b16 %v236
    %v242 = vunpack.c.l.b16 %v237
    %v243 = vunpack.c.h.b16 %v237
    %v244 = vpack.c.b16 %v240, %v240
    %v245 = vpack.c.b16 %v241, %v241
    %v246 = vpack.c.b16 %v242, %v242
    %v247 = vpack.c.b16 %v243, %v243
    %vm252 = vcmask 257024
    %253 = vst.msk [vmem:[%s6] sm:$0xf] %vm252, %v244
    %254 = vst.msk [vmem:[%s6 + $0x4] sm:$0xf] %vm252, %v245
    %255 = vst.msk [vmem:[%s6 + $0x8] sm:$0xf] %vm252, %v246
    %256 = vst.msk [vmem:[%s6 + $0xc] sm:$0xf] %vm252, %v247
  $region33: #{transformer_forward.51} parent=0 // pred_fallthru
    _
  // Predicated region
  $region34: #{transformer_forward.51} parent=0 // pred_check
    _
  $region35: #{transformer_forward.51} parent=0 // pred_check_branch
    %258 = sbr.rel (0) target = $region37
  $region36: #{transformer_forward.51} parent=0 // pred_region
    _
  $region37: #{transformer_forward.51} parent=0 // pred_fallthru
    _
  // Predicated region
  $region38: #{transformer_forward.51} parent=0 // pred_check
    _
  $region39: #{transformer_forward.51} parent=0 // pred_check_branch
    %260 = sbr.rel (0) target = $region41
  $region40: #{transformer_forward.51} parent=0 // pred_region
    _
  $region41: #{transformer_forward.51} parent=0 // pred_fallthru
    _

// kernel: transformer_forward.47
$region0: #{transformer_forward.47}
  #allocation0 [shape = 'u32[]', space=smem, size = 0x4, offset = 0x4, fixed_abs, tag = 'smem constant byte address 0x4 - core index']
  #allocation1 [shape = 'u32[144,128]{1,0:T(1,128)}', space=vmem, size = 0x12000, scoped, tag = 'internal scratch']
  #allocation2 [shape = 'f32[32,32]{1,0:T(8,128)}', space=vmem, size = 0x4000, scoped, tag = 'scratch operand']
  %s0 = inlined_call_operand.vmem [shape: bf16[32,32], index: 0, kind: input, shape index: {}]
  %s1 = inlined_call_operand.vmem [shape: bf16[32,32], index: 1, kind: input, shape index: {}]
  %s2 = inlined_call_operand.vmem [shape: f32[1,32], index: 2, kind: input, shape index: {}]
  %s3 = inlined_call_operand.vmem [shape: bf16[32,32], index: 3, kind: output, shape index: {}]
  %s4 = sld [smem:[#allocation0]]
  $region30: #{transformer_forward.47} parent=0
    _
  %s6 = ssub.s32 1, %s4
  %s7 = scalar_select 0, %s6, %s4
  // Predicated region
  $region2: #{transformer_forward.47} parent=0 // pred_check
    _
  $region3: #{transformer_forward.47} parent=0 // pred_check_branch
    %9 = sbr.rel (0) target = $region5
  $region4: #{transformer_forward.47} parent=0 // pred_region
    _
  $region5: #{transformer_forward.47} parent=0 // pred_fallthru
    _
  // Predicated region
  $region6: #{transformer_forward.47} parent=0 // pred_check
    _
  $region7: #{transformer_forward.47} parent=0 // pred_check_branch
    %11 = sbr.rel (0) target = $region9
  $region8: #{transformer_forward.47} parent=0 // pred_region
    _
  $region9: #{transformer_forward.47} parent=0 // pred_fallthru
    _
  // Predicated region
  $region10: #{transformer_forward.47} parent=0 // pred_check
    _
  $region11: #{transformer_forward.47} parent=0 // pred_check_branch
    %13 = sbr.rel (0) target = $region13
  $region12: #{transformer_forward.47} parent=0 // pred_region
    _
  $region13: #{transformer_forward.47} parent=0 // pred_fallthru
    _
  %p15 = scmp.eq.s32.totalorder 0, 0
  // Predicated region
  $region14: #{transformer_forward.47} parent=0 // pred_check
    %p16 = pneg %p15
  $region15: #{transformer_forward.47} parent=0 // pred_check_branch
    %18 = sbr.rel (%p16) target = $region17
  $region16: #{transformer_forward.47} parent=0 // pred_region
    %vm19 = vcmask 261120
    %20 = vst.msk [vmem:[#allocation2] sm:$0xff] %vm19, 0.0
    %21 = vst.msk [vmem:[#allocation2 + $0x8] sm:$0xff] %vm19, 0.0
    %22 = vst.msk [vmem:[#allocation2 + $0x10] sm:$0xff] %vm19, 0.0
    %23 = vst.msk [vmem:[#allocation2 + $0x18] sm:$0xff] %vm19, 0.0
  $region17: #{transformer_forward.47} parent=0 // pred_fallthru
    _
  %v24 = vld [vmem:[#allocation2] sm:$0xff]
  %v25 = vld [vmem:[#allocation2 + $0x8] sm:$0xff]
  %v26 = vld [vmem:[#allocation2 + $0x10] sm:$0xff]
  %v27 = vld [vmem:[#allocation2 + $0x18] sm:$0xff]
  %v28 = vld [vmem:[%s0] sm:$0xf]
  %v29 = vld [vmem:[%s0 + $0x4] sm:$0xf]
  %v30 = vld [vmem:[%s0 + $0x8] sm:$0xf]
  %v31 = vld [vmem:[%s0 + $0xc] sm:$0xf]
  %v32 = vld [vmem:[%s1] sm:$0xf]
  %v33 = vld [vmem:[%s1 + $0x4] sm:$0xf]
  %v34 = vld [vmem:[%s1 + $0x8] sm:$0xf]
  %v35 = vld [vmem:[%s1 + $0xc] sm:$0xf]
  %v40 = vunpack.c.l.b16 %v28
  %v41 = vunpack.c.l.b16 %v29
  %v42 = vunpack.c.l.b16 %v30
  %v43 = vunpack.c.l.b16 %v31
  %v44 = vpack.c.b16 %v41, %v40
  %v45 = vpack.c.b16 %v43, %v42
  %v50 = vunpack.c.l.b16 %v32
  %v51 = vunpack.c.l.b16 %v33
  %v52 = vunpack.c.l.b16 %v34
  %v53 = vunpack.c.l.b16 %v35
  %v54 = vpack.c.b16 %v51, %v50
  %v55 = vpack.c.b16 %v53, %v52
  %vm58 = vcmask 261120
  %v60 = vsel %vm58, %v44, 0
  %v63 = vsel %vm58, %v45, 0
  %65 = vmatprep.subr.bf16.mxu0 0
  %66 = vmatpush1.bf16.msra.mxu0 %v54
  %67 = vmatprep.subr.bf16.mxu0 0
  %68 = vmatpush1.bf16.msra.mxu0 %v55
  %69 = vmatprep.subr.bf16.mxu0 0
  %70 = vmatpush1.bf16.msra.mxu0 0
  %71 = vmatprep.subr.bf16.mxu0 0
  %72 = vmatpush1.bf16.msra.mxu0 0
  %73 = vmatprep.subr.bf16.mxu0 0
  %74 = vmatpush1.bf16.msra.mxu0 0
  %75 = vmatprep.subr.bf16.mxu0 0
  %76 = vmatpush1.bf16.msra.mxu0 0
  %77 = vmatprep.subr.bf16.mxu0 0
  %78 = vmatpush1.bf16.msra.mxu0 0
  %79 = vmatprep.subr.bf16.mxu0 0
  %80 = vmatpush1.bf16.msra.mxu0 0
  %81 = vmatprep.subr.bf16.mxu0 0
  %82 = vmatpush1.bf16.msra.mxu0 0
  %83 = vmatprep.subr.bf16.mxu0 0
  %84 = vmatpush1.bf16.msra.mxu0 0
  %85 = vmatprep.subr.bf16.mxu0 0
  %86 = vmatpush1.bf16.msra.mxu0 0
  %87 = vmatprep.subr.bf16.mxu0 0
  %88 = vmatpush1.bf16.msra.mxu0 0
  %89 = vmatprep.subr.bf16.mxu0 0
  %90 = vmatpush1.bf16.msra.mxu0 0
  %91 = vmatprep.subr.bf16.mxu0 0
  %92 = vmatpush1.bf16.msra.mxu0 0
  %93 = vmatprep.subr.bf16.mxu0 0
  %94 = vmatpush1.bf16.msra.mxu0 0
  %95 = vmatprep.subr.bf16.mxu0 0
  %96 = vmatpush1.bf16.msra.mxu0 0
  %97 = vmatprep.mubr.bf16.mxu0 0
  %98 = vmatmul.mubr.bf16.gmra.mrb[0].mxu0 %v60
  %v99 = vpop.f32.mrb[0].mxu0
  %v100 = vadd.f32 0.0, %v99
  %v101 = vpop.f32.mrb[0].mxu0
  %v102 = vpop.f32.mrb[0].mxu0
  %v103 = vadd.f32 0.0, %v102
  %v104 = vpop.f32.mrb[0].mxu0
  %105 = vmatprep.mubr.bf16.mxu0 0
  %106 = vmatmul.mubr.bf16.gmra.mrb[0].mxu0 %v63
  %v107 = vpop.f32.mrb[0].mxu0
  %v108 = vadd.f32 0.0, %v107
  %v109 = vpop.f32.mrb[0].mxu0
  %v110 = vpop.f32.mrb[0].mxu0
  %v111 = vadd.f32 0.0, %v110
  %v112 = vpop.f32.mrb[0].mxu0
  %113 = vdwg.mxu0
  %v114 = vadd.f32 %v24, %v100
  %v115 = vadd.f32 %v25, %v103
  %v116 = vadd.f32 %v26, %v108
  %v117 = vadd.f32 %v27, %v111
  %118 = vst.msk [vmem:[#allocation2] sm:$0xff] %vm58, %v114
  %119 = vst.msk [vmem:[#allocation2 + $0x8] sm:$0xff] %vm58, %v115
  %120 = vst.msk [vmem:[#allocation2 + $0x10] sm:$0xff] %vm58, %v116
  %121 = vst.msk [vmem:[#allocation2 + $0x18] sm:$0xff] %vm58, %v117
  // Predicated region
  $region18: #{transformer_forward.47} parent=0 // pred_check
    %p122 = pneg %p15
  $region19: #{transformer_forward.47} parent=0 // pred_check_branch
    %124 = sbr.rel (%p122) target = $region21
  $region20: #{transformer_forward.47} parent=0 // pred_region
    %v125 = vld [vmem:[#allocation2] sm:$0xff]
    %v126 = vld [vmem:[#allocation2 + $0x8] sm:$0xff]
    %v127 = vld [vmem:[#allocation2 + $0x10] sm:$0xff]
    %v128 = vld [vmem:[#allocation2 + $0x18] sm:$0xff]
    %v129 = vld [vmem:[%s2] sm:$0x1]
    %v131 = vlaneseq
    %v132 = vshrl.u32 %v131, 7
    %v133 = vsub.s32 0, %v132
    %v134 = vrot.slane %v129, %v133
    %v136 = vadd.f32 %v125, %v134
    %v137 = vadd.f32 %v126, %v134
    %v138 = vadd.f32 %v127, %v134
    %v139 = vadd.f32 %v128, %v134
    %v140 = vpack.c.bf16 %v137, %v136
    %v141 = vpack.c.bf16 %v139, %v138
    %v144 = vunpack.c.l.b16 %v140
    %v145 = vunpack.c.h.b16 %v140
    %v146 = vunpack.c.l.b16 %v141
    %v147 = vunpack.c.h.b16 %v141
    %v148 = vpack.c.b16 %v144, %v144
    %v149 = vpack.c.b16 %v145, %v145
    %v150 = vpack.c.b16 %v146, %v146
    %v151 = vpack.c.b16 %v147, %v147
    %vm156 = vcmask 257024
    %157 = vst.msk [vmem:[%s3] sm:$0xf] %vm156, %v148
    %158 = vst.msk [vmem:[%s3 + $0x4] sm:$0xf] %vm156, %v149
    %159 = vst.msk [vmem:[%s3 + $0x8] sm:$0xf] %vm156, %v150
    %160 = vst.msk [vmem:[%s3 + $0xc] sm:$0xf] %vm156, %v151
  $region21: #{transformer_forward.47} parent=0 // pred_fallthru
    _
  // Predicated region
  $region22: #{transformer_forward.47} parent=0 // pred_check
    _
  $region23: #{transformer_forward.47} parent=0 // pred_check_branch
    %162 = sbr.rel (0) target = $region25
  $region24: #{transformer_forward.47} parent=0 // pred_region
    _
  $region25: #{transformer_forward.47} parent=0 // pred_fallthru
    _
  // Predicated region
  $region26: #{transformer_forward.47} parent=0 // pred_check
    _
  $region27: #{transformer_forward.47} parent=0 // pred_check_branch
    %164 = sbr.rel (0) target = $region29
  $region28: #{transformer_forward.47} parent=0 // pred_region
    _
  $region29: #{transformer_forward.47} parent=0 // pred_fallthru
    _

// kernel: transformer_forward.50
$region0: #{transformer_forward.50}
  #allocation0 [shape = 'u32[]', space=smem, size = 0x4, offset = 0x4, fixed_abs, tag = 'smem constant byte address 0x4 - core index']
  #allocation1 [shape = 'u32[144,128]{1,0:T(1,128)}', space=vmem, size = 0x12000, scoped, tag = 'internal scratch']
  #allocation2 [shape = 'f32[4,16,1]{2,1,0:T(8,128)}', space=vmem, size = 0x8000, scoped, tag = 'scratch operand']
  #allocation3 [shape = 'f32[4,16,1]{2,1,0:T(8,128)}', space=vmem, size = 0x8000, scoped, tag = 'scratch operand']
  #allocation4 [shape = 'f32[16,32]{1,0:T(8,128)}', space=vmem, size = 0x2000, scoped, tag = 'scratch operand']
  %s0 = inlined_call_operand.vmem [shape: bf16[2,16,32], index: 0, kind: input, shape index: {}]
  %s1 = inlined_call_operand.vmem [shape: bf16[2,16,32], index: 1, kind: input, shape index: {}]
  %s2 = inlined_call_operand.vmem [shape: bf16[2,16,32], index: 2, kind: input, shape index: {}]
  %s3 = inlined_call_operand.vmem [shape: f32[2,1,16], index: 3, kind: input, shape index: {}]
  %s4 = inlined_call_operand.vmem [shape: bf16[2,16,32], index: 4, kind: output, shape index: {}]
  %s5 = sld [smem:[#allocation0]]
  $region57: #{transformer_forward.50} parent=0
    _
  %s7 = ssub.s32 1, %s5
  %s8 = scalar_select 0, %s7, %s5
  loop: start=0, step=1, limit=4
  $region2: #{transformer_forward.50} parent=0 // loop_pre_header
    _
  $region3: #{transformer_forward.50} parent=0 // loop_header
    %s10 = sphi 0, %s14
    %p11 = scmp.ge.s32.totalorder %s10, 4
    %s17 = sphi 0, %s43
    %s18 = sphi 0, %s39
    %s19 = sphi 0, %s35
    %s20 = sphi 0, %s31
    %s21 = sphi 0, %s17
    %s22 = sphi 0, %s18
    %s23 = sphi 0, %s19
    %s24 = sphi 0, %s20
    %s25 = sphi 0, %s21
    %s26 = sphi 0, %s22
    %s27 = sphi 0, %s23
    %s28 = sphi 0, %s24
    %s50 = sphi 0, %s52
    %s53 = sphi 0, %s50
    %s54 = sphi 0, %s53
    %s70 = sphi 0, %s54
    %s80 = sphi 0, %s82
    %s83 = sphi 0, %s80
    %s84 = sphi 0, %s83
    %s100 = sphi 0, %s84
    %s110 = sphi 0, %s112
    %s113 = sphi 0, %s110
    %s114 = sphi 0, %s113
    %s130 = sphi 0, %s114
    %s138 = sphi 0, %s140
    %s141 = sphi 0, %s138
    %s142 = sphi 0, %s141
    %s158 = sphi 0, %s142
    %s168 = sphi 0, %s170
    %s171 = sphi 0, %s168
    %s172 = sphi 0, %s171
    %s188 = sphi 0, %s172
  $region4: #{transformer_forward.50} parent=0 // loop_header_branch
    %13 = sbr.rel (%p11) target = $region8
  $region5: #{transformer_forward.50} parent=0 // loop_body
    %s15 = ssub.s32 %s10, 1
    %s16 = ssub.s32 %s10, 2
    %s29 = sadd.s32 1, %s20
    %p30 = scmp.ge.s32.totalorder %s29, 1
    %s31 = scalar_select %p30, 0, %s29
    %s32 = sadd.s32 1, %s19
    %s33 = scalar_select %p30, %s32, %s19
    %p34 = scmp.ge.s32.totalorder %s33, 1
    %s35 = scalar_select %p34, 0, %s33
    %s36 = sadd.s32 1, %s18
    %s37 = scalar_select %p34, %s36, %s18
    %p38 = scmp.ge.s32.totalorder %s37, 1
    %s39 = scalar_select %p38, 0, %s37
    %s40 = sadd.s32 1, %s17
    %s41 = scalar_select %p38, %s40, %s17
    %p42 = scmp.ge.s32.totalorder %s41, 2
    %s43 = scalar_select %p42, 0, %s41
    %s44 = ssub.s32 %s17, %s43
    %s45 = ssub.s32 %s19, %s35
    %s46 = sor.u32 %s44, %s45
    %s47 = ssub.s32 %s18, %s39
    %s48 = sor.u32 %s46, %s47
    %p49 = scmp.eq.s32.totalorder %s48, 0
    %s51 = sadd.s32 %s50, 1
    %s52 = scalar_select %p49, %s50, %s51
    %p55 = pneg %p49
    %p56 = scmp.eq.s32.totalorder %s10, 1
    %p57 = por %p55, %p56
    %p58 = scmp.ne.s32.totalorder %s50, %s53
    %p59 = scmp.eq.s32.totalorder %s10, 0
    %p60 = por %p58, %p59
    %p61 = scmp.ne.s32.totalorder %s50, %s53
    %p62 = scmp.eq.s32.totalorder %s15, 1
    %p63 = por %p61, %p62
    %p64 = scmp.ne.s32.totalorder %s53, %s54
    %p65 = scmp.eq.s32.totalorder %s15, 0
    %p66 = por %p64, %p65
    %p67 = scmp.ne.s32.totalorder %s53, %s54
    %p68 = scmp.eq.s32.totalorder %s16, 1
    %p69 = por %p67, %p68
    %p71 = scmp.ne.s32.totalorder %s54, %s70
    %p72 = scmp.eq.s32.totalorder %s16, 0
    %p73 = por %p71, %p72
    %s74 = ssub.s32 %s17, %s43
    %s75 = ssub.s32 %s20, %s31
    %s76 = sor.u32 %s74, %s75
    %s77 = ssub.s32 %s18, %s39
    %s78 = sor.u32 %s76, %s77
    %p79 = scmp.eq.s32.totalorder %s78, 0
    %s81 = sadd.s32 %s80, 1
    %s82 = scalar_select %p79, %s80, %s81
    %p85 = pneg %p79
    %p86 = scmp.eq.s32.totalorder %s10, 1
    %p87 = por %p85, %p86
    %p88 = scmp.ne.s32.totalorder %s80, %s83
    %p89 = scmp.eq.s32.totalorder %s10, 0
    %p90 = por %p88, %p89
    %p91 = scmp.ne.s32.totalorder %s80, %s83
    %p92 = scmp.eq.s32.totalorder %s15, 1
    %p93 = por %p91, %p92
    %p94 = scmp.ne.s32.totalorder %s83, %s84
    %p95 = scmp.eq.s32.totalorder %s15, 0
    %p96 = por %p94, %p95
    %p97 = scmp.ne.s32.totalorder %s83, %s84
    %p98 = scmp.eq.s32.totalorder %s16, 1
    %p99 = por %p97, %p98
    %p101 = scmp.ne.s32.totalorder %s84, %s100
    %p102 = scmp.eq.s32.totalorder %s16, 0
    %p103 = por %p101, %p102
    %s104 = ssub.s32 %s17, %s43
    %s105 = ssub.s32 %s20, %s31
    %s106 = sor.u32 %s104, %s105
    %s107 = ssub.s32 %s18, %s39
    %s108 = sor.u32 %s106, %s107
    %p109 = scmp.eq.s32.totalorder %s108, 0
    %s111 = sadd.s32 %s110, 1
    %s112 = scalar_select %p109, %s110, %s111
    %p115 = pneg %p109
    %p116 = scmp.eq.s32.totalorder %s10, 1
    %p117 = por %p115, %p116
    %p118 = scmp.ne.s32.totalorder %s110, %s113
    %p119 = scmp.eq.s32.totalorder %s10, 0
    %p120 = por %p118, %p119
    %p121 = scmp.ne.s32.totalorder %s110, %s113
    %p122 = scmp.eq.s32.totalorder %s15, 1
    %p123 = por %p121, %p122
    %p124 = scmp.ne.s32.totalorder %s113, %s114
    %p125 = scmp.eq.s32.totalorder %s15, 0
    %p126 = por %p124, %p125
    %p127 = scmp.ne.s32.totalorder %s113, %s114
    %p128 = scmp.eq.s32.totalorder %s16, 1
    %p129 = por %p127, %p128
    %p131 = scmp.ne.s32.totalorder %s114, %s130
    %p132 = scmp.eq.s32.totalorder %s16, 0
    %p133 = por %p131, %p132
    %s134 = ssub.s32 %s17, %s43
    %s135 = ssub.s32 %s20, %s31
    %s136 = sor.u32 %s134, %s135
    %p137 = scmp.eq.s32.totalorder %s136, 0
    %s139 = sadd.s32 %s138, 1
    %s140 = scalar_select %p137, %s138, %s139
    %p143 = pneg %p137
    %p144 = scmp.eq.s32.totalorder %s10, 1
    %p145 = por %p143, %p144
    %p146 = scmp.ne.s32.totalorder %s138, %s141
    %p147 = scmp.eq.s32.totalorder %s10, 0
    %p148 = por %p146, %p147
    %p149 = scmp.ne.s32.totalorder %s138, %s141
    %p150 = scmp.eq.s32.totalorder %s15, 1
    %p151 = por %p149, %p150
    %p152 = scmp.ne.s32.totalorder %s141, %s142
    %p153 = scmp.eq.s32.totalorder %s15, 0
    %p154 = por %p152, %p153
    %p155 = scmp.ne.s32.totalorder %s141, %s142
    %p156 = scmp.eq.s32.totalorder %s16, 1
    %p157 = por %p155, %p156
    %p159 = scmp.ne.s32.totalorder %s142, %s158
    %p160 = scmp.eq.s32.totalorder %s16, 0
    %p161 = por %p159, %p160
    %s162 = ssub.s32 %s17, %s43
    %s163 = ssub.s32 %s19, %s35
    %s164 = sor.u32 %s162, %s163
    %s165 = ssub.s32 %s18, %s39
    %s166 = sor.u32 %s164, %s165
    %p167 = scmp.eq.s32.totalorder %s166, 0
    %s169 = sadd.s32 %s168, 1
    %s170 = scalar_select %p167, %s168, %s169
    %p173 = pneg %p167
    %p174 = scmp.eq.s32.totalorder %s10, 1
    %p175 = por %p173, %p174
    %p176 = scmp.ne.s32.totalorder %s168, %s171
    %p177 = scmp.eq.s32.totalorder %s10, 0
    %p178 = por %p176, %p177
    %p179 = scmp.ne.s32.totalorder %s168, %s171
    %p180 = scmp.eq.s32.totalorder %s15, 1
    %p181 = por %p179, %p180
    %p182 = scmp.ne.s32.totalorder %s171, %s172
    %p183 = scmp.eq.s32.totalorder %s15, 0
    %p184 = por %p182, %p183
    %p185 = scmp.ne.s32.totalorder %s171, %s172
    %p186 = scmp.eq.s32.totalorder %s16, 1
    %p187 = por %p185, %p186
    %p189 = scmp.ne.s32.totalorder %s172, %s188
    %p190 = scmp.eq.s32.totalorder %s16, 0
    %p191 = por %p189, %p190
    %p192 = scmp.le.s32.totalorder 1, %s10
    %p193 = scmp.lt.s32.totalorder %s10, 3
    %p194 = pnand %p192, %p193
    %p195 = pneg %p194
    // Predicated region
    $region9: #{transformer_forward.50} parent=5 // pred_check
      _
    $region10: #{transformer_forward.50} parent=5 // pred_check_branch
      %197 = sbr.rel (%p194) target = $region12
    $region11: #{transformer_forward.50} parent=5 // pred_region
      %s198 = ssub.s32 %s10, 1
    $region12: #{transformer_forward.50} parent=5 // pred_fallthru
      _
    %p199 = scmp.lt.s32.totalorder %s10, 2
    // Predicated region
    $region13: #{transformer_forward.50} parent=5 // pred_check
      %p200 = pneg %p199
    $region14: #{transformer_forward.50} parent=5 // pred_check_branch
      %202 = sbr.rel (%p200) target = $region16
    $region15: #{transformer_forward.50} parent=5 // pred_region
      // Predicated region
      $region17: #{transformer_forward.50} parent=15 // pred_check
        %p203 = pneg %p60
      $region18: #{transformer_forward.50} parent=15 // pred_check_branch
        %205 = sbr.rel (%p203) target = $region20
      $region19: #{transformer_forward.50} parent=15 // pred_region
        %s206 = smul.u32 2, %s19
        %p207 = scmp.lt.s32.totalorder %s17, 1
        %s208 = scalar_select %p207, %s17, 1
        %p209 = scmp.lt.s32.totalorder %s206, 1
        %s210 = scalar_select %p209, %s206, 1
        %p211 = scmp.lt.s32.totalorder %s18, 0
        %s212 = scalar_select %p211, %s18, 0
        %s213 = sadd.s32 %s212, %s210
        %s214 = smul.addr %s208, 2
        %s215 = sadd.s32 %s213, %s214
        %s216 = smul.addr %s215, 4
        %s217 = scalar_lea.vmem %s0, %s216
        %s218 = smul.u32 2, %s19
      $region20: #{transformer_forward.50} parent=15 // pred_fallthru
        _
      // Predicated region
      $region21: #{transformer_forward.50} parent=15 // pred_check
        %p219 = pneg %p90
      $region22: #{transformer_forward.50} parent=15 // pred_check_branch
        %221 = sbr.rel (%p219) target = $region24
      $region23: #{transformer_forward.50} parent=15 // pred_region
        %s222 = smul.u32 2, %s20
        %p223 = scmp.lt.s32.totalorder %s17, 1
        %s224 = scalar_select %p223, %s17, 1
        %p225 = scmp.lt.s32.totalorder %s222, 1
        %s226 = scalar_select %p225, %s222, 1
        %p227 = scmp.lt.s32.totalorder %s18, 0
        %s228 = scalar_select %p227, %s18, 0
        %s229 = sadd.s32 %s228, %s226
        %s230 = smul.addr %s224, 2
        %s231 = sadd.s32 %s229, %s230
        %s232 = smul.addr %s231, 4
        %s233 = scalar_lea.vmem %s1, %s232
        %s234 = smul.u32 2, %s20
      $region24: #{transformer_forward.50} parent=15 // pred_fallthru
        _
      // Predicated region
      $region25: #{transformer_forward.50} parent=15 // pred_check
        %p235 = pneg %p120
      $region26: #{transformer_forward.50} parent=15 // pred_check_branch
        %237 = sbr.rel (%p235) target = $region28
      $region27: #{transformer_forward.50} parent=15 // pred_region
        %s238 = smul.u32 2, %s20
        %p239 = scmp.lt.s32.totalorder %s17, 1
        %s240 = scalar_select %p239, %s17, 1
        %p241 = scmp.lt.s32.totalorder %s238, 1
        %s242 = scalar_select %p241, %s238, 1
        %p243 = scmp.lt.s32.totalorder %s18, 0
        %s244 = scalar_select %p243, %s18, 0
        %s245 = sadd.s32 %s244, %s242
        %s246 = smul.addr %s240, 2
        %s247 = sadd.s32 %s245, %s246
        %s248 = smul.addr %s247, 4
        %s249 = scalar_lea.vmem %s2, %s248
        %s250 = smul.u32 2, %s20
      $region28: #{transformer_forward.50} parent=15 // pred_fallthru
        _
      // Predicated region
      $region29: #{transformer_forward.50} parent=15 // pred_check
        %p251 = pneg %p148
      $region30: #{transformer_forward.50} parent=15 // pred_check_branch
        %253 = sbr.rel (%p251) target = $region32
      $region31: #{transformer_forward.50} parent=15 // pred_region
        %p254 = scmp.lt.s32.totalorder %s17, 1
        %s255 = scalar_select %p254, %s17, 1
        %p256 = scmp.lt.s32.totalorder %s20, 0
        %s257 = scalar_select %p256, %s20, 0
        %s258 = sadd.s32 %s257, %s255
        %s259 = scalar_lea.vmem %s3, %s258
      $region32: #{transformer_forward.50} parent=15 // pred_fallthru
        _
    $region16: #{transformer_forward.50} parent=5 // pred_fallthru
      _
    %p260 = scmp.le.s32.totalorder 1, %s10
    %p261 = scmp.lt.s32.totalorder %s10, 3
    %p262 = pnand %p260, %p261
    %p263 = pneg %p262
    // Predicated region
    $region33: #{transformer_forward.50} parent=5 // pred_check
      _
    $region34: #{transformer_forward.50} parent=5 // pred_check_branch
      %265 = sbr.rel (%p262) target = $region36
    $region35: #{transformer_forward.50} parent=5 // pred_region
      %s266 = ssub.s32 %s10, 1
      %s267 = smul.u32 2, %s23
      %p268 = scmp.lt.s32.totalorder %s21, 1
      %s269 = scalar_select %p268, %s21, 1
      %p270 = scmp.lt.s32.totalorder %s267, 1
      %s271 = scalar_select %p270, %s267, 1
      %p272 = scmp.lt.s32.totalorder %s22, 0
      %s273 = scalar_select %p272, %s22, 0
      %s274 = sadd.s32 %s273, %s271
      %s275 = smul.addr %s269, 2
      %s276 = sadd.s32 %s274, %s275
      %s277 = smul.addr %s276, 4
      %s278 = scalar_lea.vmem %s0, %s277
      %p279 = pneg %p66
      %p280 = pneg %p63
      %s281 = smul.u32 2, %s24
      %p282 = scmp.lt.s32.totalorder %s21, 1
      %s283 = scalar_select %p282, %s21, 1
      %p284 = scmp.lt.s32.totalorder %s281, 1
      %s285 = scalar_select %p284, %s281, 1
      %p286 = scmp.lt.s32.totalorder %s22, 0
      %s287 = scalar_select %p286, %s22, 0
      %s288 = sadd.s32 %s287, %s285
      %s289 = smul.addr %s283, 2
      %s290 = sadd.s32 %s288, %s289
      %s291 = smul.addr %s290, 4
      %s292 = scalar_lea.vmem %s1, %s291
      %p293 = pneg %p96
      %p294 = pneg %p93
      %s295 = smul.u32 2, %s24
      %p296 = scmp.lt.s32.totalorder %s21, 1
      %s297 = scalar_select %p296, %s21, 1
      %p298 = scmp.lt.s32.totalorder %s295, 1
      %s299 = scalar_select %p298, %s295, 1
      %p300 = scmp.lt.s32.totalorder %s22, 0
      %s301 = scalar_select %p300, %s22, 0
      %s302 = sadd.s32 %s301, %s299
      %s303 = smul.addr %s297, 2
      %s304 = sadd.s32 %s302, %s303
      %s305 = smul.addr %s304, 4
      %s306 = scalar_lea.vmem %s2, %s305
      %p307 = pneg %p126
      %p308 = pneg %p123
      %p309 = scmp.lt.s32.totalorder %s21, 1
      %s310 = scalar_select %p309, %s21, 1
      %p311 = scmp.lt.s32.totalorder %s24, 0
      %s312 = scalar_select %p311, %s24, 0
      %s313 = sadd.s32 %s312, %s310
      %s314 = scalar_lea.vmem %s3, %s313
      %p315 = pneg %p154
      %p316 = pneg %p151
      %p317 = pneg %p184
      %p318 = pneg %p181
      %s319 = smul.u32 2, %s23
      %p320 = scmp.lt.s32.totalorder %s21, 1
      %s321 = scalar_select %p320, %s21, 1
      %p322 = scmp.lt.s32.totalorder %s319, 1
      %s323 = scalar_select %p322, %s319, 1
      %p324 = scmp.lt.s32.totalorder %s22, 0
      %s325 = scalar_select %p324, %s22, 0
      %s326 = sadd.s32 %s325, %s323
      %s327 = smul.addr %s321, 2
      %s328 = sadd.s32 %s326, %s327
      %s329 = smul.addr %s328, 4
      %s330 = scalar_lea.vmem %s4, %s329
      %s331 = smul.u32 2, %s23
      %p332 = scmp.lt.s32.totalorder %s21, 1
      %s333 = scalar_select %p332, %s21, 1
      %p334 = scmp.lt.s32.totalorder %s331, 1
      %s335 = scalar_select %p334, %s331, 1
      %p336 = scmp.lt.s32.totalorder %s22, 0
      %s337 = scalar_select %p336, %s22, 0
      %s338 = sadd.s32 %s337, %s335
      %s339 = smul.addr %s333, 2
      %s340 = sadd.s32 %s338, %s339
      %s341 = smul.addr %s340, 4
      %s342 = scalar_lea.vmem %s0, %s341
      %s343 = smul.u32 2, %s23
      %s344 = smul.u32 2, %s24
      %p345 = scmp.lt.s32.totalorder %s21, 1
      %s346 = scalar_select %p345, %s21, 1
      %p347 = scmp.lt.s32.totalorder %s344, 1
      %s348 = scalar_select %p347, %s344, 1
      %p349 = scmp.lt.s32.totalorder %s22, 0
      %s350 = scalar_select %p349, %s22, 0
      %s351 = sadd.s32 %s350, %s348
      %s352 = smul.addr %s346, 2
      %s353 = sadd.s32 %s351, %s352
      %s354 = smul.addr %s353, 4
      %s355 = scalar_lea.vmem %s1, %s354
      %s356 = smul.u32 2, %s24
      %s357 = smul.u32 2, %s24
      %p358 = scmp.lt.s32.totalorder %s21, 1
      %s359 = scalar_select %p358, %s21, 1
      %p360 = scmp.lt.s32.totalorder %s357, 1
      %s361 = scalar_select %p360, %s357, 1
      %p362 = scmp.lt.s32.totalorder %s22, 0
      %s363 = scalar_select %p362, %s22, 0
      %s364 = sadd.s32 %s363, %s361
      %s365 = smul.addr %s359, 2
      %s366 = sadd.s32 %s364, %s365
      %s367 = smul.addr %s366, 4
      %s368 = scalar_lea.vmem %s2, %s367
      %s369 = smul.u32 2, %s24
      %p370 = scmp.lt.s32.totalorder %s21, 1
      %s371 = scalar_select %p370, %s21, 1
      %p372 = scmp.lt.s32.totalorder %s24, 0
      %s373 = scalar_select %p372, %s24, 0
      %s374 = sadd.s32 %s373, %s371
      %s375 = scalar_lea.vmem %s3, %s374
      %s376 = smul.u32 2, %s23
      %p377 = scmp.lt.s32.totalorder %s21, 1
      %s378 = scalar_select %p377, %s21, 1
      %p379 = scmp.lt.s32.totalorder %s376, 1
      %s380 = scalar_select %p379, %s376, 1
      %p381 = scmp.lt.s32.totalorder %s22, 0
      %s382 = scalar_select %p381, %s22, 0
      %s383 = sadd.s32 %s382, %s380
      %s384 = smul.addr %s378, 2
      %s385 = sadd.s32 %s383, %s384
      %s386 = smul.addr %s385, 4
      %s387 = scalar_lea.vmem %s4, %s386
      %s388 = smul.u32 2, %s23
      %p390 = scmp.eq.s32.totalorder %s24, 0
      // Predicated region
      $region37: #{transformer_forward.50} parent=35 // pred_check
        %p391 = pneg %p390
      $region38: #{transformer_forward.50} parent=35 // pred_check_branch
        %393 = sbr.rel (%p391) target = $region40
      $region39: #{transformer_forward.50} parent=35 // pred_region
        %vm394 = vcmask 7168
        %395 = vst.msk [vmem:[#allocation2] sm:$0xff] %vm394, -inf
        %396 = vst.msk [vmem:[#allocation2 + $0x8] sm:$0xff] %vm394, -inf
        %397 = vst.msk [vmem:[#allocation2 + $0x10] sm:$0xff] %vm394, -inf
        %398 = vst.msk [vmem:[#allocation2 + $0x18] sm:$0xff] %vm394, -inf
        %399 = vst.msk [vmem:[#allocation2 + $0x20] sm:$0xff] %vm394, -inf
        %400 = vst.msk [vmem:[#allocation2 + $0x28] sm:$0xff] %vm394, -inf
        %401 = vst.msk [vmem:[#allocation2 + $0x30] sm:$0xff] %vm394, -inf
        %402 = vst.msk [vmem:[#allocation2 + $0x38] sm:$0xff] %vm394, -inf
        %403 = vst.msk [vmem:[#allocation3] sm:$0xff] %vm394, 0.0
        %404 = vst.msk [vmem:[#allocation3 + $0x8] sm:$0xff] %vm394, 0.0
        %405 = vst.msk [vmem:[#allocation3 + $0x10] sm:$0xff] %vm394, 0.0
        %406 = vst.msk [vmem:[#allocation3 + $0x18] sm:$0xff] %vm394, 0.0
        %407 = vst.msk [vmem:[#allocation3 + $0x20] sm:$0xff] %vm394, 0.0
        %408 = vst.msk [vmem:[#allocation3 + $0x28] sm:$0xff] %vm394, 0.0
        %409 = vst.msk [vmem:[#allocation3 + $0x30] sm:$0xff] %vm394, 0.0
        %410 = vst.msk [vmem:[#allocation3 + $0x38] sm:$0xff] %vm394, 0.0
        %vm411 = vcmask 261120
        %412 = vst.msk [vmem:[#allocation4] sm:$0xff] %vm411, 0.0
        %413 = vst.msk [vmem:[#allocation4 + $0x8] sm:$0xff] %vm411, 0.0
      $region40: #{transformer_forward.50} parent=35 // pred_fallthru
        _
      %v414 = vld [vmem:[%s375] sm:$0x1]
      %v415 = vlaneseq
      %v416 = vshrl.u32 %v415, 7
      %v417 = vadd.s32 %v416, 8
      %s418 = smul.u32 %s23, 16
      %v419 = vstv %s418
      %v420 = vadd.s32 %v416, %v419
      %v421 = vadd.s32 %v417, %v419
      %v422 = vlaneseq
      %v423 = vand.u32 %v422, 127
      %s424 = smul.u32 %s24, 16
      %v425 = vstv %s424
      %v426 = vadd.s32 %v423, %v425
      %vm427 = vcmp.le.s32.totalorder %v426, %v420
      %vm428 = vcmp.le.s32.totalorder %v426, %v421
      %v429 = vsel %vm427, 0.0, -1e+09
      %v430 = vsel %vm428, 0.0, -1e+09
      %v432 = vlaneseq
      %v433 = vshrl.u32 %v432, 7
      %v434 = vsub.s32 0, %v433
      %v435 = vrot.slane %v414, %v434
      %v437 = vadd.f32 %v435, %v429
      %v438 = vadd.f32 %v435, %v430
      %v439 = vld [vmem:[%s342] sm:$0xf]
      %v440 = vld [vmem:[%s342 + $0x4] sm:$0xf]
      %v441 = vld [vmem:[%s355] sm:$0xf]
      %v442 = vld [vmem:[%s355 + $0x4] sm:$0xf]
      %v443 = vld [vmem:[%s368] sm:$0xf]
      %v444 = vld [vmem:[%s368 + $0x4] sm:$0xf]
      %v447 = vunpack.c.l.b16 %v439
      %v448 = vunpack.c.l.b16 %v440
      %v449 = vpack.c.b16 %v448, %v447
      %v452 = vunpack.c.l.b16 %v441
      %v453 = vunpack.c.l.b16 %v442
      %v454 = vpack.c.b16 %v453, %v452
      %vm455 = vcmask 64512
      %v457 = vsel %vm455, %v449, 0
      %v460 = vsel %vm455, %v454, 0
      %462 = vmatprep.subr.bf16.mxu0 0
      %463 = vmatpush1.bf16.xpose.msra.mxu0 %v460
      %464 = vmatprep.subr.bf16.mxu0 0
      %465 = vmatpush1.bf16.xpose.msra.mxu0 0
      %466 = vmatprep.subr.bf16.mxu0 0
      %467 = vmatpush1.bf16.xpose.msra.mxu0 0
      %468 = vmatprep.subr.bf16.mxu0 0
      %469 = vmatpush1.bf16.xpose.msra.mxu0 0
      %470 = vmatprep.subr.bf16.mxu0 0
      %471 = vmatpush1.bf16.xpose.msra.mxu0 0
      %472 = vmatprep.subr.bf16.mxu0 0
      %473 = vmatpush1.bf16.xpose.msra.mxu0 0
      %474 = vmatprep.subr.bf16.mxu0 0
      %475 = vmatpush1.bf16.xpose.msra.mxu0 0
      %476 = vmatprep.subr.bf16.mxu0 0
      %477 = vmatpush1.bf16.xpose.msra.mxu0 0
      %478 = vmatprep.subr.bf16.mxu0 0
      %479 = vmatpush1.bf16.xpose.msra.mxu0 0
      %480 = vmatprep.subr.bf16.mxu0 0
      %481 = vmatpush1.bf16.xpose.msra.mxu0 0
      %482 = vmatprep.subr.bf16.mxu0 0
      %483 = vmatpush1.bf16.xpose.msra.mxu0 0
      %484 = vmatprep.subr.bf16.mxu0 0
      %485 = vmatpush1.bf16.xpose.msra.mxu0 0
      %486 = vmatprep.subr.bf16.mxu0 0
      %487 = vmatpush1.bf16.xpose.msra.mxu0 0
      %488 = vmatprep.subr.bf16.mxu0 0
      %489 = vmatpush1.bf16.xpose.msra.mxu0 0
      %490 = vmatprep.subr.bf16.mxu0 0
      %491 = vmatpush1.bf16.xpose.msra.mxu0 0
      %492 = vmatprep.subr.bf16.mxu0 0
      %493 = vmatpush1.bf16.xpose.msra.mxu0 0
      %494 = vmatprep.mubr.bf16.mxu0 0
      %495 = vmatmul.mubr.bf16.gmra.mrb[0].mxu0 %v457
      %v496 = vpop.f32.mrb[0].mxu0
      %v497 = vadd.f32 %v437, %v496
      %v498 = vpop.f32.mrb[0].mxu0
      %v499 = vpop.f32.mrb[0].mxu0
      %v500 = vadd.f32 %v438, %v499
      %v501 = vpop.f32.mrb[0].mxu0
      %502 = vdwg.mxu0
      %v503 = vld [vmem:[#allocation2] sm:$0xff]
      %v504 = vld [vmem:[#allocation2 + $0x8] sm:$0xff]
      %vm505 = vcmask 130048
      %v506 = vsel %vm505, %v497, -inf
      %507 = vmax.xlane.f32.xlu0 %v506
      %v508 = vpop.xlane.xlu0 %507
      %v509 = vsel %vm505, %v500, -inf
      %510 = vmax.xlane.f32.xlu0 %v509
      %v511 = vpop.xlane.xlu0 %510
      %v512 = vmax.f32 %v503, %v508
      %v513 = vmax.f32 %v504, %v511
      %v514 = vsub.f32 %v503, %v512
      %v515 = vsub.f32 %v504, %v513
      %v516 = vmul.f32 %v514, 1.442695
      %v517 = vpow.pop %v516
      %v518 = vmul.f32 %v515, 1.442695
      %v519 = vpow.pop %v518
      %521 = vset.pattern.permute.xlu0 0
      %522 = vperm.xlu0 %521, %v512
      %v523 = vpop.permute.xlu0 %522
      %526 = vset.pattern.permute.xlu0 0
      %527 = vperm.xlu0 %526, %v513
      %v528 = vpop.permute.xlu0 %527
      %v530 = vsub.f32 %v497, %v523
      %v531 = vsub.f32 %v500, %v528
      %v532 = vmul.f32 %v530, 1.442695
      %v533 = vpow.pop %v532
      %v534 = vmul.f32 %v531, 1.442695
      %v535 = vpow.pop %v534
      %v536 = vld [vmem:[#allocation3] sm:$0xff]
      %v537 = vld [vmem:[#allocation3 + $0x8] sm:$0xff]
      %v538 = vmul.f32 %v517, %v536
      %v539 = vmul.f32 %v519, %v537
      %v540 = vsel %vm505, %v533, 0.0
      %541 = vadd.xlane.f32.xlu0 %v540
      %v542 = vpop.xlane.xlu0 %541
      %v543 = vsel %vm505, %v535, 0.0
      %544 = vadd.xlane.f32.xlu0 %v543
      %v545 = vpop.xlane.xlu0 %544
      %v546 = vadd.f32 %v538, %v542
      %v547 = vadd.f32 %v539, %v545
      %vm548 = vcmask 7168
      %549 = vst.msk [vmem:[#allocation3] sm:$0xff] %vm548, %v546
      %550 = vst.msk [vmem:[#allocation3 + $0x8] sm:$0xff] %vm548, %v547
      %v551 = vld [vmem:[#allocation4] sm:$0xff]
      %v552 = vld [vmem:[#allocation4 + $0x8] sm:$0xff]
      %554 = vset.pattern.permute.xlu0 0
      %555 = vperm.xlu0 %554, %v517
      %v556 = vpop.permute.xlu0 %555
      %559 = vset.pattern.permute.xlu0 0
      %560 = vperm.xlu0 %559, %v519
      %v561 = vpop.permute.xlu0 %560
      %v563 = vmul.f32 %v556, %v551
      %v564 = vmul.f32 %v561, %v552
      %v565 = vpack.c.bf16 %v535, %v533
      %v568 = vunpack.c.l.b16 %v443
      %v569 = vunpack.c.l.b16 %v444
      %v570 = vpack.c.b16 %v569, %v568
      %v573 = vsel %vm505, %v565, 0
      %575 = vmatprep.subr.bf16.mxu0 0
      %576 = vmatpush1.bf16.msra.mxu0 %v570
      %577 = vmatprep.subr.bf16.mxu0 0
      %578 = vmatpush1.bf16.msra.mxu0 0
      %579 = vmatprep.subr.bf16.mxu0 0
      %580 = vmatpush1.bf16.msra.mxu0 0
      %581 = vmatprep.subr.bf16.mxu0 0
      %582 = vmatpush1.bf16.msra.mxu0 0
      %583 = vmatprep.subr.bf16.mxu0 0
      %584 = vmatpush1.bf16.msra.mxu0 0
      %585 = vmatprep.subr.bf16.mxu0 0
      %586 = vmatpush1.bf16.msra.mxu0 0
      %587 = vmatprep.subr.bf16.mxu0 0
      %588 = vmatpush1.bf16.msra.mxu0 0
      %589 = vmatprep.subr.bf16.mxu0 0
      %590 = vmatpush1.bf16.msra.mxu0 0
      %591 = vmatprep.subr.bf16.mxu0 0
      %592 = vmatpush1.bf16.msra.mxu0 0
      %593 = vmatprep.subr.bf16.mxu0 0
      %594 = vmatpush1.bf16.msra.mxu0 0
      %595 = vmatprep.subr.bf16.mxu0 0
      %596 = vmatpush1.bf16.msra.mxu0 0
      %597 = vmatprep.subr.bf16.mxu0 0
      %598 = vmatpush1.bf16.msra.mxu0 0
      %599 = vmatprep.subr.bf16.mxu0 0
      %600 = vmatpush1.bf16.msra.mxu0 0
      %601 = vmatprep.subr.bf16.mxu0 0
      %602 = vmatpush1.bf16.msra.mxu0 0
      %603 = vmatprep.subr.bf16.mxu0 0
      %604 = vmatpush1.bf16.msra.mxu0 0
      %605 = vmatprep.subr.bf16.mxu0 0
      %606 = vmatpush1.bf16.msra.mxu0 0
      %607 = vmatprep.mubr.bf16.mxu0 0
      %608 = vmatmul.mubr.bf16.gmra.mrb[0].mxu0 %v573
      %v609 = vpop.f32.mrb[0].mxu0
      %v610 = vadd.f32 0.0, %v609
      %v611 = vpop.f32.mrb[0].mxu0
      %v612 = vpop.f32.mrb[0].mxu0
      %v613 = vadd.f32 0.0, %v612
      %v614 = vpop.f32.mrb[0].mxu0
      %615 = vdwg.mxu0
      %v616 = vadd.f32 %v563, %v610
      %v617 = vadd.f32 %v564, %v613
      %618 = vst.msk [vmem:[#allocation4] sm:$0xff] %vm455, %v616
      %619 = vst.msk [vmem:[#allocation4 + $0x8] sm:$0xff] %vm455, %v617
      %620 = vst.msk [vmem:[#allocation2] sm:$0xff] %vm548, %v512
      %621 = vst.msk [vmem:[#allocation2 + $0x8] sm:$0xff] %vm548, %v513
      %v622 = vld [vmem:[%s342] sm:$0xf]
      %v623 = vld [vmem:[%s342 + $0x4] sm:$0xf]
      %v624 = vld [vmem:[%s355] sm:$0xf]
      %v625 = vld [vmem:[%s355 + $0x4] sm:$0xf]
      %v626 = vld [vmem:[%s368] sm:$0xf]
      %v627 = vld [vmem:[%s368 + $0x4] sm:$0xf]
      %v630 = vunpack.c.l.b16 %v622
      %v631 = vunpack.c.l.b16 %v623
      %v632 = vpack.c.b16 %v631, %v630
      %633 = vrot.lane.b32.xlu0 %v632, 120
      %v634 = vpop.permute.xlu0 %633
      %v637 = vunpack.c.l.b16 %v624
      %v638 = vunpack.c.l.b16 %v625
      %v639 = vpack.c.b16 %v638, %v637
      %640 = vrot.lane.b32.xlu0 %v639, 120
      %v641 = vpop.permute.xlu0 %640
      %v643 = vsel %vm455, %v634, 0
      %v646 = vsel %vm455, %v641, 0
      %648 = vmatprep.subr.bf16.mxu0 0
      %649 = vmatpush1.bf16.xpose.msra.mxu0 %v646
      %650 = vmatprep.subr.bf16.mxu0 0
      %651 = vmatpush1.bf16.xpose.msra.mxu0 0
      %652 = vmatprep.subr.bf16.mxu0 0
      %653 = vmatpush1.bf16.xpose.msra.mxu0 0
      %654 = vmatprep.subr.bf16.mxu0 0
      %655 = vmatpush1.bf16.xpose.msra.mxu0 0
      %656 = vmatprep.subr.bf16.mxu0 0
      %657 = vmatpush1.bf16.xpose.msra.mxu0 0
      %658 = vmatprep.subr.bf16.mxu0 0
      %659 = vmatpush1.bf16.xpose.msra.mxu0 0
      %660 = vmatprep.subr.bf16.mxu0 0
      %661 = vmatpush1.bf16.xpose.msra.mxu0 0
      %662 = vmatprep.subr.bf16.mxu0 0
      %663 = vmatpush1.bf16.xpose.msra.mxu0 0
      %664 = vmatprep.subr.bf16.mxu0 0
      %665 = vmatpush1.bf16.xpose.msra.mxu0 0
      %666 = vmatprep.subr.bf16.mxu0 0
      %667 = vmatpush1.bf16.xpose.msra.mxu0 0
      %668 = vmatprep.subr.bf16.mxu0 0
      %669 = vmatpush1.bf16.xpose.msra.mxu0 0
      %670 = vmatprep.subr.bf16.mxu0 0
      %671 = vmatpush1.bf16.xpose.msra.mxu0 0
      %672 = vmatprep.subr.bf16.mxu0 0
      %673 = vmatpush1.bf16.xpose.msra.mxu0 0
      %674 = vmatprep.subr.bf16.mxu0 0
      %675 = vmatpush1.bf16.xpose.msra.mxu0 0
      %676 = vmatprep.subr.bf16.mxu0 0
      %677 = vmatpush1.bf16.xpose.msra.mxu0 0
      %678 = vmatprep.subr.bf16.mxu0 0
      %679 = vmatpush1.bf16.xpose.msra.mxu0 0
      %680 = vmatprep.mubr.bf16.mxu0 0
      %681 = vmatmul.mubr.bf16.gmra.mrb[0].mxu0 %v643
      %v682 = vpop.f32.mrb[0].mxu0
      %v683 = vadd.f32 %v437, %v682
      %v684 = vpop.f32.mrb[0].mxu0
      %v685 = vpop.f32.mrb[0].mxu0
      %v686 = vadd.f32 %v438, %v685
      %v687 = vpop.f32.mrb[0].mxu0
      %688 = vdwg.mxu0
      %s689 = scalar_lea.vmem [#allocation2], 16
      %v690 = vld [vmem:[%s689] sm:$0xff]
      %v691 = vld [vmem:[%s689 + $0x8] sm:$0xff]
      %v692 = vsel %vm505, %v683, -inf
      %693 = vmax.xlane.f32.xlu0 %v692
      %v694 = vpop.xlane.xlu0 %693
      %v695 = vsel %vm505, %v686, -inf
      %696 = vmax.xlane.f32.xlu0 %v695
      %v697 = vpop.xlane.xlu0 %696
      %v698 = vmax.f32 %v690, %v694
      %v699 = vmax.f32 %v691, %v697
      %v700 = vsub.f32 %v690, %v698
      %v701 = vsub.f32 %v691, %v699
      %v702 = vmul.f32 %v700, 1.442695
      %v703 = vpow.pop %v702
      %v704 = vmul.f32 %v701, 1.442695
      %v705 = vpow.pop %v704
      %707 = vset.pattern.permute.xlu0 0
      %708 = vperm.xlu0 %707, %v698
      %v709 = vpop.permute.xlu0 %708
      %712 = vset.pattern.permute.xlu0 0
      %713 = vperm.xlu0 %712, %v699
      %v714 = vpop.permute.xlu0 %713
      %v716 = vsub.f32 %v683, %v709
      %v717 = vsub.f32 %v686, %v714
      %v718 = vmul.f32 %v716, 1.442695
      %v719 = vpow.pop %v718
      %v720 = vmul.f32 %v717, 1.442695
      %v721 = vpow.pop %v720
      %s722 = scalar_lea.vmem [#allocation3], 16
      %v723 = vld [vmem:[%s722] sm:$0xff]
      %v724 = vld [vmem:[%s722 + $0x8] sm:$0xff]
      %v725 = vmul.f32 %v703, %v723
      %v726 = vmul.f32 %v705, %v724
      %v727 = vsel %vm505, %v719, 0.0
      %728 = vadd.xlane.f32.xlu0 %v727
      %v729 = vpop.xlane.xlu0 %728
      %v730 = vsel %vm505, %v721, 0.0
      %731 = vadd.xlane.f32.xlu0 %v730
      %v732 = vpop.xlane.xlu0 %731
      %v733 = vadd.f32 %v725, %v729
      %v734 = vadd.f32 %v726, %v732
      %735 = vst.msk [vmem:[%s722] sm:$0xff] %vm548, %v733
      %736 = vst.msk [vmem:[%s722 + $0x8] sm:$0xff] %vm548, %v734
      %v737 = vld [vmem:[#allocation4] sm:$0xff]
      %v738 = vld [vmem:[#allocation4 + $0x8] sm:$0xff]
      %740 = vset.pattern.permute.xlu0 0
      %741 = vperm.xlu0 %740, %v703
      %v742 = vpop.permute.xlu0 %741
      %745 = vset.pattern.permute.xlu0 0
      %746 = vperm.xlu0 %745, %v705
      %v747 = vpop.permute.xlu0 %746
      %v749 = vmul.f32 %v742, %v737
      %v750 = vmul.f32 %v747, %v738
      %v751 = vpack.c.bf16 %v721, %v719
      %v754 = vunpack.c.l.b16 %v626
      %v755 = vunpack.c.l.b16 %v627
      %v756 = vpack.c.b16 %v755, %v754
      %757 = vrot.lane.b32.xlu0 %v756, 120
      %v758 = vpop.permute.xlu0 %757
      %v761 = vsel %vm505, %v751, 0
      %763 = vmatprep.subr.bf16.mxu0 0
      %764 = vmatpush1.bf16.msra.mxu0 %v758
      %765 = vmatprep.subr.bf16.mxu0 0
      %766 = vmatpush1.bf16.msra.mxu0 0
      %767 = vmatprep.subr.bf16.mxu0 0
      %768 = vmatpush1.bf16.msra.mxu0 0
      %769 = vmatprep.subr.bf16.mxu0 0
      %770 = vmatpush1.bf16.msra.mxu0 0
      %771 = vmatprep.subr.bf16.mxu0 0
      %772 = vmatpush1.bf16.msra.mxu0 0
      %773 = vmatprep.subr.bf16.mxu0 0
      %774 = vmatpush1.bf16.msra.mxu0 0
      %775 = vmatprep.subr.bf16.mxu0 0
      %776 = vmatpush1.bf16.msra.mxu0 0
      %777 = vmatprep.subr.bf16.mxu0 0
      %778 = vmatpush1.bf16.msra.mxu0 0
      %779 = vmatprep.subr.bf16.mxu0 0
      %780 = vmatpush1.bf16.msra.mxu0 0
      %781 = vmatprep.subr.bf16.mxu0 0
      %782 = vmatpush1.bf16.msra.mxu0 0
      %783 = vmatprep.subr.bf16.mxu0 0
      %784 = vmatpush1.bf16.msra.mxu0 0
      %785 = vmatprep.subr.bf16.mxu0 0
      %786 = vmatpush1.bf16.msra.mxu0 0
      %787 = vmatprep.subr.bf16.mxu0 0
      %788 = vmatpush1.bf16.msra.mxu0 0
      %789 = vmatprep.subr.bf16.mxu0 0
      %790 = vmatpush1.bf16.msra.mxu0 0
      %791 = vmatprep.subr.bf16.mxu0 0
      %792 = vmatpush1.bf16.msra.mxu0 0
      %793 = vmatprep.subr.bf16.mxu0 0
      %794 = vmatpush1.bf16.msra.mxu0 0
      %795 = vmatprep.mubr.bf16.mxu0 0
      %796 = vmatmul.mubr.bf16.gmra.mrb[0].mxu0 %v761
      %v797 = vpop.f32.mrb[0].mxu0
      %v798 = vadd.f32 0.0, %v797
      %v799 = vpop.f32.mrb[0].mxu0
      %v800 = vpop.f32.mrb[0].mxu0
      %v801 = vadd.f32 0.0, %v800
      %v802 = vpop.f32.mrb[0].mxu0
      %803 = vdwg.mxu0
      %806 = vrot.lane.b32.xlu0 %v798, 8
      %v807 = vpop.permute.xlu0 %806
      %808 = vrot.lane.b32.xlu0 %v801, 8
      %v809 = vpop.permute.xlu0 %808
      %v812 = vadd.f32 %v749, %v807
      %v813 = vadd.f32 %v750, %v809
      %vm814 = vcmask 130112
      %815 = vst.msk [vmem:[#allocation4] sm:$0xff] %vm814, %v812
      %816 = vst.msk [vmem:[#allocation4 + $0x8] sm:$0xff] %vm814, %v813
      %817 = vst.msk [vmem:[%s689] sm:$0xff] %vm548, %v698
      %818 = vst.msk [vmem:[%s689 + $0x8] sm:$0xff] %vm548, %v699
      %v819 = vld [vmem:[%s342] sm:$0xf]
      %v820 = vld [vmem:[%s342 + $0x4] sm:$0xf]
      %v821 = vld [vmem:[%s355] sm:$0xf]
      %v822 = vld [vmem:[%s355 + $0x4] sm:$0xf]
      %v823 = vld [vmem:[%s368] sm:$0xf]
      %v824 = vld [vmem:[%s368 + $0x4] sm:$0xf]
      %v827 = vunpack.c.l.b16 %v819
      %v828 = vunpack.c.l.b16 %v820
      %v829 = vpack.c.b16 %v828, %v827
      %830 = vrot.lane.b32.xlu0 %v829, 112
      %v831 = vpop.permute.xlu0 %830
      %v834 = vunpack.c.l.b16 %v821
      %v835 = vunpack.c.l.b16 %v822
      %v836 = vpack.c.b16 %v835, %v834
      %837 = vrot.lane.b32.xlu0 %v836, 112
      %v838 = vpop.permute.xlu0 %837
      %v840 = vsel %vm455, %v831, 0
      %v843 = vsel %vm455, %v838, 0
      %845 = vmatprep.subr.bf16.mxu0 0
      %846 = vmatpush1.bf16.xpose.msra.mxu0 %v843
      %847 = vmatprep.subr.bf16.mxu0 0
      %848 = vmatpush1.bf16.xpose.msra.mxu0 0
      %849 = vmatprep.subr.bf16.mxu0 0
      %850 = vmatpush1.bf16.xpose.msra.mxu0 0
      %851 = vmatprep.subr.bf16.mxu0 0
      %852 = vmatpush1.bf16.xpose.msra.mxu0 0
      %853 = vmatprep.subr.bf16.mxu0 0
      %854 = vmatpush1.bf16.xpose.msra.mxu0 0
      %855 = vmatprep.subr.bf16.mxu0 0
      %856 = vmatpush1.bf16.xpose.msra.mxu0 0
      %857 = vmatprep.subr.bf16.mxu0 0
      %858 = vmatpush1.bf16.xpose.msra.mxu0 0
      %859 = vmatprep.subr.bf16.mxu0 0
      %860 = vmatpush1.bf16.xpose.msra.mxu0 0
      %861 = vmatprep.subr.bf16.mxu0 0
      %862 = vmatpush1.bf16.xpose.msra.mxu0 0
      %863 = vmatprep.subr.bf16.mxu0 0
      %864 = vmatpush1.bf16.xpose.msra.mxu0 0
      %865 = vmatprep.subr.bf16.mxu0 0
      %866 = vmatpush1.bf16.xpose.msra.mxu0 0
      %867 = vmatprep.subr.bf16.mxu0 0
      %868 = vmatpush1.bf16.xpose.msra.mxu0 0
      %869 = vmatprep.subr.bf16.mxu0 0
      %870 = vmatpush1.bf16.xpose.msra.mxu0 0
      %871 = vmatprep.subr.bf16.mxu0 0
      %872 = vmatpush1.bf16.xpose.msra.mxu0 0
      %873 = vmatprep.subr.bf16.mxu0 0
      %874 = vmatpush1.bf16.xpose.msra.mxu0 0
      %875 = vmatprep.subr.bf16.mxu0 0
      %876 = vmatpush1.bf16.xpose.msra.mxu0 0
      %877 = vmatprep.mubr.bf16.mxu0 0
      %878 = vmatmul.mubr.bf16.gmra.mrb[0].mxu0 %v840
      %v879 = vpop.f32.mrb[0].mxu0
      %v880 = vadd.f32 %v437, %v879
      %v881 = vpop.f32.mrb[0].mxu0
      %v882 = vpop.f32.mrb[0].mxu0
      %v883 = vadd.f32 %v438, %v882
      %v884 = vpop.f32.mrb[0].mxu0
      %885 = vdwg.mxu0
      %s886 = scalar_lea.vmem [#allocation2], 32
      %v887 = vld [vmem:[%s886] sm:$0xff]
      %v888 = vld [vmem:[%s886 + $0x8] sm:$0xff]
      %v889 = vsel %vm505, %v880, -inf
      %890 = vmax.xlane.f32.xlu0 %v889
      %v891 = vpop.xlane.xlu0 %890
      %v892 = vsel %vm505, %v883, -inf
      %893 = vmax.xlane.f32.xlu0 %v892
      %v894 = vpop.xlane.xlu0 %893
      %v895 = vmax.f32 %v887, %v891
      %v896 = vmax.f32 %v888, %v894
      %v897 = vsub.f32 %v887, %v895
      %v898 = vsub.f32 %v888, %v896
      %v899 = vmul.f32 %v897, 1.442695
      %v900 = vpow.pop %v899
      %v901 = vmul.f32 %v898, 1.442695
      %v902 = vpow.pop %v901
      %904 = vset.pattern.permute.xlu0 0
      %905 = vperm.xlu0 %904, %v895
      %v906 = vpop.permute.xlu0 %905
      %909 = vset.pattern.permute.xlu0 0
      %910 = vperm.xlu0 %909, %v896
      %v911 = vpop.permute.xlu0 %910
      %v913 = vsub.f32 %v880, %v906
      %v914 = vsub.f32 %v883, %v911
      %v915 = vmul.f32 %v913, 1.442695
      %v916 = vpow.pop %v915
      %v917 = vmul.f32 %v914, 1.442695
      %v918 = vpow.pop %v917
      %s919 = scalar_lea.vmem [#allocation3], 32
      %v920 = vld [vmem:[%s919] sm:$0xff]
      %v921 = vld [vmem:[%s919 + $0x8] sm:$0xff]
      %v922 = vmul.f32 %v900, %v920
      %v923 = vmul.f32 %v902, %v921
      %v924 = vsel %vm505, %v916, 0.0
      %925 = vadd.xlane.f32.xlu0 %v924
      %v926 = vpop.xlane.xlu0 %925
      %v927 = vsel %vm505, %v918, 0.0
      %928 = vadd.xlane.f32.xlu0 %v927
      %v929 = vpop.xlane.xlu0 %928
      %v930 = vadd.f32 %v922, %v926
      %v931 = vadd.f32 %v923, %v929
      %932 = vst.msk [vmem:[%s919] sm:$0xff] %vm548, %v930
      %933 = vst.msk [vmem:[%s919 + $0x8] sm:$0xff] %vm548, %v931
      %v934 = vld [vmem:[#allocation4] sm:$0xff]
      %v935 = vld [vmem:[#allocation4 + $0x8] sm:$0xff]
      %937 = vset.pattern.permute.xlu0 0
      %938 = vperm.xlu0 %937, %v900
      %v939 = vpop.permute.xlu0 %938
      %942 = vset.pattern.permute.xlu0 0
      %943 = vperm.xlu0 %942, %v902
      %v944 = vpop.permute.xlu0 %943
      %v946 = vmul.f32 %v939, %v934
      %v947 = vmul.f32 %v944, %v935
      %v948 = vpack.c.bf16 %v918, %v916
      %v951 = vunpack.c.l.b16 %v823
      %v952 = vunpack.c.l.b16 %v824
      %v953 = vpack.c.b16 %v952, %v951
      %954 = vrot.lane.b32.xlu0 %v953, 112
      %v955 = vpop.permute.xlu0 %954
      %v958 = vsel %vm505, %v948, 0
      %960 = vmatprep.subr.bf16.mxu0 0
      %961 = vmatpush1.bf16.msra.mxu0 %v955
      %962 = vmatprep.subr.bf16.mxu0 0
      %963 = vmatpush1.bf16.msra.mxu0 0
      %964 = vmatprep.subr.bf16.mxu0 0
      %965 = vmatpush1.bf16.msra.mxu0 0
      %966 = vmatprep.subr.bf16.mxu0 0
      %967 = vmatpush1.bf16.msra.mxu0 0
      %968 = vmatprep.subr.bf16.mxu0 0
      %969 = vmatpush1.bf16.msra.mxu0 0
      %970 = vmatprep.subr.bf16.mxu0 0
      %971 = vmatpush1.bf16.msra.mxu0 0
      %972 = vmatprep.subr.bf16.mxu0 0
      %973 = vmatpush1.bf16.msra.mxu0 0
      %974 = vmatprep.subr.bf16.mxu0 0
      %975 = vmatpush1.bf16.msra.mxu0 0
      %976 = vmatprep.subr.bf16.mxu0 0
      %977 = vmatpush1.bf16.msra.mxu0 0
      %978 = vmatprep.subr.bf16.mxu0 0
      %979 = vmatpush1.bf16.msra.mxu0 0
      %980 = vmatprep.subr.bf16.mxu0 0
      %981 = vmatpush1.bf16.msra.mxu0 0
      %982 = vmatprep.subr.bf16.mxu0 0
      %983 = vmatpush1.bf16.msra.mxu0 0
      %984 = vmatprep.subr.bf16.mxu0 0
      %985 = vmatpush1.bf16.msra.mxu0 0
      %986 = vmatprep.subr.bf16.mxu0 0
      %987 = vmatpush1.bf16.msra.mxu0 0
      %988 = vmatprep.subr.bf16.mxu0 0
      %989 = vmatpush1.bf16.msra.mxu0 0
      %990 = vmatprep.subr.bf16.mxu0 0
      %991 = vmatpush1.bf16.msra.mxu0 0
      %992 = vmatprep.mubr.bf16.mxu0 0
      %993 = vmatmul.mubr.bf16.gmra.mrb[0].mxu0 %v958
      %v994 = vpop.f32.mrb[0].mxu0
      %v995 = vadd.f32 0.0, %v994
      %v996 = vpop.f32.mrb[0].mxu0
      %v997 = vpop.f32.mrb[0].mxu0
      %v998 = vadd.f32 0.0, %v997
      %v999 = vpop.f32.mrb[0].mxu0
      %1000 = vdwg.mxu0
      %1003 = vrot.lane.b32.xlu0 %v995, 16
      %v1004 = vpop.permute.xlu0 %1003
      %1005 = vrot.lane.b32.xlu0 %v998, 16
      %v1006 = vpop.permute.xlu0 %1005
      %v1009 = vadd.f32 %v946, %v1004
      %v1010 = vadd.f32 %v947, %v1006
      %vm1011 = vcmask 195712
      %1012 = vst.msk [vmem:[#allocation4] sm:$0xff] %vm1011, %v1009
      %1013 = vst.msk [vmem:[#allocation4 + $0x8] sm:$0xff] %vm1011, %v1010
      %1014 = vst.msk [vmem:[%s886] sm:$0xff] %vm548, %v895
      %1015 = vst.msk [vmem:[%s886 + $0x8] sm:$0xff] %vm548, %v896
      %v1016 = vld [vmem:[%s342] sm:$0xf]
      %v1017 = vld [vmem:[%s342 + $0x4] sm:$0xf]
      %v1018 = vld [vmem:[%s355] sm:$0xf]
      %v1019 = vld [vmem:[%s355 + $0x4] sm:$0xf]
      %v1020 = vld [vmem:[%s368] sm:$0xf]
      %v1021 = vld [vmem:[%s368 + $0x4] sm:$0xf]
      %v1024 = vunpack.c.l.b16 %v1016
      %v1025 = vunpack.c.l.b16 %v1017
      %v1026 = vpack.c.b16 %v1025, %v1024
      %1027 = vrot.lane.b32.xlu0 %v1026, 104
      %v1028 = vpop.permute.xlu0 %1027
      %v1031 = vunpack.c.l.b16 %v1018
      %v1032 = vunpack.c.l.b16 %v1019
      %v1033 = vpack.c.b16 %v1032, %v1031
      %1034 = vrot.lane.b32.xlu0 %v1033, 104
      %v1035 = vpop.permute.xlu0 %1034
      %v1037 = vsel %vm455, %v1028, 0
      %v1040 = vsel %vm455, %v1035, 0
      %1042 = vmatprep.subr.bf16.mxu0 0
      %1043 = vmatpush1.bf16.xpose.msra.mxu0 %v1040
      %1044 = vmatprep.subr.bf16.mxu0 0
      %1045 = vmatpush1.bf16.xpose.msra.mxu0 0
      %1046 = vmatprep.subr.bf16.mxu0 0
      %1047 = vmatpush1.bf16.xpose.msra.mxu0 0
      %1048 = vmatprep.subr.bf16.mxu0 0
      %1049 = vmatpush1.bf16.xpose.msra.mxu0 0
      %1050 = vmatprep.subr.bf16.mxu0 0
      %1051 = vmatpush1.bf16.xpose.msra.mxu0 0
      %1052 = vmatprep.subr.bf16.mxu0 0
      %1053 = vmatpush1.bf16.xpose.msra.mxu0 0
      %1054 = vmatprep.subr.bf16.mxu0 0
      %1055 = vmatpush1.bf16.xpose.msra.mxu0 0
      %1056 = vmatprep.subr.bf16.mxu0 0
      %1057 = vmatpush1.bf16.xpose.msra.mxu0 0
      %1058 = vmatprep.subr.bf16.mxu0 0
      %1059 = vmatpush1.bf16.xpose.msra.mxu0 0
      %1060 = vmatprep.subr.bf16.mxu0 0
      %1061 = vmatpush1.bf16.xpose.msra.mxu0 0
      %1062 = vmatprep.subr.bf16.mxu0 0
      %1063 = vmatpush1.bf16.xpose.msra.mxu0 0
      %1064 = vmatprep.subr.bf16.mxu0 0
      %1065 = vmatpush1.bf16.xpose.msra.mxu0 0
      %1066 = vmatprep.subr.bf16.mxu0 0
      %1067 = vmatpush1.bf16.xpose.msra.mxu0 0
      %1068 = vmatprep.subr.bf16.mxu0 0
      %1069 = vmatpush1.bf16.xpose.msra.mxu0 0
      %1070 = vmatprep.subr.bf16.mxu0 0
      %1071 = vmatpush1.bf16.xpose.msra.mxu0 0
      %1072 = vmatprep.subr.bf16.mxu0 0
      %1073 = vmatpush1.bf16.xpose.msra.mxu0 0
      %1074 = vmatprep.mubr.bf16.mxu0 0
      %1075 = vmatmul.mubr.bf16.gmra.mrb[0].mxu0 %v1037
      %v1076 = vpop.f32.mrb[0].mxu0
      %v1077 = vadd.f32 %v437, %v1076
      %v1078 = vpop.f32.mrb[0].mxu0
      %v1079 = vpop.f32.mrb[0].mxu0
      %v1080 = vadd.f32 %v438, %v1079
      %v1081 = vpop.f32.mrb[0].mxu0
      %1082 = vdwg.mxu0
      %s1083 = scalar_lea.vmem [#allocation2], 48
      %v1084 = vld [vmem:[%s1083] sm:$0xff]
      %v1085 = vld [vmem:[%s1083 + $0x8] sm:$0xff]
      %v1086 = vsel %vm505, %v1077, -inf
      %1087 = vmax.xlane.f32.xlu0 %v1086
      %v1088 = vpop.xlane.xlu0 %1087
      %v1089 = vsel %vm505, %v1080, -inf
      %1090 = vmax.xlane.f32.xlu0 %v1089
      %v1091 = vpop.xlane.xlu0 %1090
      %v1092 = vmax.f32 %v1084, %v1088
      %v1093 = vmax.f32 %v1085, %v1091
      %v1094 = vsub.f32 %v1084, %v1092
      %v1095 = vsub.f32 %v1085, %v1093
      %v1096 = vmul.f32 %v1094, 1.442695
      %v1097 = vpow.pop %v1096
      %v1098 = vmul.f32 %v1095, 1.442695
      %v1099 = vpow.pop %v1098
      %1101 = vset.pattern.permute.xlu0 0
      %1102 = vperm.xlu0 %1101, %v1092
      %v1103 = vpop.permute.xlu0 %1102
      %1106 = vset.pattern.permute.xlu0 0
      %1107 = vperm.xlu0 %1106, %v1093
      %v1108 = vpop.permute.xlu0 %1107
      %v1110 = vsub.f32 %v1077, %v1103
      %v1111 = vsub.f32 %v1080, %v1108
      %v1112 = vmul.f32 %v1110, 1.442695
      %v1113 = vpow.pop %v1112
      %v1114 = vmul.f32 %v1111, 1.442695
      %v1115 = vpow.pop %v1114
      %s1116 = scalar_lea.vmem [#allocation3], 48
      %v1117 = vld [vmem:[%s1116] sm:$0xff]
      %v1118 = vld [vmem:[%s1116 + $0x8] sm:$0xff]
      %v1119 = vmul.f32 %v1097, %v1117
      %v1120 = vmul.f32 %v1099, %v1118
      %v1121 = vsel %vm505, %v1113, 0.0
      %1122 = vadd.xlane.f32.xlu0 %v1121
      %v1123 = vpop.xlane.xlu0 %1122
      %v1124 = vsel %vm505, %v1115, 0.0
      %1125 = vadd.xlane.f32.xlu0 %v1124
      %v1126 = vpop.xlane.xlu0 %1125
      %v1127 = vadd.f32 %v1119, %v1123
      %v1128 = vadd.f32 %v1120, %v1126
      %1129 = vst.msk [vmem:[%s1116] sm:$0xff] %vm548, %v1127
      %1130 = vst.msk [vmem:[%s1116 + $0x8] sm:$0xff] %vm548, %v1128
      %v1131 = vld [vmem:[#allocation4] sm:$0xff]
      %v1132 = vld [vmem:[#allocation4 + $0x8] sm:$0xff]
      %1134 = vset.pattern.permute.xlu0 0
      %1135 = vperm.xlu0 %1134, %v1097
      %v1136 = vpop.permute.xlu0 %1135
      %1139 = vset.pattern.permute.xlu0 0
      %1140 = vperm.xlu0 %1139, %v1099
      %v1141 = vpop.permute.xlu0 %1140
      %v1143 = vmul.f32 %v1136, %v1131
      %v1144 = vmul.f32 %v1141, %v1132
      %v1145 = vpack.c.bf16 %v1115, %v1113
      %v1148 = vunpack.c.l.b16 %v1020
      %v1149 = vunpack.c.l.b16 %v1021
      %v1150 = vpack.c.b16 %v1149, %v1148
      %1151 = vrot.lane.b32.xlu0 %v1150, 104
      %v1152 = vpop.permute.xlu0 %1151
      %v1155 = vsel %vm505, %v1145, 0
      %1157 = vmatprep.subr.bf16.mxu0 0
      %1158 = vmatpush1.bf16.msra.mxu0 %v1152
      %1159 = vmatprep.subr.bf16.mxu0 0
      %1160 = vmatpush1.bf16.msra.mxu0 0
      %1161 = vmatprep.subr.bf16.mxu0 0
      %1162 = vmatpush1.bf16.msra.mxu0 0
      %1163 = vmatprep.subr.bf16.mxu0 0
      %1164 = vmatpush1.bf16.msra.mxu0 0
      %1165 = vmatprep.subr.bf16.mxu0 0
      %1166 = vmatpush1.bf16.msra.mxu0 0
      %1167 = vmatprep.subr.bf16.mxu0 0
      %1168 = vmatpush1.bf16.msra.mxu0 0
      %1169 = vmatprep.subr.bf16.mxu0 0
      %1170 = vmatpush1.bf16.msra.mxu0 0
      %1171 = vmatprep.subr.bf16.mxu0 0
      %1172 = vmatpush1.bf16.msra.mxu0 0
      %1173 = vmatprep.subr.bf16.mxu0 0
      %1174 = vmatpush1.bf16.msra.mxu0 0
      %1175 = vmatprep.subr.bf16.mxu0 0
      %1176 = vmatpush1.bf16.msra.mxu0 0
      %1177 = vmatprep.subr.bf16.mxu0 0
      %1178 = vmatpush1.bf16.msra.mxu0 0
      %1179 = vmatprep.subr.bf16.mxu0 0
      %1180 = vmatpush1.bf16.msra.mxu0 0
      %1181 = vmatprep.subr.bf16.mxu0 0
      %1182 = vmatpush1.bf16.msra.mxu0 0
      %1183 = vmatprep.subr.bf16.mxu0 0
      %1184 = vmatpush1.bf16.msra.mxu0 0
      %1185 = vmatprep.subr.bf16.mxu0 0
      %1186 = vmatpush1.bf16.msra.mxu0 0
      %1187 = vmatprep.subr.bf16.mxu0 0
      %1188 = vmatpush1.bf16.msra.mxu0 0
      %1189 = vmatprep.mubr.bf16.mxu0 0
      %1190 = vmatmul.mubr.bf16.gmra.mrb[0].mxu0 %v1155
      %v1191 = vpop.f32.mrb[0].mxu0
      %v1192 = vadd.f32 0.0, %v1191
      %v1193 = vpop.f32.mrb[0].mxu0
      %v1194 = vpop.f32.mrb[0].mxu0
      %v1195 = vadd.f32 0.0, %v1194
      %v1196 = vpop.f32.mrb[0].mxu0
      %1197 = vdwg.mxu0
      %1200 = vrot.lane.b32.xlu0 %v1192, 24
      %v1201 = vpop.permute.xlu0 %1200
      %1202 = vrot.lane.b32.xlu0 %v1195, 24
      %v1203 = vpop.permute.xlu0 %1202
      %v1206 = vadd.f32 %v1143, %v1201
      %v1207 = vadd.f32 %v1144, %v1203
      %vm1208 = vcmask 261312
      %1209 = vst.msk [vmem:[#allocation4] sm:$0xff] %vm1208, %v1206
      %1210 = vst.msk [vmem:[#allocation4 + $0x8] sm:$0xff] %vm1208, %v1207
      %1211 = vst.msk [vmem:[%s1083] sm:$0xff] %vm548, %v1092
      %1212 = vst.msk [vmem:[%s1083 + $0x8] sm:$0xff] %vm548, %v1093
      // Predicated region
      $region41: #{transformer_forward.50} parent=35 // pred_check
        %p1213 = pneg %p390
      $region42: #{transformer_forward.50} parent=35 // pred_check_branch
        %1215 = sbr.rel (%p1213) target = $region44
      $region43: #{transformer_forward.50} parent=35 // pred_region
        %v1216 = vld [vmem:[#allocation4] sm:$0xff]
        %v1217 = vld [vmem:[#allocation4 + $0x8] sm:$0xff]
        %v1218 = vld [vmem:[#allocation3] sm:$0xff]
        %v1219 = vld [vmem:[#allocation3 + $0x8] sm:$0xff]
        %1221 = vset.pattern.permute.xlu0 0
        %1222 = vperm.xlu0 %1221, %v1218
        %v1223 = vpop.permute.xlu0 %1222
        %1226 = vset.pattern.permute.xlu0 0
        %1227 = vperm.xlu0 %1226, %v1219
        %v1228 = vpop.permute.xlu0 %1227
        %v1230 = vrcp.pop %v1223
        %v1231 = vmul.f32 %v1216, %v1230
        %v1232 = vrcp.pop %v1228
        %v1233 = vmul.f32 %v1217, %v1232
        %v1234 = vpack.c.bf16 %v1233, %v1231
        %v1236 = vunpack.c.l.b16 %v1234
        %v1237 = vunpack.c.h.b16 %v1234
        %v1238 = vpack.c.b16 %v1236, %v1236
        %v1239 = vpack.c.b16 %v1237, %v1237
        %vm1242 = vcmask 60416
        %1243 = vst.msk [vmem:[%s387] sm:$0xf] %vm1242, %v1238
        %1244 = vst.msk [vmem:[%s387 + $0x4] sm:$0xf] %vm1242, %v1239
        %v1245 = vld [vmem:[#allocation4] sm:$0xff]
        %v1246 = vld [vmem:[#allocation4 + $0x8] sm:$0xff]
        %v1247 = vld [vmem:[%s722] sm:$0xff]
        %v1248 = vld [vmem:[%s722 + $0x8] sm:$0xff]
        %1250 = vset.pattern.permute.xlu0 0
        %1251 = vperm.xlu0 %1250, %v1247
        %v1252 = vpop.permute.xlu0 %1251
        %1255 = vset.pattern.permute.xlu0 0
        %1256 = vperm.xlu0 %1255, %v1248
        %v1257 = vpop.permute.xlu0 %1256
        %v1259 = vrcp.pop %v1252
        %v1260 = vmul.f32 %v1245, %v1259
        %v1261 = vrcp.pop %v1257
        %v1262 = vmul.f32 %v1246, %v1261
        %v1263 = vpack.c.bf16 %v1262, %v1260
        %v1265 = vunpack.c.l.b16 %v1263
        %v1266 = vunpack.c.h.b16 %v1263
        %v1267 = vpack.c.b16 %v1265, %v1265
        %v1268 = vpack.c.b16 %v1266, %v1266
        %vm1271 = vcmask 126016
        %1272 = vst.msk [vmem:[%s387] sm:$0xf] %vm1271, %v1267
        %1273 = vst.msk [vmem:[%s387 + $0x4] sm:$0xf] %vm1271, %v1268
        %v1274 = vld [vmem:[#allocation4] sm:$0xff]
        %v1275 = vld [vmem:[#allocation4 + $0x8] sm:$0xff]
        %v1276 = vld [vmem:[%s919] sm:$0xff]
        %v1277 = vld [vmem:[%s919 + $0x8] sm:$0xff]
        %1279 = vset.pattern.permute.xlu0 0
        %1280 = vperm.xlu0 %1279, %v1276
        %v1281 = vpop.permute.xlu0 %1280
        %1284 = vset.pattern.permute.xlu0 0
        %1285 = vperm.xlu0 %1284, %v1277
        %v1286 = vpop.permute.xlu0 %1285
        %v1288 = vrcp.pop %v1281
        %v1289 = vmul.f32 %v1274, %v1288
        %v1290 = vrcp.pop %v1286
        %v1291 = vmul.f32 %v1275, %v1290
        %v1292 = vpack.c.bf16 %v1291, %v1289
        %v1294 = vunpack.c.l.b16 %v1292
        %v1295 = vunpack.c.h.b16 %v1292
        %v1296 = vpack.c.b16 %v1294, %v1294
        %v1297 = vpack.c.b16 %v1295, %v1295
        %vm1300 = vcmask 191616
        %1301 = vst.msk [vmem:[%s387] sm:$0xf] %vm1300, %v1296
        %1302 = vst.msk [vmem:[%s387 + $0x4] sm:$0xf] %vm1300, %v1297
        %v1303 = vld [vmem:[#allocation4] sm:$0xff]
        %v1304 = vld [vmem:[#allocation4 + $0x8] sm:$0xff]
        %v1305 = vld [vmem:[%s1116] sm:$0xff]
        %v1306 = vld [vmem:[%s1116 + $0x8] sm:$0xff]
        %1308 = vset.pattern.permute.xlu0 0
        %1309 = vperm.xlu0 %1308, %v1305
        %v1310 = vpop.permute.xlu0 %1309
        %1313 = vset.pattern.permute.xlu0 0
        %1314 = vperm.xlu0 %1313, %v1306
        %v1315 = vpop.permute.xlu0 %1314
        %v1317 = vrcp.pop %v1310
        %v1318 = vmul.f32 %v1303, %v1317
        %v1319 = vrcp.pop %v1315
        %v1320 = vmul.f32 %v1304, %v1319
        %v1321 = vpack.c.bf16 %v1320, %v1318
        %v1323 = vunpack.c.l.b16 %v1321
        %v1324 = vunpack.c.h.b16 %v1321
        %v1325 = vpack.c.b16 %v1323, %v1323
        %v1326 = vpack.c.b16 %v1324, %v1324
        %vm1329 = vcmask 257216
        %1330 = vst.msk [vmem:[%s387] sm:$0xf] %vm1329, %v1325
        %1331 = vst.msk [vmem:[%s387 + $0x4] sm:$0xf] %vm1329, %v1326
      $region44: #{transformer_forward.50} parent=35 // pred_fallthru
        _
      %s1332 = smul.u32 2, %s23
      %p1333 = scmp.lt.s32.totalorder %s21, 1
      %s1334 = scalar_select %p1333, %s21, 1
      %p1335 = scmp.lt.s32.totalorder %s1332, 1
      %s1336 = scalar_select %p1335, %s1332, 1
      %p1337 = scmp.lt.s32.totalorder %s22, 0
      %s1338 = scalar_select %p1337, %s22, 0
      %s1339 = sadd.s32 %s1338, %s1336
      %s1340 = smul.addr %s1334, 2
      %s1341 = sadd.s32 %s1339, %s1340
      %s1342 = smul.addr %s1341, 4
      %s1343 = scalar_lea.vmem %s4, %s1342
      // Predicated region
      $region45: #{transformer_forward.50} parent=35 // pred_check
        %p1344 = pneg %p181
      $region46: #{transformer_forward.50} parent=35 // pred_check_branch
        %1346 = sbr.rel (%p1344) target = $region48
      $region47: #{transformer_forward.50} parent=35 // pred_region
        %s1347 = smul.u32 2, %s23
      $region48: #{transformer_forward.50} parent=35 // pred_fallthru
        _
    $region36: #{transformer_forward.50} parent=5 // pred_fallthru
      _
    %p1348 = scmp.le.s32.totalorder 2, %s10
    // Predicated region
    $region49: #{transformer_forward.50} parent=5 // pred_check
      %p1349 = pneg %p1348
    $region50: #{transformer_forward.50} parent=5 // pred_check_branch
      %1351 = sbr.rel (%p1349) target = $region52
    $region51: #{transformer_forward.50} parent=5 // pred_region
      %s1352 = ssub.s32 %s10, 2
      // Predicated region
      $region53: #{transformer_forward.50} parent=51 // pred_check
        %p1353 = pneg %p187
      $region54: #{transformer_forward.50} parent=51 // pred_check_branch
        %1355 = sbr.rel (%p1353) target = $region56
      $region55: #{transformer_forward.50} parent=51 // pred_region
        %s1356 = smul.u32 2, %s27
        %p1357 = scmp.lt.s32.totalorder %s25, 1
        %s1358 = scalar_select %p1357, %s25, 1
        %p1359 = scmp.lt.s32.totalorder %s1356, 1
        %s1360 = scalar_select %p1359, %s1356, 1
        %p1361 = scmp.lt.s32.totalorder %s26, 0
        %s1362 = scalar_select %p1361, %s26, 0
        %s1363 = sadd.s32 %s1362, %s1360
        %s1364 = smul.addr %s1358, 2
        %s1365 = sadd.s32 %s1363, %s1364
        %s1366 = smul.addr %s1365, 4
        %s1367 = scalar_lea.vmem %s4, %s1366
      $region56: #{transformer_forward.50} parent=51 // pred_fallthru
        _
    $region52: #{transformer_forward.50} parent=5 // pred_fallthru
      _
  $region6: #{transformer_forward.50} parent=0 // loop_footer
    %s14 = sadd.s32 1, %s10
  $region7: #{transformer_forward.50} parent=0 // loop_footer_branch
    %9 = sbr.rel target = $region3
  $region8: #{transformer_forward.50} parent=0 // loop_exit
    _

// kernel: transformer_forward.40
$region0: #{transformer_forward.40}
  #allocation0 [shape = 'u32[]', space=smem, size = 0x4, offset = 0x4, fixed_abs, tag = 'smem constant byte address 0x4 - core index']
  #allocation1 [shape = 'u32[144,128]{1,0:T(1,128)}', space=vmem, size = 0x12000, scoped, tag = 'internal scratch']
  #allocation2 [shape = 'f32[32,32]{1,0:T(8,128)}', space=vmem, size = 0x4000, scoped, tag = 'scratch operand']
  %s0 = inlined_call_operand.vmem [shape: bf16[32,32], index: 0, kind: input, shape index: {}, may-alias: {0,5}]
  %s1 = inlined_call_operand.vmem [shape: bf16[32,64], index: 1, kind: input, shape index: {}]
  %s2 = inlined_call_operand.vmem [shape: f32[1,64], index: 2, kind: input, shape index: {}]
  %s3 = inlined_call_operand.vmem [shape: bf16[64,32], index: 3, kind: input, shape index: {}]
  %s4 = inlined_call_operand.vmem [shape: f32[1,32], index: 4, kind: input, shape index: {}]
  %s5 = inlined_call_operand.vmem [shape: bf16[32,32], index: 5, kind: input, shape index: {}, may-alias: {0,5}]
  %s6 = inlined_call_operand.vmem [shape: f32[1,32], index: 6, kind: input, shape index: {}]
  %s7 = inlined_call_operand.vmem [shape: f32[1,32], index: 7, kind: input, shape index: {}]
  %s8 = inlined_call_operand.vmem [shape: bf16[32,32], index: 8, kind: output, shape index: {}]
  %s9 = sld [smem:[#allocation0]]
  $region50: #{transformer_forward.40} parent=0
    _
  %s11 = ssub.s32 1, %s9
  %s12 = scalar_select 0, %s11, %s9
  // Predicated region
  $region2: #{transformer_forward.40} parent=0 // pred_check
    _
  $region3: #{transformer_forward.40} parent=0 // pred_check_branch
    %14 = sbr.rel (0) target = $region5
  $region4: #{transformer_forward.40} parent=0 // pred_region
    _
  $region5: #{transformer_forward.40} parent=0 // pred_fallthru
    _
  // Predicated region
  $region6: #{transformer_forward.40} parent=0 // pred_check
    _
  $region7: #{transformer_forward.40} parent=0 // pred_check_branch
    %16 = sbr.rel (0) target = $region9
  $region8: #{transformer_forward.40} parent=0 // pred_region
    _
  $region9: #{transformer_forward.40} parent=0 // pred_fallthru
    _
  // Predicated region
  $region10: #{transformer_forward.40} parent=0 // pred_check
    _
  $region11: #{transformer_forward.40} parent=0 // pred_check_branch
    %18 = sbr.rel (0) target = $region13
  $region12: #{transformer_forward.40} parent=0 // pred_region
    _
  $region13: #{transformer_forward.40} parent=0 // pred_fallthru
    _
  // Predicated region
  $region14: #{transformer_forward.40} parent=0 // pred_check
    _
  $region15: #{transformer_forward.40} parent=0 // pred_check_branch
    %20 = sbr.rel (0) target = $region17
  $region16: #{transformer_forward.40} parent=0 // pred_region
    _
  $region17: #{transformer_forward.40} parent=0 // pred_fallthru
    _
  // Predicated region
  $region18: #{transformer_forward.40} parent=0 // pred_check
    _
  $region19: #{transformer_forward.40} parent=0 // pred_check_branch
    %22 = sbr.rel (0) target = $region21
  $region20: #{transformer_forward.40} parent=0 // pred_region
    _
  $region21: #{transformer_forward.40} parent=0 // pred_fallthru
    _
  // Predicated region
  $region22: #{transformer_forward.40} parent=0 // pred_check
    _
  $region23: #{transformer_forward.40} parent=0 // pred_check_branch
    %24 = sbr.rel (0) target = $region25
  $region24: #{transformer_forward.40} parent=0 // pred_region
    _
  $region25: #{transformer_forward.40} parent=0 // pred_fallthru
    _
  // Predicated region
  $region26: #{transformer_forward.40} parent=0 // pred_check
    _
  $region27: #{transformer_forward.40} parent=0 // pred_check_branch
    %26 = sbr.rel (0) target = $region29
  $region28: #{transformer_forward.40} parent=0 // pred_region
    _
  $region29: #{transformer_forward.40} parent=0 // pred_fallthru
    _
  // Predicated region
  $region30: #{transformer_forward.40} parent=0 // pred_check
    _
  $region31: #{transformer_forward.40} parent=0 // pred_check_branch
    %28 = sbr.rel (0) target = $region33
  $region32: #{transformer_forward.40} parent=0 // pred_region
    _
  $region33: #{transformer_forward.40} parent=0 // pred_fallthru
    _
  %p30 = scmp.eq.s32.totalorder 0, 0
  // Predicated region
  $region34: #{transformer_forward.40} parent=0 // pred_check
    %p31 = pneg %p30
  $region35: #{transformer_forward.40} parent=0 // pred_check_branch
    %33 = sbr.rel (%p31) target = $region37
  $region36: #{transformer_forward.40} parent=0 // pred_region
    %vm34 = vcmask 261120
    %35 = vst.msk [vmem:[#allocation2] sm:$0xff] %vm34, 0.0
    %36 = vst.msk [vmem:[#allocation2 + $0x8] sm:$0xff] %vm34, 0.0
    %37 = vst.msk [vmem:[#allocation2 + $0x10] sm:$0xff] %vm34, 0.0
    %38 = vst.msk [vmem:[#allocation2 + $0x18] sm:$0xff] %vm34, 0.0
  $region37: #{transformer_forward.40} parent=0 // pred_fallthru
    _
  %v39 = vld [vmem:[%s0] sm:$0xf]
  %v40 = vld [vmem:[%s0 + $0x4] sm:$0xf]
  %v41 = vld [vmem:[%s0 + $0x8] sm:$0xf]
  %v42 = vld [vmem:[%s0 + $0xc] sm:$0xf]
  %v43 = vld [vmem:[%s1] sm:$0xf]
  %v44 = vld [vmem:[%s1 + $0x4] sm:$0xf]
  %v45 = vld [vmem:[%s1 + $0x8] sm:$0xf]
  %v46 = vld [vmem:[%s1 + $0xc] sm:$0xf]
  %v47 = vld [vmem:[%s2] sm:$0x1]
  %v49 = vlaneseq
  %v50 = vshrl.u32 %v49, 7
  %v51 = vsub.s32 0, %v50
  %v52 = vrot.slane %v47, %v51
  %v58 = vunpack.c.l.b16 %v39
  %v59 = vunpack.c.l.b16 %v40
  %v60 = vunpack.c.l.b16 %v41
  %v61 = vunpack.c.l.b16 %v42
  %v62 = vpack.c.b16 %v59, %v58
  %v63 = vpack.c.b16 %v61, %v60
  %v68 = vunpack.c.l.b16 %v43
  %v69 = vunpack.c.l.b16 %v44
  %v70 = vunpack.c.l.b16 %v45
  %v71 = vunpack.c.l.b16 %v46
  %v72 = vpack.c.b16 %v69, %v68
  %v73 = vpack.c.b16 %v71, %v70
  %vm76 = vcmask 261120
  %v78 = vsel %vm76, %v62, 0
  %v81 = vsel %vm76, %v63, 0
  %83 = vmatprep.subr.bf16.mxu0 0
  %84 = vmatpush1.bf16.msra.mxu0 %v72
  %85 = vmatprep.subr.bf16.mxu0 0
  %86 = vmatpush1.bf16.msra.mxu0 %v73
  %87 = vmatprep.subr.bf16.mxu0 0
  %88 = vmatpush1.bf16.msra.mxu0 0
  %89 = vmatprep.subr.bf16.mxu0 0
  %90 = vmatpush1.bf16.msra.mxu0 0
  %91 = vmatprep.subr.bf16.mxu0 0
  %92 = vmatpush1.bf16.msra.mxu0 0
  %93 = vmatprep.subr.bf16.mxu0 0
  %94 = vmatpush1.bf16.msra.mxu0 0
  %95 = vmatprep.subr.bf16.mxu0 0
  %96 = vmatpush1.bf16.msra.mxu0 0
  %97 = vmatprep.subr.bf16.mxu0 0
  %98 = vmatpush1.bf16.msra.mxu0 0
  %99 = vmatprep.subr.bf16.mxu0 0
  %100 = vmatpush1.bf16.msra.mxu0 0
  %101 = vmatprep.subr.bf16.mxu0 0
  %102 = vmatpush1.bf16.msra.mxu0 0
  %103 = vmatprep.subr.bf16.mxu0 0
  %104 = vmatpush1.bf16.msra.mxu0 0
  %105 = vmatprep.subr.bf16.mxu0 0
  %106 = vmatpush1.bf16.msra.mxu0 0
  %107 = vmatprep.subr.bf16.mxu0 0
  %108 = vmatpush1.bf16.msra.mxu0 0
  %109 = vmatprep.subr.bf16.mxu0 0
  %110 = vmatpush1.bf16.msra.mxu0 0
  %111 = vmatprep.subr.bf16.mxu0 0
  %112 = vmatpush1.bf16.msra.mxu0 0
  %113 = vmatprep.subr.bf16.mxu0 0
  %114 = vmatpush1.bf16.msra.mxu0 0
  %115 = vmatprep.mubr.bf16.mxu0 0
  %116 = vmatmul.mubr.bf16.gmra.mrb[0].mxu0 %v78
  %v117 = vpop.f32.mrb[0].mxu0
  %v118 = vadd.f32 %v52, %v117
  %v119 = vpop.f32.mrb[0].mxu0
  %v120 = vpop.f32.mrb[0].mxu0
  %v121 = vadd.f32 %v52, %v120
  %v122 = vpop.f32.mrb[0].mxu0
  %123 = vmatprep.mubr.bf16.mxu0 0
  %124 = vmatmul.mubr.bf16.gmra.mrb[0].mxu0 %v81
  %v125 = vpop.f32.mrb[0].mxu0
  %v126 = vadd.f32 %v52, %v125
  %v127 = vpop.f32.mrb[0].mxu0
  %v128 = vpop.f32.mrb[0].mxu0
  %v129 = vadd.f32 %v52, %v128
  %v130 = vpop.f32.mrb[0].mxu0
  %131 = vdwg.mxu0
  %v132 = vmax.f32 %v118, 0.0
  %v133 = vmax.f32 %v121, 0.0
  %v134 = vmax.f32 %v126, 0.0
  %v135 = vmax.f32 %v129, 0.0
  %v136 = vld [vmem:[#allocation2] sm:$0xff]
  %v137 = vld [vmem:[#allocation2 + $0x8] sm:$0xff]
  %v138 = vld [vmem:[#allocation2 + $0x10] sm:$0xff]
  %v139 = vld [vmem:[#allocation2 + $0x18] sm:$0xff]
  %v140 = vpack.c.bf16 %v133, %v132
  %v141 = vpack.c.bf16 %v135, %v134
  %v142 = vld [vmem:[%s3] sm:$0xf]
  %v143 = vld [vmem:[%s3 + $0x4] sm:$0xf]
  %v144 = vld [vmem:[%s3 + $0x8] sm:$0xf]
  %v145 = vld [vmem:[%s3 + $0xc] sm:$0xf]
  %v146 = vld [vmem:[%s3 + $0x10] sm:$0xf]
  %v147 = vld [vmem:[%s3 + $0x14] sm:$0xf]
  %v148 = vld [vmem:[%s3 + $0x18] sm:$0xf]
  %v149 = vld [vmem:[%s3 + $0x1c] sm:$0xf]
  %v158 = vunpack.c.l.b16 %v142
  %v159 = vunpack.c.l.b16 %v143
  %v160 = vunpack.c.l.b16 %v144
  %v161 = vunpack.c.l.b16 %v145
  %v162 = vunpack.c.l.b16 %v146
  %v163 = vunpack.c.l.b16 %v147
  %v164 = vunpack.c.l.b16 %v148
  %v165 = vunpack.c.l.b16 %v149
  %v166 = vpack.c.b16 %v159, %v158
  %v167 = vpack.c.b16 %v161, %v160
  %v168 = vpack.c.b16 %v163, %v162
  %v169 = vpack.c.b16 %v165, %v164
  %vm174 = vcmask 523264
  %v176 = vsel %vm174, %v140, 0
  %v179 = vsel %vm174, %v141, 0
  %181 = vmatprep.subr.bf16.mxu0 0
  %182 = vmatpush1.bf16.msra.mxu0 %v166
  %183 = vmatprep.subr.bf16.mxu0 0
  %184 = vmatpush1.bf16.msra.mxu0 %v167
  %185 = vmatprep.subr.bf16.mxu0 0
  %186 = vmatpush1.bf16.msra.mxu0 %v168
  %187 = vmatprep.subr.bf16.mxu0 0
  %188 = vmatpush1.bf16.msra.mxu0 %v169
  %189 = vmatprep.subr.bf16.mxu0 0
  %190 = vmatpush1.bf16.msra.mxu0 0
  %191 = vmatprep.subr.bf16.mxu0 0
  %192 = vmatpush1.bf16.msra.mxu0 0
  %193 = vmatprep.subr.bf16.mxu0 0
  %194 = vmatpush1.bf16.msra.mxu0 0
  %195 = vmatprep.subr.bf16.mxu0 0
  %196 = vmatpush1.bf16.msra.mxu0 0
  %197 = vmatprep.subr.bf16.mxu0 0
  %198 = vmatpush1.bf16.msra.mxu0 0
  %199 = vmatprep.subr.bf16.mxu0 0
  %200 = vmatpush1.bf16.msra.mxu0 0
  %201 = vmatprep.subr.bf16.mxu0 0
  %202 = vmatpush1.bf16.msra.mxu0 0
  %203 = vmatprep.subr.bf16.mxu0 0
  %204 = vmatpush1.bf16.msra.mxu0 0
  %205 = vmatprep.subr.bf16.mxu0 0
  %206 = vmatpush1.bf16.msra.mxu0 0
  %207 = vmatprep.subr.bf16.mxu0 0
  %208 = vmatpush1.bf16.msra.mxu0 0
  %209 = vmatprep.subr.bf16.mxu0 0
  %210 = vmatpush1.bf16.msra.mxu0 0
  %211 = vmatprep.subr.bf16.mxu0 0
  %212 = vmatpush1.bf16.msra.mxu0 0
  %213 = vmatprep.mubr.bf16.mxu0 0
  %214 = vmatmul.mubr.bf16.gmra.mrb[0].mxu0 %v176
  %v215 = vpop.f32.mrb[0].mxu0
  %v216 = vadd.f32 0.0, %v215
  %v217 = vpop.f32.mrb[0].mxu0
  %v218 = vpop.f32.mrb[0].mxu0
  %v219 = vadd.f32 0.0, %v218
  %v220 = vpop.f32.mrb[0].mxu0
  %221 = vmatprep.mubr.bf16.mxu0 0
  %222 = vmatmul.mubr.bf16.gmra.mrb[0].mxu0 %v179
  %v223 = vpop.f32.mrb[0].mxu0
  %v224 = vadd.f32 0.0, %v223
  %v225 = vpop.f32.mrb[0].mxu0
  %v226 = vpop.f32.mrb[0].mxu0
  %v227 = vadd.f32 0.0, %v226
  %v228 = vpop.f32.mrb[0].mxu0
  %229 = vdwg.mxu0
  %v230 = vadd.f32 %v136, %v216
  %v231 = vadd.f32 %v137, %v219
  %v232 = vadd.f32 %v138, %v224
  %v233 = vadd.f32 %v139, %v227
  %234 = vst.msk [vmem:[#allocation2] sm:$0xff] %vm76, %v230
  %235 = vst.msk [vmem:[#allocation2 + $0x8] sm:$0xff] %vm76, %v231
  %236 = vst.msk [vmem:[#allocation2 + $0x10] sm:$0xff] %vm76, %v232
  %237 = vst.msk [vmem:[#allocation2 + $0x18] sm:$0xff] %vm76, %v233
  // Predicated region
  $region38: #{transformer_forward.40} parent=0 // pred_check
    %p238 = pneg %p30
  $region39: #{transformer_forward.40} parent=0 // pred_check_branch
    %240 = sbr.rel (%p238) target = $region41
  $region40: #{transformer_forward.40} parent=0 // pred_region
    %v241 = vld [vmem:[#allocation2] sm:$0xff]
    %v242 = vld [vmem:[#allocation2 + $0x8] sm:$0xff]
    %v243 = vld [vmem:[#allocation2 + $0x10] sm:$0xff]
    %v244 = vld [vmem:[#allocation2 + $0x18] sm:$0xff]
    %v245 = vld [vmem:[%s4] sm:$0x1]
    %v247 = vlaneseq
    %v248 = vshrl.u32 %v247, 7
    %v249 = vsub.s32 0, %v248
    %v250 = vrot.slane %v245, %v249
    %v252 = vadd.f32 %v241, %v250
    %v253 = vadd.f32 %v242, %v250
    %v254 = vadd.f32 %v243, %v250
    %v255 = vadd.f32 %v244, %v250
    %v256 = vld [vmem:[%s5] sm:$0xf]
    %v257 = vld [vmem:[%s5 + $0x4] sm:$0xf]
    %v258 = vld [vmem:[%s5 + $0x8] sm:$0xf]
    %v259 = vld [vmem:[%s5 + $0xc] sm:$0xf]
    %v260 = vunpack.c.l.bf16 %v256
    %v261 = vunpack.c.l.bf16 %v257
    %v262 = vunpack.c.l.bf16 %v258
    %v263 = vunpack.c.l.bf16 %v259
    %v264 = vadd.f32 %v252, %v260
    %v265 = vadd.f32 %v253, %v261
    %v266 = vadd.f32 %v254, %v262
    %v267 = vadd.f32 %v255, %v263
    %v268 = vsel %vm76, %v264, 0.0
    %269 = vadd.xlane.f32.xlu0 %v268
    %v270 = vpop.xlane.xlu0 %269
    %v271 = vsel %vm76, %v265, 0.0
    %272 = vadd.xlane.f32.xlu0 %v271
    %v273 = vpop.xlane.xlu0 %272
    %v274 = vsel %vm76, %v266, 0.0
    %275 = vadd.xlane.f32.xlu0 %v274
    %v276 = vpop.xlane.xlu0 %275
    %v277 = vsel %vm76, %v267, 0.0
    %278 = vadd.xlane.f32.xlu0 %v277
    %v279 = vpop.xlane.xlu0 %278
    %v280 = vrcp.pop 32.0
    %v281 = vmul.f32 %v270, %v280
    %v282 = vmul.f32 %v273, %v280
    %v283 = vmul.f32 %v276, %v280
    %v284 = vmul.f32 %v279, %v280
    %v285 = vsub.f32 %v264, %v281
    %v286 = vsub.f32 %v265, %v282
    %v287 = vsub.f32 %v266, %v283
    %v288 = vsub.f32 %v267, %v284
    %v289 = vmul.f32 %v285, %v285
    %v290 = vmul.f32 %v286, %v286
    %v291 = vmul.f32 %v287, %v287
    %v292 = vmul.f32 %v288, %v288
    %v293 = vsel %vm76, %v289, 0.0
    %294 = vadd.xlane.f32.xlu0 %v293
    %v295 = vpop.xlane.xlu0 %294
    %v296 = vsel %vm76, %v290, 0.0
    %297 = vadd.xlane.f32.xlu0 %v296
    %v298 = vpop.xlane.xlu0 %297
    %v299 = vsel %vm76, %v291, 0.0
    %300 = vadd.xlane.f32.xlu0 %v299
    %v301 = vpop.xlane.xlu0 %300
    %v302 = vsel %vm76, %v292, 0.0
    %303 = vadd.xlane.f32.xlu0 %v302
    %v304 = vpop.xlane.xlu0 %303
    %v305 = vmul.f32 %v295, %v280
    %v306 = vmul.f32 %v298, %v280
    %v307 = vmul.f32 %v301, %v280
    %v308 = vmul.f32 %v304, %v280
    %v309 = vadd.f32 %v305, 1e-05
    %v310 = vadd.f32 %v306, 1e-05
    %v311 = vadd.f32 %v307, 1e-05
    %v312 = vadd.f32 %v308, 1e-05
    %v313 = vrsqrt.pop %v309
    %v314 = vrsqrt.pop %v310
    %v315 = vrsqrt.pop %v311
    %v316 = vrsqrt.pop %v312
    %v317 = vmul.f32 %v285, %v313
    %v318 = vmul.f32 %v286, %v314
    %v319 = vmul.f32 %v287, %v315
    %v320 = vmul.f32 %v288, %v316
    %v321 = vld [vmem:[%s6] sm:$0x1]
    %v323 = vlaneseq
    %v324 = vshrl.u32 %v323, 7
    %v325 = vsub.s32 0, %v324
    %v326 = vrot.slane %v321, %v325
    %v328 = vmul.f32 %v317, %v326
    %v329 = vmul.f32 %v318, %v326
    %v330 = vmul.f32 %v319, %v326
    %v331 = vmul.f32 %v320, %v326
    %v332 = vld [vmem:[%s7] sm:$0x1]
    %v334 = vlaneseq
    %v335 = vshrl.u32 %v334, 7
    %v336 = vsub.s32 0, %v335
    %v337 = vrot.slane %v332, %v336
    %v339 = vadd.f32 %v328, %v337
    %v340 = vadd.f32 %v329, %v337
    %v341 = vadd.f32 %v330, %v337
    %v342 = vadd.f32 %v331, %v337
    %v343 = vpack.c.bf16 %v340, %v339
    %v344 = vpack.c.bf16 %v342, %v341
    %v347 = vunpack.c.l.b16 %v343
    %v348 = vunpack.c.h.b16 %v343
    %v349 = vunpack.c.l.b16 %v344
    %v350 = vunpack.c.h.b16 %v344
    %v351 = vpack.c.b16 %v347, %v347
    %v352 = vpack.c.b16 %v348, %v348
    %v353 = vpack.c.b16 %v349, %v349
    %v354 = vpack.c.b16 %v350, %v350
    %vm359 = vcmask 257024
    %360 = vst.msk [vmem:[%s8] sm:$0xf] %vm359, %v351
    %361 = vst.msk [vmem:[%s8 + $0x4] sm:$0xf] %vm359, %v352
    %362 = vst.msk [vmem:[%s8 + $0x8] sm:$0xf] %vm359, %v353
    %363 = vst.msk [vmem:[%s8 + $0xc] sm:$0xf] %vm359, %v354
  $region41: #{transformer_forward.40} parent=0 // pred_fallthru
    _
  // Predicated region
  $region42: #{transformer_forward.40} parent=0 // pred_check
    _
  $region43: #{transformer_forward.40} parent=0 // pred_check_branch
    %365 = sbr.rel (0) target = $region45
  $region44: #{transformer_forward.40} parent=0 // pred_region
    _
  $region45: #{transformer_forward.40} parent=0 // pred_fallthru
    _
  // Predicated region
  $region46: #{transformer_forward.40} parent=0 // pred_check
    _
  $region47: #{transformer_forward.40} parent=0 // pred_check_branch
    %367 = sbr.rel (0) target = $region49
  $region48: #{transformer_forward.40} parent=0 // pred_region
    _
  $region49: #{transformer_forward.40} parent=0 // pred_fallthru
    _

// kernel: transformer_forward.69
$region0: #{transformer_forward.69}
  #allocation0 [shape = 'u32[]', space=smem, size = 0x4, offset = 0x4, fixed_abs, tag = 'smem constant byte address 0x4 - core index']
  #allocation1 [shape = 'u32[144,128]{1,0:T(1,128)}', space=vmem, size = 0x12000, scoped, tag = 'internal scratch']
  #allocation2 [shape = 'f32[32,128]{1,0:T(8,128)}', space=vmem, size = 0x4000, scoped, tag = 'scratch operand']
  %s0 = inlined_call_operand.vmem [shape: bf16[32,32], index: 0, kind: input, shape index: {}]
  %s1 = inlined_call_operand.vmem [shape: bf16[32,128], index: 1, kind: input, shape index: {}]
  %s2 = inlined_call_operand.vmem [shape: f32[1,128], index: 2, kind: input, shape index: {}]
  %s3 = inlined_call_operand.hbm [shape: f32[32,128], index: 3, kind: output, shape index: {}]
  %s4 = sld [smem:[#allocation0]]
  $region30: #{transformer_forward.69} parent=0
    _
  %s6 = ssub.s32 1, %s4
  %s7 = scalar_select 0, %s6, %s4
  $region1: #{transformer_forward.69} parent=0
    #allocation3 [shape = 'u8[16384]{0}', space=vmem, size = 0x4000, scoped, tag = 'output window, operand 0, single buffered']
    #allocation4 [shape = 's32[1]{0}', space=sflag, size = 0x4, scoped, tag = 'scoped memory for transformer_forward.69']
    %8 = vsyncpa [#allocation4], 0
    // Predicated region
    $region2: #{transformer_forward.69} parent=1 // pred_check
      _
    $region3: #{transformer_forward.69} parent=1 // pred_check_branch
      %10 = sbr.rel (0) target = $region5
    $region4: #{transformer_forward.69} parent=1 // pred_region
      _
    $region5: #{transformer_forward.69} parent=1 // pred_fallthru
      _
    // Predicated region
    $region6: #{transformer_forward.69} parent=1 // pred_check
      _
    $region7: #{transformer_forward.69} parent=1 // pred_check_branch
      %12 = sbr.rel (0) target = $region9
    $region8: #{transformer_forward.69} parent=1 // pred_region
      _
    $region9: #{transformer_forward.69} parent=1 // pred_fallthru
      _
    // Predicated region
    $region10: #{transformer_forward.69} parent=1 // pred_check
      _
    $region11: #{transformer_forward.69} parent=1 // pred_check_branch
      %14 = sbr.rel (0) target = $region13
    $region12: #{transformer_forward.69} parent=1 // pred_region
      _
    $region13: #{transformer_forward.69} parent=1 // pred_fallthru
      _
    %p16 = scmp.eq.s32.totalorder 0, 0
    // Predicated region
    $region14: #{transformer_forward.69} parent=1 // pred_check
      %p17 = pneg %p16
    $region15: #{transformer_forward.69} parent=1 // pred_check_branch
      %19 = sbr.rel (%p17) target = $region17
    $region16: #{transformer_forward.69} parent=1 // pred_region
      %20 = vst [vmem:[#allocation2] sm:$0xff] 0.0
      %21 = vst [vmem:[#allocation2 + $0x8] sm:$0xff] 0.0
      %22 = vst [vmem:[#allocation2 + $0x10] sm:$0xff] 0.0
      %23 = vst [vmem:[#allocation2 + $0x18] sm:$0xff] 0.0
    $region17: #{transformer_forward.69} parent=1 // pred_fallthru
      _
    %v24 = vld [vmem:[#allocation2] sm:$0xff]
    %v25 = vld [vmem:[#allocation2 + $0x8] sm:$0xff]
    %v26 = vld [vmem:[#allocation2 + $0x10] sm:$0xff]
    %v27 = vld [vmem:[#allocation2 + $0x18] sm:$0xff]
    %v28 = vld [vmem:[%s0] sm:$0xf]
    %v29 = vld [vmem:[%s0 + $0x4] sm:$0xf]
    %v30 = vld [vmem:[%s0 + $0x8] sm:$0xf]
    %v31 = vld [vmem:[%s0 + $0xc] sm:$0xf]
    %v32 = vld [vmem:[%s1] sm:$0xf]
    %v33 = vld [vmem:[%s1 + $0x4] sm:$0xf]
    %v34 = vld [vmem:[%s1 + $0x8] sm:$0xf]
    %v35 = vld [vmem:[%s1 + $0xc] sm:$0xf]
    %v40 = vunpack.c.l.b16 %v28
    %v41 = vunpack.c.l.b16 %v29
    %v42 = vunpack.c.l.b16 %v30
    %v43 = vunpack.c.l.b16 %v31
    %v44 = vpack.c.b16 %v41, %v40
    %v45 = vpack.c.b16 %v43, %v42
    %v50 = vunpack.c.l.b16 %v32
    %v51 = vunpack.c.l.b16 %v33
    %v52 = vunpack.c.l.b16 %v34
    %v53 = vunpack.c.l.b16 %v35
    %v54 = vpack.c.b16 %v51, %v50
    %v55 = vpack.c.b16 %v53, %v52
    %vm58 = vcmask 261120
    %v60 = vsel %vm58, %v44, 0
    %v63 = vsel %vm58, %v45, 0
    %65 = vmatprep.subr.bf16.mxu0 0
    %66 = vmatpush1.bf16.msra.mxu0 %v54
    %67 = vmatprep.subr.bf16.mxu0 0
    %68 = vmatpush1.bf16.msra.mxu0 %v55
    %69 = vmatprep.subr.bf16.mxu0 0
    %70 = vmatpush1.bf16.msra.mxu0 0
    %71 = vmatprep.subr.bf16.mxu0 0
    %72 = vmatpush1.bf16.msra.mxu0 0
    %73 = vmatprep.subr.bf16.mxu0 0
    %74 = vmatpush1.bf16.msra.mxu0 0
    %75 = vmatprep.subr.bf16.mxu0 0
    %76 = vmatpush1.bf16.msra.mxu0 0
    %77 = vmatprep.subr.bf16.mxu0 0
    %78 = vmatpush1.bf16.msra.mxu0 0
    %79 = vmatprep.subr.bf16.mxu0 0
    %80 = vmatpush1.bf16.msra.mxu0 0
    %81 = vmatprep.subr.bf16.mxu0 0
    %82 = vmatpush1.bf16.msra.mxu0 0
    %83 = vmatprep.subr.bf16.mxu0 0
    %84 = vmatpush1.bf16.msra.mxu0 0
    %85 = vmatprep.subr.bf16.mxu0 0
    %86 = vmatpush1.bf16.msra.mxu0 0
    %87 = vmatprep.subr.bf16.mxu0 0
    %88 = vmatpush1.bf16.msra.mxu0 0
    %89 = vmatprep.subr.bf16.mxu0 0
    %90 = vmatpush1.bf16.msra.mxu0 0
    %91 = vmatprep.subr.bf16.mxu0 0
    %92 = vmatpush1.bf16.msra.mxu0 0
    %93 = vmatprep.subr.bf16.mxu0 0
    %94 = vmatpush1.bf16.msra.mxu0 0
    %95 = vmatprep.subr.bf16.mxu0 0
    %96 = vmatpush1.bf16.msra.mxu0 0
    %97 = vmatprep.mubr.bf16.mxu0 0
    %98 = vmatmul.mubr.bf16.gmra.mrb[0].mxu0 %v60
    %v99 = vpop.f32.mrb[0].mxu0
    %v100 = vadd.f32 0.0, %v99
    %v101 = vpop.f32.mrb[0].mxu0
    %v102 = vpop.f32.mrb[0].mxu0
    %v103 = vadd.f32 0.0, %v102
    %v104 = vpop.f32.mrb[0].mxu0
    %105 = vmatprep.mubr.bf16.mxu0 0
    %106 = vmatmul.mubr.bf16.gmra.mrb[0].mxu0 %v63
    %v107 = vpop.f32.mrb[0].mxu0
    %v108 = vadd.f32 0.0, %v107
    %v109 = vpop.f32.mrb[0].mxu0
    %v110 = vpop.f32.mrb[0].mxu0
    %v111 = vadd.f32 0.0, %v110
    %v112 = vpop.f32.mrb[0].mxu0
    %113 = vdwg.mxu0
    %v114 = vadd.f32 %v24, %v100
    %v115 = vadd.f32 %v25, %v103
    %v116 = vadd.f32 %v26, %v108
    %v117 = vadd.f32 %v27, %v111
    %118 = vst [vmem:[#allocation2] sm:$0xff] %v114
    %119 = vst [vmem:[#allocation2 + $0x8] sm:$0xff] %v115
    %120 = vst [vmem:[#allocation2 + $0x10] sm:$0xff] %v116
    %121 = vst [vmem:[#allocation2 + $0x18] sm:$0xff] %v117
    // Predicated region
    $region18: #{transformer_forward.69} parent=1 // pred_check
      %p122 = pneg %p16
    $region19: #{transformer_forward.69} parent=1 // pred_check_branch
      %124 = sbr.rel (%p122) target = $region21
    $region20: #{transformer_forward.69} parent=1 // pred_region
      %v125 = vld [vmem:[#allocation2] sm:$0xff]
      %v126 = vld [vmem:[#allocation2 + $0x8] sm:$0xff]
      %v127 = vld [vmem:[#allocation2 + $0x10] sm:$0xff]
      %v128 = vld [vmem:[#allocation2 + $0x18] sm:$0xff]
      %v129 = vld [vmem:[%s2] sm:$0x1]
      %v131 = vlaneseq
      %v132 = vshrl.u32 %v131, 7
      %v133 = vsub.s32 0, %v132
      %v134 = vrot.slane %v129, %v133
      %v136 = vadd.f32 %v125, %v134
      %v137 = vadd.f32 %v126, %v134
      %v138 = vadd.f32 %v127, %v134
      %v139 = vadd.f32 %v128, %v134
      %140 = vst [vmem:[#allocation3] sm:$0xff] %v136
      %141 = vst [vmem:[#allocation3 + $0x8] sm:$0xff] %v137
      %142 = vst [vmem:[#allocation3 + $0x10] sm:$0xff] %v138
      %143 = vst [vmem:[#allocation3 + $0x18] sm:$0xff] %v139
    $region21: #{transformer_forward.69} parent=1 // pred_fallthru
      _
    // Predicated region
    $region22: #{transformer_forward.69} parent=1 // pred_check
      _
    $region23: #{transformer_forward.69} parent=1 // pred_check_branch
      %145 = sbr.rel (0) target = $region25
    $region24: #{transformer_forward.69} parent=1 // pred_region
      %s147 = ssub.s32 512, 512
      %148 = vsyncadd [#allocation4], %s147
      %s149 = sshll.u32 [#allocation3], 4
      %s150 = int_to_ptr.vmem [resolvable:$true] %s149
      %155 = dma.vmem_to_hbm [thread:$0]  %s150, 512, %s3, [#allocation4], 128, 128, 8
    $region25: #{transformer_forward.69} parent=1 // pred_fallthru
      _
    // Predicated region
    $region26: #{transformer_forward.69} parent=1 // pred_check
      _
    $region27: #{transformer_forward.69} parent=1 // pred_check_branch
      %157 = sbr.rel (0) target = $region29
    $region28: #{transformer_forward.69} parent=1 // pred_region
      %158 = dma.done [#allocation4], 512
    $region29: #{transformer_forward.69} parent=1 // pred_fallthru
      _
    %159 = vsyncpa [#allocation4], 1

// kernel: transformer_forward.38
$region0: #{transformer_forward.38}
  #allocation0 [shape = 'u32[]', space=smem, size = 0x4, offset = 0x4, fixed_abs, tag = 'smem constant byte address 0x4 - core index']
  #allocation1 [shape = 'u32[144,128]{1,0:T(1,128)}', space=vmem, size = 0x12000, scoped, tag = 'internal scratch']
  #allocation2 [shape = 'f32[4,16,1]{2,1,0:T(8,128)}', space=vmem, size = 0x8000, scoped, tag = 'scratch operand']
  #allocation3 [shape = 'f32[4,16,1]{2,1,0:T(8,128)}', space=vmem, size = 0x8000, scoped, tag = 'scratch operand']
  #allocation4 [shape = 'f32[16,32]{1,0:T(8,128)}', space=vmem, size = 0x2000, scoped, tag = 'scratch operand']
  %s0 = inlined_call_operand.vmem [shape: bf16[2,16,32], index: 0, kind: input, shape index: {}]
  %s1 = inlined_call_operand.vmem [shape: bf16[2,16,32], index: 1, kind: input, shape index: {}]
  %s2 = inlined_call_operand.vmem [shape: bf16[2,16,32], index: 2, kind: input, shape index: {}]
  %s3 = inlined_call_operand.vmem [shape: f32[2,1,16], index: 3, kind: input, shape index: {}]
  %s4 = inlined_call_operand.vmem [shape: bf16[2,16,32], index: 4, kind: output, shape index: {}]
  %s5 = sld [smem:[#allocation0]]
  $region57: #{transformer_forward.38} parent=0
    _
  %s7 = ssub.s32 1, %s5
  %s8 = scalar_select 0, %s7, %s5
  loop: start=0, step=1, limit=4
  $region2: #{transformer_forward.38} parent=0 // loop_pre_header
    _
  $region3: #{transformer_forward.38} parent=0 // loop_header
    %s10 = sphi 0, %s14
    %p11 = scmp.ge.s32.totalorder %s10, 4
    %s17 = sphi 0, %s43
    %s18 = sphi 0, %s39
    %s19 = sphi 0, %s35
    %s20 = sphi 0, %s31
    %s21 = sphi 0, %s17
    %s22 = sphi 0, %s18
    %s23 = sphi 0, %s19
    %s24 = sphi 0, %s20
    %s25 = sphi 0, %s21
    %s26 = sphi 0, %s22
    %s27 = sphi 0, %s23
    %s28 = sphi 0, %s24
    %s50 = sphi 0, %s52
    %s53 = sphi 0, %s50
    %s54 = sphi 0, %s53
    %s70 = sphi 0, %s54
    %s80 = sphi 0, %s82
    %s83 = sphi 0, %s80
    %s84 = sphi 0, %s83
    %s100 = sphi 0, %s84
    %s110 = sphi 0, %s112
    %s113 = sphi 0, %s110
    %s114 = sphi 0, %s113
    %s130 = sphi 0, %s114
    %s138 = sphi 0, %s140
    %s141 = sphi 0, %s138
    %s142 = sphi 0, %s141
    %s158 = sphi 0, %s142
    %s168 = sphi 0, %s170
    %s171 = sphi 0, %s168
    %s172 = sphi 0, %s171
    %s188 = sphi 0, %s172
  $region4: #{transformer_forward.38} parent=0 // loop_header_branch
    %13 = sbr.rel (%p11) target = $region8
  $region5: #{transformer_forward.38} parent=0 // loop_body
    %s15 = ssub.s32 %s10, 1
    %s16 = ssub.s32 %s10, 2
    %s29 = sadd.s32 1, %s20
    %p30 = scmp.ge.s32.totalorder %s29, 1
    %s31 = scalar_select %p30, 0, %s29
    %s32 = sadd.s32 1, %s19
    %s33 = scalar_select %p30, %s32, %s19
    %p34 = scmp.ge.s32.totalorder %s33, 1
    %s35 = scalar_select %p34, 0, %s33
    %s36 = sadd.s32 1, %s18
    %s37 = scalar_select %p34, %s36, %s18
    %p38 = scmp.ge.s32.totalorder %s37, 1
    %s39 = scalar_select %p38, 0, %s37
    %s40 = sadd.s32 1, %s17
    %s41 = scalar_select %p38, %s40, %s17
    %p42 = scmp.ge.s32.totalorder %s41, 2
    %s43 = scalar_select %p42, 0, %s41
    %s44 = ssub.s32 %s17, %s43
    %s45 = ssub.s32 %s19, %s35
    %s46 = sor.u32 %s44, %s45
    %s47 = ssub.s32 %s18, %s39
    %s48 = sor.u32 %s46, %s47
    %p49 = scmp.eq.s32.totalorder %s48, 0
    %s51 = sadd.s32 %s50, 1
    %s52 = scalar_select %p49, %s50, %s51
    %p55 = pneg %p49
    %p56 = scmp.eq.s32.totalorder %s10, 1
    %p57 = por %p55, %p56
    %p58 = scmp.ne.s32.totalorder %s50, %s53
    %p59 = scmp.eq.s32.totalorder %s10, 0
    %p60 = por %p58, %p59
    %p61 = scmp.ne.s32.totalorder %s50, %s53
    %p62 = scmp.eq.s32.totalorder %s15, 1
    %p63 = por %p61, %p62
    %p64 = scmp.ne.s32.totalorder %s53, %s54
    %p65 = scmp.eq.s32.totalorder %s15, 0
    %p66 = por %p64, %p65
    %p67 = scmp.ne.s32.totalorder %s53, %s54
    %p68 = scmp.eq.s32.totalorder %s16, 1
    %p69 = por %p67, %p68
    %p71 = scmp.ne.s32.totalorder %s54, %s70
    %p72 = scmp.eq.s32.totalorder %s16, 0
    %p73 = por %p71, %p72
    %s74 = ssub.s32 %s17, %s43
    %s75 = ssub.s32 %s20, %s31
    %s76 = sor.u32 %s74, %s75
    %s77 = ssub.s32 %s18, %s39
    %s78 = sor.u32 %s76, %s77
    %p79 = scmp.eq.s32.totalorder %s78, 0
    %s81 = sadd.s32 %s80, 1
    %s82 = scalar_select %p79, %s80, %s81
    %p85 = pneg %p79
    %p86 = scmp.eq.s32.totalorder %s10, 1
    %p87 = por %p85, %p86
    %p88 = scmp.ne.s32.totalorder %s80, %s83
    %p89 = scmp.eq.s32.totalorder %s10, 0
    %p90 = por %p88, %p89
    %p91 = scmp.ne.s32.totalorder %s80, %s83
    %p92 = scmp.eq.s32.totalorder %s15, 1
    %p93 = por %p91, %p92
    %p94 = scmp.ne.s32.totalorder %s83, %s84
    %p95 = scmp.eq.s32.totalorder %s15, 0
    %p96 = por %p94, %p95
    %p97 = scmp.ne.s32.totalorder %s83, %s84
    %p98 = scmp.eq.s32.totalorder %s16, 1
    %p99 = por %p97, %p98
    %p101 = scmp.ne.s32.totalorder %s84, %s100
    %p102 = scmp.eq.s32.totalorder %s16, 0
    %p103 = por %p101, %p102
    %s104 = ssub.s32 %s17, %s43
    %s105 = ssub.s32 %s20, %s31
    %s106 = sor.u32 %s104, %s105
    %s107 = ssub.s32 %s18, %s39
    %s108 = sor.u32 %s106, %s107
    %p109 = scmp.eq.s32.totalorder %s108, 0
    %s111 = sadd.s32 %s110, 1
    %s112 = scalar_select %p109, %s110, %s111
    %p115 = pneg %p109
    %p116 = scmp.eq.s32.totalorder %s10, 1
    %p117 = por %p115, %p116
    %p118 = scmp.ne.s32.totalorder %s110, %s113
    %p119 = scmp.eq.s32.totalorder %s10, 0
    %p120 = por %p118, %p119
    %p121 = scmp.ne.s32.totalorder %s110, %s113
    %p122 = scmp.eq.s32.totalorder %s15, 1
    %p123 = por %p121, %p122
    %p124 = scmp.ne.s32.totalorder %s113, %s114
    %p125 = scmp.eq.s32.totalorder %s15, 0
    %p126 = por %p124, %p125
    %p127 = scmp.ne.s32.totalorder %s113, %s114
    %p128 = scmp.eq.s32.totalorder %s16, 1
    %p129 = por %p127, %p128
    %p131 = scmp.ne.s32.totalorder %s114, %s130
    %p132 = scmp.eq.s32.totalorder %s16, 0
    %p133 = por %p131, %p132
    %s134 = ssub.s32 %s17, %s43
    %s135 = ssub.s32 %s20, %s31
    %s136 = sor.u32 %s134, %s135
    %p137 = scmp.eq.s32.totalorder %s136, 0
    %s139 = sadd.s32 %s138, 1
    %s140 = scalar_select %p137, %s138, %s139
    %p143 = pneg %p137
    %p144 = scmp.eq.s32.totalorder %s10, 1
    %p145 = por %p143, %p144
    %p146 = scmp.ne.s32.totalorder %s138, %s141
    %p147 = scmp.eq.s32.totalorder %s10, 0
    %p148 = por %p146, %p147
    %p149 = scmp.ne.s32.totalorder %s138, %s141
    %p150 = scmp.eq.s32.totalorder %s15, 1
    %p151 = por %p149, %p150
    %p152 = scmp.ne.s32.totalorder %s141, %s142
    %p153 = scmp.eq.s32.totalorder %s15, 0
    %p154 = por %p152, %p153
    %p155 = scmp.ne.s32.totalorder %s141, %s142
    %p156 = scmp.eq.s32.totalorder %s16, 1
    %p157 = por %p155, %p156
    %p159 = scmp.ne.s32.totalorder %s142, %s158
    %p160 = scmp.eq.s32.totalorder %s16, 0
    %p161 = por %p159, %p160
    %s162 = ssub.s32 %s17, %s43
    %s163 = ssub.s32 %s19, %s35
    %s164 = sor.u32 %s162, %s163
    %s165 = ssub.s32 %s18, %s39
    %s166 = sor.u32 %s164, %s165
    %p167 = scmp.eq.s32.totalorder %s166, 0
    %s169 = sadd.s32 %s168, 1
    %s170 = scalar_select %p167, %s168, %s169
    %p173 = pneg %p167
    %p174 = scmp.eq.s32.totalorder %s10, 1
    %p175 = por %p173, %p174
    %p176 = scmp.ne.s32.totalorder %s168, %s171
    %p177 = scmp.eq.s32.totalorder %s10, 0
    %p178 = por %p176, %p177
    %p179 = scmp.ne.s32.totalorder %s168, %s171
    %p180 = scmp.eq.s32.totalorder %s15, 1
    %p181 = por %p179, %p180
    %p182 = scmp.ne.s32.totalorder %s171, %s172
    %p183 = scmp.eq.s32.totalorder %s15, 0
    %p184 = por %p182, %p183
    %p185 = scmp.ne.s32.totalorder %s171, %s172
    %p186 = scmp.eq.s32.totalorder %s16, 1
    %p187 = por %p185, %p186
    %p189 = scmp.ne.s32.totalorder %s172, %s188
    %p190 = scmp.eq.s32.totalorder %s16, 0
    %p191 = por %p189, %p190
    %p192 = scmp.le.s32.totalorder 1, %s10
    %p193 = scmp.lt.s32.totalorder %s10, 3
    %p194 = pnand %p192, %p193
    %p195 = pneg %p194
    // Predicated region
    $region9: #{transformer_forward.38} parent=5 // pred_check
      _
    $region10: #{transformer_forward.38} parent=5 // pred_check_branch
      %197 = sbr.rel (%p194) target = $region12
    $region11: #{transformer_forward.38} parent=5 // pred_region
      %s198 = ssub.s32 %s10, 1
    $region12: #{transformer_forward.38} parent=5 // pred_fallthru
      _
    %p199 = scmp.lt.s32.totalorder %s10, 2
    // Predicated region
    $region13: #{transformer_forward.38} parent=5 // pred_check
      %p200 = pneg %p199
    $region14: #{transformer_forward.38} parent=5 // pred_check_branch
      %202 = sbr.rel (%p200) target = $region16
    $region15: #{transformer_forward.38} parent=5 // pred_region
      // Predicated region
      $region17: #{transformer_forward.38} parent=15 // pred_check
        %p203 = pneg %p60
      $region18: #{transformer_forward.38} parent=15 // pred_check_branch
        %205 = sbr.rel (%p203) target = $region20
      $region19: #{transformer_forward.38} parent=15 // pred_region
        %s206 = smul.u32 2, %s19
        %p207 = scmp.lt.s32.totalorder %s17, 1
        %s208 = scalar_select %p207, %s17, 1
        %p209 = scmp.lt.s32.totalorder %s206, 1
        %s210 = scalar_select %p209, %s206, 1
        %p211 = scmp.lt.s32.totalorder %s18, 0
        %s212 = scalar_select %p211, %s18, 0
        %s213 = sadd.s32 %s212, %s210
        %s214 = smul.addr %s208, 2
        %s215 = sadd.s32 %s213, %s214
        %s216 = smul.addr %s215, 4
        %s217 = scalar_lea.vmem %s0, %s216
        %s218 = smul.u32 2, %s19
      $region20: #{transformer_forward.38} parent=15 // pred_fallthru
        _
      // Predicated region
      $region21: #{transformer_forward.38} parent=15 // pred_check
        %p219 = pneg %p90
      $region22: #{transformer_forward.38} parent=15 // pred_check_branch
        %221 = sbr.rel (%p219) target = $region24
      $region23: #{transformer_forward.38} parent=15 // pred_region
        %s222 = smul.u32 2, %s20
        %p223 = scmp.lt.s32.totalorder %s17, 1
        %s224 = scalar_select %p223, %s17, 1
        %p225 = scmp.lt.s32.totalorder %s222, 1
        %s226 = scalar_select %p225, %s222, 1
        %p227 = scmp.lt.s32.totalorder %s18, 0
        %s228 = scalar_select %p227, %s18, 0
        %s229 = sadd.s32 %s228, %s226
        %s230 = smul.addr %s224, 2
        %s231 = sadd.s32 %s229, %s230
        %s232 = smul.addr %s231, 4
        %s233 = scalar_lea.vmem %s1, %s232
        %s234 = smul.u32 2, %s20
      $region24: #{transformer_forward.38} parent=15 // pred_fallthru
        _
      // Predicated region
      $region25: #{transformer_forward.38} parent=15 // pred_check
        %p235 = pneg %p120
      $region26: #{transformer_forward.38} parent=15 // pred_check_branch
        %237 = sbr.rel (%p235) target = $region28
      $region27: #{transformer_forward.38} parent=15 // pred_region
        %s238 = smul.u32 2, %s20
        %p239 = scmp.lt.s32.totalorder %s17, 1
        %s240 = scalar_select %p239, %s17, 1
        %p241 = scmp.lt.s32.totalorder %s238, 1
        %s242 = scalar_select %p241, %s238, 1
        %p243 = scmp.lt.s32.totalorder %s18, 0
        %s244 = scalar_select %p243, %s18, 0
        %s245 = sadd.s32 %s244, %s242
        %s246 = smul.addr %s240, 2
        %s247 = sadd.s32 %s245, %s246
        %s248 = smul.addr %s247, 4
        %s249 = scalar_lea.vmem %s2, %s248
        %s250 = smul.u32 2, %s20
      $region28: #{transformer_forward.38} parent=15 // pred_fallthru
        _
      // Predicated region
      $region29: #{transformer_forward.38} parent=15 // pred_check
        %p251 = pneg %p148
      $region30: #{transformer_forward.38} parent=15 // pred_check_branch
        %253 = sbr.rel (%p251) target = $region32
      $region31: #{transformer_forward.38} parent=15 // pred_region
        %p254 = scmp.lt.s32.totalorder %s17, 1
        %s255 = scalar_select %p254, %s17, 1
        %p256 = scmp.lt.s32.totalorder %s20, 0
        %s257 = scalar_select %p256, %s20, 0
        %s258 = sadd.s32 %s257, %s255
        %s259 = scalar_lea.vmem %s3, %s258
      $region32: #{transformer_forward.38} parent=15 // pred_fallthru
        _
    $region16: #{transformer_forward.38} parent=5 // pred_fallthru
      _
    %p260 = scmp.le.s32.totalorder 1, %s10
    %p261 = scmp.lt.s32.totalorder %s10, 3
    %p262 = pnand %p260, %p261
    %p263 = pneg %p262
    // Predicated region
    $region33: #{transformer_forward.38} parent=5 // pred_check
      _
    $region34: #{transformer_forward.38} parent=5 // pred_check_branch
      %265 = sbr.rel (%p262) target = $region36
    $region35: #{transformer_forward.38} parent=5 // pred_region
      %s266 = ssub.s32 %s10, 1
      %s267 = smul.u32 2, %s23
      %p268 = scmp.lt.s32.totalorder %s21, 1
      %s269 = scalar_select %p268, %s21, 1
      %p270 = scmp.lt.s32.totalorder %s267, 1
      %s271 = scalar_select %p270, %s267, 1
      %p272 = scmp.lt.s32.totalorder %s22, 0
      %s273 = scalar_select %p272, %s22, 0
      %s274 = sadd.s32 %s273, %s271
      %s275 = smul.addr %s269, 2
      %s276 = sadd.s32 %s274, %s275
      %s277 = smul.addr %s276, 4
      %s278 = scalar_lea.vmem %s0, %s277
      %p279 = pneg %p66
      %p280 = pneg %p63
      %s281 = smul.u32 2, %s24
      %p282 = scmp.lt.s32.totalorder %s21, 1
      %s283 = scalar_select %p282, %s21, 1
      %p284 = scmp.lt.s32.totalorder %s281, 1
      %s285 = scalar_select %p284, %s281, 1
      %p286 = scmp.lt.s32.totalorder %s22, 0
      %s287 = scalar_select %p286, %s22, 0
      %s288 = sadd.s32 %s287, %s285
      %s289 = smul.addr %s283, 2
      %s290 = sadd.s32 %s288, %s289
      %s291 = smul.addr %s290, 4
      %s292 = scalar_lea.vmem %s1, %s291
      %p293 = pneg %p96
      %p294 = pneg %p93
      %s295 = smul.u32 2, %s24
      %p296 = scmp.lt.s32.totalorder %s21, 1
      %s297 = scalar_select %p296, %s21, 1
      %p298 = scmp.lt.s32.totalorder %s295, 1
      %s299 = scalar_select %p298, %s295, 1
      %p300 = scmp.lt.s32.totalorder %s22, 0
      %s301 = scalar_select %p300, %s22, 0
      %s302 = sadd.s32 %s301, %s299
      %s303 = smul.addr %s297, 2
      %s304 = sadd.s32 %s302, %s303
      %s305 = smul.addr %s304, 4
      %s306 = scalar_lea.vmem %s2, %s305
      %p307 = pneg %p126
      %p308 = pneg %p123
      %p309 = scmp.lt.s32.totalorder %s21, 1
      %s310 = scalar_select %p309, %s21, 1
      %p311 = scmp.lt.s32.totalorder %s24, 0
      %s312 = scalar_select %p311, %s24, 0
      %s313 = sadd.s32 %s312, %s310
      %s314 = scalar_lea.vmem %s3, %s313
      %p315 = pneg %p154
      %p316 = pneg %p151
      %p317 = pneg %p184
      %p318 = pneg %p181
      %s319 = smul.u32 2, %s23
      %p320 = scmp.lt.s32.totalorder %s21, 1
      %s321 = scalar_select %p320, %s21, 1
      %p322 = scmp.lt.s32.totalorder %s319, 1
      %s323 = scalar_select %p322, %s319, 1
      %p324 = scmp.lt.s32.totalorder %s22, 0
      %s325 = scalar_select %p324, %s22, 0
      %s326 = sadd.s32 %s325, %s323
      %s327 = smul.addr %s321, 2
      %s328 = sadd.s32 %s326, %s327
      %s329 = smul.addr %s328, 4
      %s330 = scalar_lea.vmem %s4, %s329
      %s331 = smul.u32 2, %s23
      %p332 = scmp.lt.s32.totalorder %s21, 1
      %s333 = scalar_select %p332, %s21, 1
      %p334 = scmp.lt.s32.totalorder %s331, 1
      %s335 = scalar_select %p334, %s331, 1
      %p336 = scmp.lt.s32.totalorder %s22, 0
      %s337 = scalar_select %p336, %s22, 0
      %s338 = sadd.s32 %s337, %s335
      %s339 = smul.addr %s333, 2
      %s340 = sadd.s32 %s338, %s339
      %s341 = smul.addr %s340, 4
      %s342 = scalar_lea.vmem %s0, %s341
      %s343 = smul.u32 2, %s23
      %s344 = smul.u32 2, %s24
      %p345 = scmp.lt.s32.totalorder %s21, 1
      %s346 = scalar_select %p345, %s21, 1
      %p347 = scmp.lt.s32.totalorder %s344, 1
      %s348 = scalar_select %p347, %s344, 1
      %p349 = scmp.lt.s32.totalorder %s22, 0
      %s350 = scalar_select %p349, %s22, 0
      %s351 = sadd.s32 %s350, %s348
      %s352 = smul.addr %s346, 2
      %s353 = sadd.s32 %s351, %s352
      %s354 = smul.addr %s353, 4
      %s355 = scalar_lea.vmem %s1, %s354
      %s356 = smul.u32 2, %s24
      %s357 = smul.u32 2, %s24
      %p358 = scmp.lt.s32.totalorder %s21, 1
      %s359 = scalar_select %p358, %s21, 1
      %p360 = scmp.lt.s32.totalorder %s357, 1
      %s361 = scalar_select %p360, %s357, 1
      %p362 = scmp.lt.s32.totalorder %s22, 0
      %s363 = scalar_select %p362, %s22, 0
      %s364 = sadd.s32 %s363, %s361
      %s365 = smul.addr %s359, 2
      %s366 = sadd.s32 %s364, %s365
      %s367 = smul.addr %s366, 4
      %s368 = scalar_lea.vmem %s2, %s367
      %s369 = smul.u32 2, %s24
      %p370 = scmp.lt.s32.totalorder %s21, 1
      %s371 = scalar_select %p370, %s21, 1
      %p372 = scmp.lt.s32.totalorder %s24, 0
      %s373 = scalar_select %p372, %s24, 0
      %s374 = sadd.s32 %s373, %s371
      %s375 = scalar_lea.vmem %s3, %s374
      %s376 = smul.u32 2, %s23
      %p377 = scmp.lt.s32.totalorder %s21, 1
      %s378 = scalar_select %p377, %s21, 1
      %p379 = scmp.lt.s32.totalorder %s376, 1
      %s380 = scalar_select %p379, %s376, 1
      %p381 = scmp.lt.s32.totalorder %s22, 0
      %s382 = scalar_select %p381, %s22, 0
      %s383 = sadd.s32 %s382, %s380
      %s384 = smul.addr %s378, 2
      %s385 = sadd.s32 %s383, %s384
      %s386 = smul.addr %s385, 4
      %s387 = scalar_lea.vmem %s4, %s386
      %s388 = smul.u32 2, %s23
      %p390 = scmp.eq.s32.totalorder %s24, 0
      // Predicated region
      $region37: #{transformer_forward.38} parent=35 // pred_check
        %p391 = pneg %p390
      $region38: #{transformer_forward.38} parent=35 // pred_check_branch
        %393 = sbr.rel (%p391) target = $region40
      $region39: #{transformer_forward.38} parent=35 // pred_region
        %vm394 = vcmask 7168
        %395 = vst.msk [vmem:[#allocation2] sm:$0xff] %vm394, -inf
        %396 = vst.msk [vmem:[#allocation2 + $0x8] sm:$0xff] %vm394, -inf
        %397 = vst.msk [vmem:[#allocation2 + $0x10] sm:$0xff] %vm394, -inf
        %398 = vst.msk [vmem:[#allocation2 + $0x18] sm:$0xff] %vm394, -inf
        %399 = vst.msk [vmem:[#allocation2 + $0x20] sm:$0xff] %vm394, -inf
        %400 = vst.msk [vmem:[#allocation2 + $0x28] sm:$0xff] %vm394, -inf
        %401 = vst.msk [vmem:[#allocation2 + $0x30] sm:$0xff] %vm394, -inf
        %402 = vst.msk [vmem:[#allocation2 + $0x38] sm:$0xff] %vm394, -inf
        %403 = vst.msk [vmem:[#allocation3] sm:$0xff] %vm394, 0.0
        %404 = vst.msk [vmem:[#allocation3 + $0x8] sm:$0xff] %vm394, 0.0
        %405 = vst.msk [vmem:[#allocation3 + $0x10] sm:$0xff] %vm394, 0.0
        %406 = vst.msk [vmem:[#allocation3 + $0x18] sm:$0xff] %vm394, 0.0
        %407 = vst.msk [vmem:[#allocation3 + $0x20] sm:$0xff] %vm394, 0.0
        %408 = vst.msk [vmem:[#allocation3 + $0x28] sm:$0xff] %vm394, 0.0
        %409 = vst.msk [vmem:[#allocation3 + $0x30] sm:$0xff] %vm394, 0.0
        %410 = vst.msk [vmem:[#allocation3 + $0x38] sm:$0xff] %vm394, 0.0
        %vm411 = vcmask 261120
        %412 = vst.msk [vmem:[#allocation4] sm:$0xff] %vm411, 0.0
        %413 = vst.msk [vmem:[#allocation4 + $0x8] sm:$0xff] %vm411, 0.0
      $region40: #{transformer_forward.38} parent=35 // pred_fallthru
        _
      %v414 = vld [vmem:[%s375] sm:$0x1]
      %v415 = vld [vmem:[%s342] sm:$0xf]
      %v416 = vld [vmem:[%s342 + $0x4] sm:$0xf]
      %v417 = vld [vmem:[%s355] sm:$0xf]
      %v418 = vld [vmem:[%s355 + $0x4] sm:$0xf]
      %v419 = vld [vmem:[%s368] sm:$0xf]
      %v420 = vld [vmem:[%s368 + $0x4] sm:$0xf]
      %v422 = vlaneseq
      %v423 = vshrl.u32 %v422, 7
      %v424 = vsub.s32 0, %v423
      %v425 = vrot.slane %v414, %v424
      %v429 = vunpack.c.l.b16 %v415
      %v430 = vunpack.c.l.b16 %v416
      %v431 = vpack.c.b16 %v430, %v429
      %v434 = vunpack.c.l.b16 %v417
      %v435 = vunpack.c.l.b16 %v418
      %v436 = vpack.c.b16 %v435, %v434
      %vm437 = vcmask 64512
      %v439 = vsel %vm437, %v431, 0
      %v442 = vsel %vm437, %v436, 0
      %444 = vmatprep.subr.bf16.mxu0 0
      %445 = vmatpush1.bf16.xpose.msra.mxu0 %v442
      %446 = vmatprep.subr.bf16.mxu0 0
      %447 = vmatpush1.bf16.xpose.msra.mxu0 0
      %448 = vmatprep.subr.bf16.mxu0 0
      %449 = vmatpush1.bf16.xpose.msra.mxu0 0
      %450 = vmatprep.subr.bf16.mxu0 0
      %451 = vmatpush1.bf16.xpose.msra.mxu0 0
      %452 = vmatprep.subr.bf16.mxu0 0
      %453 = vmatpush1.bf16.xpose.msra.mxu0 0
      %454 = vmatprep.subr.bf16.mxu0 0
      %455 = vmatpush1.bf16.xpose.msra.mxu0 0
      %456 = vmatprep.subr.bf16.mxu0 0
      %457 = vmatpush1.bf16.xpose.msra.mxu0 0
      %458 = vmatprep.subr.bf16.mxu0 0
      %459 = vmatpush1.bf16.xpose.msra.mxu0 0
      %460 = vmatprep.subr.bf16.mxu0 0
      %461 = vmatpush1.bf16.xpose.msra.mxu0 0
      %462 = vmatprep.subr.bf16.mxu0 0
      %463 = vmatpush1.bf16.xpose.msra.mxu0 0
      %464 = vmatprep.subr.bf16.mxu0 0
      %465 = vmatpush1.bf16.xpose.msra.mxu0 0
      %466 = vmatprep.subr.bf16.mxu0 0
      %467 = vmatpush1.bf16.xpose.msra.mxu0 0
      %468 = vmatprep.subr.bf16.mxu0 0
      %469 = vmatpush1.bf16.xpose.msra.mxu0 0
      %470 = vmatprep.subr.bf16.mxu0 0
      %471 = vmatpush1.bf16.xpose.msra.mxu0 0
      %472 = vmatprep.subr.bf16.mxu0 0
      %473 = vmatpush1.bf16.xpose.msra.mxu0 0
      %474 = vmatprep.subr.bf16.mxu0 0
      %475 = vmatpush1.bf16.xpose.msra.mxu0 0
      %476 = vmatprep.mubr.bf16.mxu0 0
      %477 = vmatmul.mubr.bf16.gmra.mrb[0].mxu0 %v439
      %v478 = vpop.f32.mrb[0].mxu0
      %v479 = vadd.f32 %v425, %v478
      %v480 = vpop.f32.mrb[0].mxu0
      %v481 = vpop.f32.mrb[0].mxu0
      %v482 = vadd.f32 %v425, %v481
      %v483 = vpop.f32.mrb[0].mxu0
      %484 = vdwg.mxu0
      %v485 = vld [vmem:[#allocation2] sm:$0xff]
      %v486 = vld [vmem:[#allocation2 + $0x8] sm:$0xff]
      %vm487 = vcmask 130048
      %v488 = vsel %vm487, %v479, -inf
      %489 = vmax.xlane.f32.xlu0 %v488
      %v490 = vpop.xlane.xlu0 %489
      %v491 = vsel %vm487, %v482, -inf
      %492 = vmax.xlane.f32.xlu0 %v491
      %v493 = vpop.xlane.xlu0 %492
      %v494 = vmax.f32 %v485, %v490
      %v495 = vmax.f32 %v486, %v493
      %v496 = vsub.f32 %v485, %v494
      %v497 = vsub.f32 %v486, %v495
      %v498 = vmul.f32 %v496, 1.442695
      %v499 = vpow.pop %v498
      %v500 = vmul.f32 %v497, 1.442695
      %v501 = vpow.pop %v500
      %503 = vset.pattern.permute.xlu0 0
      %504 = vperm.xlu0 %503, %v494
      %v505 = vpop.permute.xlu0 %504
      %508 = vset.pattern.permute.xlu0 0
      %509 = vperm.xlu0 %508, %v495
      %v510 = vpop.permute.xlu0 %509
      %v512 = vsub.f32 %v479, %v505
      %v513 = vsub.f32 %v482, %v510
      %v514 = vmul.f32 %v512, 1.442695
      %v515 = vpow.pop %v514
      %v516 = vmul.f32 %v513, 1.442695
      %v517 = vpow.pop %v516
      %v518 = vld [vmem:[#allocation3] sm:$0xff]
      %v519 = vld [vmem:[#allocation3 + $0x8] sm:$0xff]
      %v520 = vmul.f32 %v499, %v518
      %v521 = vmul.f32 %v501, %v519
      %v522 = vsel %vm487, %v515, 0.0
      %523 = vadd.xlane.f32.xlu0 %v522
      %v524 = vpop.xlane.xlu0 %523
      %v525 = vsel %vm487, %v517, 0.0
      %526 = vadd.xlane.f32.xlu0 %v525
      %v527 = vpop.xlane.xlu0 %526
      %v528 = vadd.f32 %v520, %v524
      %v529 = vadd.f32 %v521, %v527
      %vm530 = vcmask 7168
      %531 = vst.msk [vmem:[#allocation3] sm:$0xff] %vm530, %v528
      %532 = vst.msk [vmem:[#allocation3 + $0x8] sm:$0xff] %vm530, %v529
      %v533 = vld [vmem:[#allocation4] sm:$0xff]
      %v534 = vld [vmem:[#allocation4 + $0x8] sm:$0xff]
      %536 = vset.pattern.permute.xlu0 0
      %537 = vperm.xlu0 %536, %v499
      %v538 = vpop.permute.xlu0 %537
      %541 = vset.pattern.permute.xlu0 0
      %542 = vperm.xlu0 %541, %v501
      %v543 = vpop.permute.xlu0 %542
      %v545 = vmul.f32 %v538, %v533
      %v546 = vmul.f32 %v543, %v534
      %v547 = vpack.c.bf16 %v517, %v515
      %v550 = vunpack.c.l.b16 %v419
      %v551 = vunpack.c.l.b16 %v420
      %v552 = vpack.c.b16 %v551, %v550
      %v555 = vsel %vm487, %v547, 0
      %557 = vmatprep.subr.bf16.mxu0 0
      %558 = vmatpush1.bf16.msra.mxu0 %v552
      %559 = vmatprep.subr.bf16.mxu0 0
      %560 = vmatpush1.bf16.msra.mxu0 0
      %561 = vmatprep.subr.bf16.mxu0 0
      %562 = vmatpush1.bf16.msra.mxu0 0
      %563 = vmatprep.subr.bf16.mxu0 0
      %564 = vmatpush1.bf16.msra.mxu0 0
      %565 = vmatprep.subr.bf16.mxu0 0
      %566 = vmatpush1.bf16.msra.mxu0 0
      %567 = vmatprep.subr.bf16.mxu0 0
      %568 = vmatpush1.bf16.msra.mxu0 0
      %569 = vmatprep.subr.bf16.mxu0 0
      %570 = vmatpush1.bf16.msra.mxu0 0
      %571 = vmatprep.subr.bf16.mxu0 0
      %572 = vmatpush1.bf16.msra.mxu0 0
      %573 = vmatprep.subr.bf16.mxu0 0
      %574 = vmatpush1.bf16.msra.mxu0 0
      %575 = vmatprep.subr.bf16.mxu0 0
      %576 = vmatpush1.bf16.msra.mxu0 0
      %577 = vmatprep.subr.bf16.mxu0 0
      %578 = vmatpush1.bf16.msra.mxu0 0
      %579 = vmatprep.subr.bf16.mxu0 0
      %580 = vmatpush1.bf16.msra.mxu0 0
      %581 = vmatprep.subr.bf16.mxu0 0
      %582 = vmatpush1.bf16.msra.mxu0 0
      %583 = vmatprep.subr.bf16.mxu0 0
      %584 = vmatpush1.bf16.msra.mxu0 0
      %585 = vmatprep.subr.bf16.mxu0 0
      %586 = vmatpush1.bf16.msra.mxu0 0
      %587 = vmatprep.subr.bf16.mxu0 0
      %588 = vmatpush1.bf16.msra.mxu0 0
      %589 = vmatprep.mubr.bf16.mxu0 0
      %590 = vmatmul.mubr.bf16.gmra.mrb[0].mxu0 %v555
      %v591 = vpop.f32.mrb[0].mxu0
      %v592 = vadd.f32 0.0, %v591
      %v593 = vpop.f32.mrb[0].mxu0
      %v594 = vpop.f32.mrb[0].mxu0
      %v595 = vadd.f32 0.0, %v594
      %v596 = vpop.f32.mrb[0].mxu0
      %597 = vdwg.mxu0
      %v598 = vadd.f32 %v545, %v592
      %v599 = vadd.f32 %v546, %v595
      %600 = vst.msk [vmem:[#allocation4] sm:$0xff] %vm437, %v598
      %601 = vst.msk [vmem:[#allocation4 + $0x8] sm:$0xff] %vm437, %v599
      %602 = vst.msk [vmem:[#allocation2] sm:$0xff] %vm530, %v494
      %603 = vst.msk [vmem:[#allocation2 + $0x8] sm:$0xff] %vm530, %v495
      %v604 = vld [vmem:[%s342] sm:$0xf]
      %v605 = vld [vmem:[%s342 + $0x4] sm:$0xf]
      %v606 = vld [vmem:[%s355] sm:$0xf]
      %v607 = vld [vmem:[%s355 + $0x4] sm:$0xf]
      %v608 = vld [vmem:[%s368] sm:$0xf]
      %v609 = vld [vmem:[%s368 + $0x4] sm:$0xf]
      %v612 = vunpack.c.l.b16 %v604
      %v613 = vunpack.c.l.b16 %v605
      %v614 = vpack.c.b16 %v613, %v612
      %615 = vrot.lane.b32.xlu0 %v614, 120
      %v616 = vpop.permute.xlu0 %615
      %v619 = vunpack.c.l.b16 %v606
      %v620 = vunpack.c.l.b16 %v607
      %v621 = vpack.c.b16 %v620, %v619
      %622 = vrot.lane.b32.xlu0 %v621, 120
      %v623 = vpop.permute.xlu0 %622
      %v625 = vsel %vm437, %v616, 0
      %v628 = vsel %vm437, %v623, 0
      %630 = vmatprep.subr.bf16.mxu0 0
      %631 = vmatpush1.bf16.xpose.msra.mxu0 %v628
      %632 = vmatprep.subr.bf16.mxu0 0
      %633 = vmatpush1.bf16.xpose.msra.mxu0 0
      %634 = vmatprep.subr.bf16.mxu0 0
      %635 = vmatpush1.bf16.xpose.msra.mxu0 0
      %636 = vmatprep.subr.bf16.mxu0 0
      %637 = vmatpush1.bf16.xpose.msra.mxu0 0
      %638 = vmatprep.subr.bf16.mxu0 0
      %639 = vmatpush1.bf16.xpose.msra.mxu0 0
      %640 = vmatprep.subr.bf16.mxu0 0
      %641 = vmatpush1.bf16.xpose.msra.mxu0 0
      %642 = vmatprep.subr.bf16.mxu0 0
      %643 = vmatpush1.bf16.xpose.msra.mxu0 0
      %644 = vmatprep.subr.bf16.mxu0 0
      %645 = vmatpush1.bf16.xpose.msra.mxu0 0
      %646 = vmatprep.subr.bf16.mxu0 0
      %647 = vmatpush1.bf16.xpose.msra.mxu0 0
      %648 = vmatprep.subr.bf16.mxu0 0
      %649 = vmatpush1.bf16.xpose.msra.mxu0 0
      %650 = vmatprep.subr.bf16.mxu0 0
      %651 = vmatpush1.bf16.xpose.msra.mxu0 0
      %652 = vmatprep.subr.bf16.mxu0 0
      %653 = vmatpush1.bf16.xpose.msra.mxu0 0
      %654 = vmatprep.subr.bf16.mxu0 0
      %655 = vmatpush1.bf16.xpose.msra.mxu0 0
      %656 = vmatprep.subr.bf16.mxu0 0
      %657 = vmatpush1.bf16.xpose.msra.mxu0 0
      %658 = vmatprep.subr.bf16.mxu0 0
      %659 = vmatpush1.bf16.xpose.msra.mxu0 0
      %660 = vmatprep.subr.bf16.mxu0 0
      %661 = vmatpush1.bf16.xpose.msra.mxu0 0
      %662 = vmatprep.mubr.bf16.mxu0 0
      %663 = vmatmul.mubr.bf16.gmra.mrb[0].mxu0 %v625
      %v664 = vpop.f32.mrb[0].mxu0
      %v665 = vadd.f32 %v425, %v664
      %v666 = vpop.f32.mrb[0].mxu0
      %v667 = vpop.f32.mrb[0].mxu0
      %v668 = vadd.f32 %v425, %v667
      %v669 = vpop.f32.mrb[0].mxu0
      %670 = vdwg.mxu0
      %s671 = scalar_lea.vmem [#allocation2], 16
      %v672 = vld [vmem:[%s671] sm:$0xff]
      %v673 = vld [vmem:[%s671 + $0x8] sm:$0xff]
      %v674 = vsel %vm487, %v665, -inf
      %675 = vmax.xlane.f32.xlu0 %v674
      %v676 = vpop.xlane.xlu0 %675
      %v677 = vsel %vm487, %v668, -inf
      %678 = vmax.xlane.f32.xlu0 %v677
      %v679 = vpop.xlane.xlu0 %678
      %v680 = vmax.f32 %v672, %v676
      %v681 = vmax.f32 %v673, %v679
      %v682 = vsub.f32 %v672, %v680
      %v683 = vsub.f32 %v673, %v681
      %v684 = vmul.f32 %v682, 1.442695
      %v685 = vpow.pop %v684
      %v686 = vmul.f32 %v683, 1.442695
      %v687 = vpow.pop %v686
      %689 = vset.pattern.permute.xlu0 0
      %690 = vperm.xlu0 %689, %v680
      %v691 = vpop.permute.xlu0 %690
      %694 = vset.pattern.permute.xlu0 0
      %695 = vperm.xlu0 %694, %v681
      %v696 = vpop.permute.xlu0 %695
      %v698 = vsub.f32 %v665, %v691
      %v699 = vsub.f32 %v668, %v696
      %v700 = vmul.f32 %v698, 1.442695
      %v701 = vpow.pop %v700
      %v702 = vmul.f32 %v699, 1.442695
      %v703 = vpow.pop %v702
      %s704 = scalar_lea.vmem [#allocation3], 16
      %v705 = vld [vmem:[%s704] sm:$0xff]
      %v706 = vld [vmem:[%s704 + $0x8] sm:$0xff]
      %v707 = vmul.f32 %v685, %v705
      %v708 = vmul.f32 %v687, %v706
      %v709 = vsel %vm487, %v701, 0.0
      %710 = vadd.xlane.f32.xlu0 %v709
      %v711 = vpop.xlane.xlu0 %710
      %v712 = vsel %vm487, %v703, 0.0
      %713 = vadd.xlane.f32.xlu0 %v712
      %v714 = vpop.xlane.xlu0 %713
      %v715 = vadd.f32 %v707, %v711
      %v716 = vadd.f32 %v708, %v714
      %717 = vst.msk [vmem:[%s704] sm:$0xff] %vm530, %v715
      %718 = vst.msk [vmem:[%s704 + $0x8] sm:$0xff] %vm530, %v716
      %v719 = vld [vmem:[#allocation4] sm:$0xff]
      %v720 = vld [vmem:[#allocation4 + $0x8] sm:$0xff]
      %722 = vset.pattern.permute.xlu0 0
      %723 = vperm.xlu0 %722, %v685
      %v724 = vpop.permute.xlu0 %723
      %727 = vset.pattern.permute.xlu0 0
      %728 = vperm.xlu0 %727, %v687
      %v729 = vpop.permute.xlu0 %728
      %v731 = vmul.f32 %v724, %v719
      %v732 = vmul.f32 %v729, %v720
      %v733 = vpack.c.bf16 %v703, %v701
      %v736 = vunpack.c.l.b16 %v608
      %v737 = vunpack.c.l.b16 %v609
      %v738 = vpack.c.b16 %v737, %v736
      %739 = vrot.lane.b32.xlu0 %v738, 120
      %v740 = vpop.permute.xlu0 %739
      %v743 = vsel %vm487, %v733, 0
      %745 = vmatprep.subr.bf16.mxu0 0
      %746 = vmatpush1.bf16.msra.mxu0 %v740
      %747 = vmatprep.subr.bf16.mxu0 0
      %748 = vmatpush1.bf16.msra.mxu0 0
      %749 = vmatprep.subr.bf16.mxu0 0
      %750 = vmatpush1.bf16.msra.mxu0 0
      %751 = vmatprep.subr.bf16.mxu0 0
      %752 = vmatpush1.bf16.msra.mxu0 0
      %753 = vmatprep.subr.bf16.mxu0 0
      %754 = vmatpush1.bf16.msra.mxu0 0
      %755 = vmatprep.subr.bf16.mxu0 0
      %756 = vmatpush1.bf16.msra.mxu0 0
      %757 = vmatprep.subr.bf16.mxu0 0
      %758 = vmatpush1.bf16.msra.mxu0 0
      %759 = vmatprep.subr.bf16.mxu0 0
      %760 = vmatpush1.bf16.msra.mxu0 0
      %761 = vmatprep.subr.bf16.mxu0 0
      %762 = vmatpush1.bf16.msra.mxu0 0
      %763 = vmatprep.subr.bf16.mxu0 0
      %764 = vmatpush1.bf16.msra.mxu0 0
      %765 = vmatprep.subr.bf16.mxu0 0
      %766 = vmatpush1.bf16.msra.mxu0 0
      %767 = vmatprep.subr.bf16.mxu0 0
      %768 = vmatpush1.bf16.msra.mxu0 0
      %769 = vmatprep.subr.bf16.mxu0 0
      %770 = vmatpush1.bf16.msra.mxu0 0
      %771 = vmatprep.subr.bf16.mxu0 0
      %772 = vmatpush1.bf16.msra.mxu0 0
      %773 = vmatprep.subr.bf16.mxu0 0
      %774 = vmatpush1.bf16.msra.mxu0 0
      %775 = vmatprep.subr.bf16.mxu0 0
      %776 = vmatpush1.bf16.msra.mxu0 0
      %777 = vmatprep.mubr.bf16.mxu0 0
      %778 = vmatmul.mubr.bf16.gmra.mrb[0].mxu0 %v743
      %v779 = vpop.f32.mrb[0].mxu0
      %v780 = vadd.f32 0.0, %v779
      %v781 = vpop.f32.mrb[0].mxu0
      %v782 = vpop.f32.mrb[0].mxu0
      %v783 = vadd.f32 0.0, %v782
      %v784 = vpop.f32.mrb[0].mxu0
      %785 = vdwg.mxu0
      %788 = vrot.lane.b32.xlu0 %v780, 8
      %v789 = vpop.permute.xlu0 %788
      %790 = vrot.lane.b32.xlu0 %v783, 8
      %v791 = vpop.permute.xlu0 %790
      %v794 = vadd.f32 %v731, %v789
      %v795 = vadd.f32 %v732, %v791
      %vm796 = vcmask 130112
      %797 = vst.msk [vmem:[#allocation4] sm:$0xff] %vm796, %v794
      %798 = vst.msk [vmem:[#allocation4 + $0x8] sm:$0xff] %vm796, %v795
      %799 = vst.msk [vmem:[%s671] sm:$0xff] %vm530, %v680
      %800 = vst.msk [vmem:[%s671 + $0x8] sm:$0xff] %vm530, %v681
      %v801 = vld [vmem:[%s342] sm:$0xf]
      %v802 = vld [vmem:[%s342 + $0x4] sm:$0xf]
      %v803 = vld [vmem:[%s355] sm:$0xf]
      %v804 = vld [vmem:[%s355 + $0x4] sm:$0xf]
      %v805 = vld [vmem:[%s368] sm:$0xf]
      %v806 = vld [vmem:[%s368 + $0x4] sm:$0xf]
      %v809 = vunpack.c.l.b16 %v801
      %v810 = vunpack.c.l.b16 %v802
      %v811 = vpack.c.b16 %v810, %v809
      %812 = vrot.lane.b32.xlu0 %v811, 112
      %v813 = vpop.permute.xlu0 %812
      %v816 = vunpack.c.l.b16 %v803
      %v817 = vunpack.c.l.b16 %v804
      %v818 = vpack.c.b16 %v817, %v816
      %819 = vrot.lane.b32.xlu0 %v818, 112
      %v820 = vpop.permute.xlu0 %819
      %v822 = vsel %vm437, %v813, 0
      %v825 = vsel %vm437, %v820, 0
      %827 = vmatprep.subr.bf16.mxu0 0
      %828 = vmatpush1.bf16.xpose.msra.mxu0 %v825
      %829 = vmatprep.subr.bf16.mxu0 0
      %830 = vmatpush1.bf16.xpose.msra.mxu0 0
      %831 = vmatprep.subr.bf16.mxu0 0
      %832 = vmatpush1.bf16.xpose.msra.mxu0 0
      %833 = vmatprep.subr.bf16.mxu0 0
      %834 = vmatpush1.bf16.xpose.msra.mxu0 0
      %835 = vmatprep.subr.bf16.mxu0 0
      %836 = vmatpush1.bf16.xpose.msra.mxu0 0
      %837 = vmatprep.subr.bf16.mxu0 0
      %838 = vmatpush1.bf16.xpose.msra.mxu0 0
      %839 = vmatprep.subr.bf16.mxu0 0
      %840 = vmatpush1.bf16.xpose.msra.mxu0 0
      %841 = vmatprep.subr.bf16.mxu0 0
      %842 = vmatpush1.bf16.xpose.msra.mxu0 0
      %843 = vmatprep.subr.bf16.mxu0 0
      %844 = vmatpush1.bf16.xpose.msra.mxu0 0
      %845 = vmatprep.subr.bf16.mxu0 0
      %846 = vmatpush1.bf16.xpose.msra.mxu0 0
      %847 = vmatprep.subr.bf16.mxu0 0
      %848 = vmatpush1.bf16.xpose.msra.mxu0 0
      %849 = vmatprep.subr.bf16.mxu0 0
      %850 = vmatpush1.bf16.xpose.msra.mxu0 0
      %851 = vmatprep.subr.bf16.mxu0 0
      %852 = vmatpush1.bf16.xpose.msra.mxu0 0
      %853 = vmatprep.subr.bf16.mxu0 0
      %854 = vmatpush1.bf16.xpose.msra.mxu0 0
      %855 = vmatprep.subr.bf16.mxu0 0
      %856 = vmatpush1.bf16.xpose.msra.mxu0 0
      %857 = vmatprep.subr.bf16.mxu0 0
      %858 = vmatpush1.bf16.xpose.msra.mxu0 0
      %859 = vmatprep.mubr.bf16.mxu0 0
      %860 = vmatmul.mubr.bf16.gmra.mrb[0].mxu0 %v822
      %v861 = vpop.f32.mrb[0].mxu0
      %v862 = vadd.f32 %v425, %v861
      %v863 = vpop.f32.mrb[0].mxu0
      %v864 = vpop.f32.mrb[0].mxu0
      %v865 = vadd.f32 %v425, %v864
      %v866 = vpop.f32.mrb[0].mxu0
      %867 = vdwg.mxu0
      %s868 = scalar_lea.vmem [#allocation2], 32
      %v869 = vld [vmem:[%s868] sm:$0xff]
      %v870 = vld [vmem:[%s868 + $0x8] sm:$0xff]
      %v871 = vsel %vm487, %v862, -inf
      %872 = vmax.xlane.f32.xlu0 %v871
      %v873 = vpop.xlane.xlu0 %872
      %v874 = vsel %vm487, %v865, -inf
      %875 = vmax.xlane.f32.xlu0 %v874
      %v876 = vpop.xlane.xlu0 %875
      %v877 = vmax.f32 %v869, %v873
      %v878 = vmax.f32 %v870, %v876
      %v879 = vsub.f32 %v869, %v877
      %v880 = vsub.f32 %v870, %v878
      %v881 = vmul.f32 %v879, 1.442695
      %v882 = vpow.pop %v881
      %v883 = vmul.f32 %v880, 1.442695
      %v884 = vpow.pop %v883
      %886 = vset.pattern.permute.xlu0 0
      %887 = vperm.xlu0 %886, %v877
      %v888 = vpop.permute.xlu0 %887
      %891 = vset.pattern.permute.xlu0 0
      %892 = vperm.xlu0 %891, %v878
      %v893 = vpop.permute.xlu0 %892
      %v895 = vsub.f32 %v862, %v888
      %v896 = vsub.f32 %v865, %v893
      %v897 = vmul.f32 %v895, 1.442695
      %v898 = vpow.pop %v897
      %v899 = vmul.f32 %v896, 1.442695
      %v900 = vpow.pop %v899
      %s901 = scalar_lea.vmem [#allocation3], 32
      %v902 = vld [vmem:[%s901] sm:$0xff]
      %v903 = vld [vmem:[%s901 + $0x8] sm:$0xff]
      %v904 = vmul.f32 %v882, %v902
      %v905 = vmul.f32 %v884, %v903
      %v906 = vsel %vm487, %v898, 0.0
      %907 = vadd.xlane.f32.xlu0 %v906
      %v908 = vpop.xlane.xlu0 %907
      %v909 = vsel %vm487, %v900, 0.0
      %910 = vadd.xlane.f32.xlu0 %v909
      %v911 = vpop.xlane.xlu0 %910
      %v912 = vadd.f32 %v904, %v908
      %v913 = vadd.f32 %v905, %v911
      %914 = vst.msk [vmem:[%s901] sm:$0xff] %vm530, %v912
      %915 = vst.msk [vmem:[%s901 + $0x8] sm:$0xff] %vm530, %v913
      %v916 = vld [vmem:[#allocation4] sm:$0xff]
      %v917 = vld [vmem:[#allocation4 + $0x8] sm:$0xff]
      %919 = vset.pattern.permute.xlu0 0
      %920 = vperm.xlu0 %919, %v882
      %v921 = vpop.permute.xlu0 %920
      %924 = vset.pattern.permute.xlu0 0
      %925 = vperm.xlu0 %924, %v884
      %v926 = vpop.permute.xlu0 %925
      %v928 = vmul.f32 %v921, %v916
      %v929 = vmul.f32 %v926, %v917
      %v930 = vpack.c.bf16 %v900, %v898
      %v933 = vunpack.c.l.b16 %v805
      %v934 = vunpack.c.l.b16 %v806
      %v935 = vpack.c.b16 %v934, %v933
      %936 = vrot.lane.b32.xlu0 %v935, 112
      %v937 = vpop.permute.xlu0 %936
      %v940 = vsel %vm487, %v930, 0
      %942 = vmatprep.subr.bf16.mxu0 0
      %943 = vmatpush1.bf16.msra.mxu0 %v937
      %944 = vmatprep.subr.bf16.mxu0 0
      %945 = vmatpush1.bf16.msra.mxu0 0
      %946 = vmatprep.subr.bf16.mxu0 0
      %947 = vmatpush1.bf16.msra.mxu0 0
      %948 = vmatprep.subr.bf16.mxu0 0
      %949 = vmatpush1.bf16.msra.mxu0 0
      %950 = vmatprep.subr.bf16.mxu0 0
      %951 = vmatpush1.bf16.msra.mxu0 0
      %952 = vmatprep.subr.bf16.mxu0 0
      %953 = vmatpush1.bf16.msra.mxu0 0
      %954 = vmatprep.subr.bf16.mxu0 0
      %955 = vmatpush1.bf16.msra.mxu0 0
      %956 = vmatprep.subr.bf16.mxu0 0
      %957 = vmatpush1.bf16.msra.mxu0 0
      %958 = vmatprep.subr.bf16.mxu0 0
      %959 = vmatpush1.bf16.msra.mxu0 0
      %960 = vmatprep.subr.bf16.mxu0 0
      %961 = vmatpush1.bf16.msra.mxu0 0
      %962 = vmatprep.subr.bf16.mxu0 0
      %963 = vmatpush1.bf16.msra.mxu0 0
      %964 = vmatprep.subr.bf16.mxu0 0
      %965 = vmatpush1.bf16.msra.mxu0 0
      %966 = vmatprep.subr.bf16.mxu0 0
      %967 = vmatpush1.bf16.msra.mxu0 0
      %968 = vmatprep.subr.bf16.mxu0 0
      %969 = vmatpush1.bf16.msra.mxu0 0
      %970 = vmatprep.subr.bf16.mxu0 0
      %971 = vmatpush1.bf16.msra.mxu0 0
      %972 = vmatprep.subr.bf16.mxu0 0
      %973 = vmatpush1.bf16.msra.mxu0 0
      %974 = vmatprep.mubr.bf16.mxu0 0
      %975 = vmatmul.mubr.bf16.gmra.mrb[0].mxu0 %v940
      %v976 = vpop.f32.mrb[0].mxu0
      %v977 = vadd.f32 0.0, %v976
      %v978 = vpop.f32.mrb[0].mxu0
      %v979 = vpop.f32.mrb[0].mxu0
      %v980 = vadd.f32 0.0, %v979
      %v981 = vpop.f32.mrb[0].mxu0
      %982 = vdwg.mxu0
      %985 = vrot.lane.b32.xlu0 %v977, 16
      %v986 = vpop.permute.xlu0 %985
      %987 = vrot.lane.b32.xlu0 %v980, 16
      %v988 = vpop.permute.xlu0 %987
      %v991 = vadd.f32 %v928, %v986
      %v992 = vadd.f32 %v929, %v988
      %vm993 = vcmask 195712
      %994 = vst.msk [vmem:[#allocation4] sm:$0xff] %vm993, %v991
      %995 = vst.msk [vmem:[#allocation4 + $0x8] sm:$0xff] %vm993, %v992
      %996 = vst.msk [vmem:[%s868] sm:$0xff] %vm530, %v877
      %997 = vst.msk [vmem:[%s868 + $0x8] sm:$0xff] %vm530, %v878
      %v998 = vld [vmem:[%s342] sm:$0xf]
      %v999 = vld [vmem:[%s342 + $0x4] sm:$0xf]
      %v1000 = vld [vmem:[%s355] sm:$0xf]
      %v1001 = vld [vmem:[%s355 + $0x4] sm:$0xf]
      %v1002 = vld [vmem:[%s368] sm:$0xf]
      %v1003 = vld [vmem:[%s368 + $0x4] sm:$0xf]
      %v1006 = vunpack.c.l.b16 %v998
      %v1007 = vunpack.c.l.b16 %v999
      %v1008 = vpack.c.b16 %v1007, %v1006
      %1009 = vrot.lane.b32.xlu0 %v1008, 104
      %v1010 = vpop.permute.xlu0 %1009
      %v1013 = vunpack.c.l.b16 %v1000
      %v1014 = vunpack.c.l.b16 %v1001
      %v1015 = vpack.c.b16 %v1014, %v1013
      %1016 = vrot.lane.b32.xlu0 %v1015, 104
      %v1017 = vpop.permute.xlu0 %1016
      %v1019 = vsel %vm437, %v1010, 0
      %v1022 = vsel %vm437, %v1017, 0
      %1024 = vmatprep.subr.bf16.mxu0 0
      %1025 = vmatpush1.bf16.xpose.msra.mxu0 %v1022
      %1026 = vmatprep.subr.bf16.mxu0 0
      %1027 = vmatpush1.bf16.xpose.msra.mxu0 0
      %1028 = vmatprep.subr.bf16.mxu0 0
      %1029 = vmatpush1.bf16.xpose.msra.mxu0 0
      %1030 = vmatprep.subr.bf16.mxu0 0
      %1031 = vmatpush1.bf16.xpose.msra.mxu0 0
      %1032 = vmatprep.subr.bf16.mxu0 0
      %1033 = vmatpush1.bf16.xpose.msra.mxu0 0
      %1034 = vmatprep.subr.bf16.mxu0 0
      %1035 = vmatpush1.bf16.xpose.msra.mxu0 0
      %1036 = vmatprep.subr.bf16.mxu0 0
      %1037 = vmatpush1.bf16.xpose.msra.mxu0 0
      %1038 = vmatprep.subr.bf16.mxu0 0
      %1039 = vmatpush1.bf16.xpose.msra.mxu0 0
      %1040 = vmatprep.subr.bf16.mxu0 0
      %1041 = vmatpush1.bf16.xpose.msra.mxu0 0
      %1042 = vmatprep.subr.bf16.mxu0 0
      %1043 = vmatpush1.bf16.xpose.msra.mxu0 0
      %1044 = vmatprep.subr.bf16.mxu0 0
      %1045 = vmatpush1.bf16.xpose.msra.mxu0 0
      %1046 = vmatprep.subr.bf16.mxu0 0
      %1047 = vmatpush1.bf16.xpose.msra.mxu0 0
      %1048 = vmatprep.subr.bf16.mxu0 0
      %1049 = vmatpush1.bf16.xpose.msra.mxu0 0
      %1050 = vmatprep.subr.bf16.mxu0 0
      %1051 = vmatpush1.bf16.xpose.msra.mxu0 0
      %1052 = vmatprep.subr.bf16.mxu0 0
      %1053 = vmatpush1.bf16.xpose.msra.mxu0 0
      %1054 = vmatprep.subr.bf16.mxu0 0
      %1055 = vmatpush1.bf16.xpose.msra.mxu0 0
      %1056 = vmatprep.mubr.bf16.mxu0 0
      %1057 = vmatmul.mubr.bf16.gmra.mrb[0].mxu0 %v1019
      %v1058 = vpop.f32.mrb[0].mxu0
      %v1059 = vadd.f32 %v425, %v1058
      %v1060 = vpop.f32.mrb[0].mxu0
      %v1061 = vpop.f32.mrb[0].mxu0
      %v1062 = vadd.f32 %v425, %v1061
      %v1063 = vpop.f32.mrb[0].mxu0
      %1064 = vdwg.mxu0
      %s1065 = scalar_lea.vmem [#allocation2], 48
      %v1066 = vld [vmem:[%s1065] sm:$0xff]
      %v1067 = vld [vmem:[%s1065 + $0x8] sm:$0xff]
      %v1068 = vsel %vm487, %v1059, -inf
      %1069 = vmax.xlane.f32.xlu0 %v1068
      %v1070 = vpop.xlane.xlu0 %1069
      %v1071 = vsel %vm487, %v1062, -inf
      %1072 = vmax.xlane.f32.xlu0 %v1071
      %v1073 = vpop.xlane.xlu0 %1072
      %v1074 = vmax.f32 %v1066, %v1070
      %v1075 = vmax.f32 %v1067, %v1073
      %v1076 = vsub.f32 %v1066, %v1074
      %v1077 = vsub.f32 %v1067, %v1075
      %v1078 = vmul.f32 %v1076, 1.442695
      %v1079 = vpow.pop %v1078
      %v1080 = vmul.f32 %v1077, 1.442695
      %v1081 = vpow.pop %v1080
      %1083 = vset.pattern.permute.xlu0 0
      %1084 = vperm.xlu0 %1083, %v1074
      %v1085 = vpop.permute.xlu0 %1084
      %1088 = vset.pattern.permute.xlu0 0
      %1089 = vperm.xlu0 %1088, %v1075
      %v1090 = vpop.permute.xlu0 %1089
      %v1092 = vsub.f32 %v1059, %v1085
      %v1093 = vsub.f32 %v1062, %v1090
      %v1094 = vmul.f32 %v1092, 1.442695
      %v1095 = vpow.pop %v1094
      %v1096 = vmul.f32 %v1093, 1.442695
      %v1097 = vpow.pop %v1096
      %s1098 = scalar_lea.vmem [#allocation3], 48
      %v1099 = vld [vmem:[%s1098] sm:$0xff]
      %v1100 = vld [vmem:[%s1098 + $0x8] sm:$0xff]
      %v1101 = vmul.f32 %v1079, %v1099
      %v1102 = vmul.f32 %v1081, %v1100
      %v1103 = vsel %vm487, %v1095, 0.0
      %1104 = vadd.xlane.f32.xlu0 %v1103
      %v1105 = vpop.xlane.xlu0 %1104
      %v1106 = vsel %vm487, %v1097, 0.0
      %1107 = vadd.xlane.f32.xlu0 %v1106
      %v1108 = vpop.xlane.xlu0 %1107
      %v1109 = vadd.f32 %v1101, %v1105
      %v1110 = vadd.f32 %v1102, %v1108
      %1111 = vst.msk [vmem:[%s1098] sm:$0xff] %vm530, %v1109
      %1112 = vst.msk [vmem:[%s1098 + $0x8] sm:$0xff] %vm530, %v1110
      %v1113 = vld [vmem:[#allocation4] sm:$0xff]
      %v1114 = vld [vmem:[#allocation4 + $0x8] sm:$0xff]
      %1116 = vset.pattern.permute.xlu0 0
      %1117 = vperm.xlu0 %1116, %v1079
      %v1118 = vpop.permute.xlu0 %1117
      %1121 = vset.pattern.permute.xlu0 0
      %1122 = vperm.xlu0 %1121, %v1081
      %v1123 = vpop.permute.xlu0 %1122
      %v1125 = vmul.f32 %v1118, %v1113
      %v1126 = vmul.f32 %v1123, %v1114
      %v1127 = vpack.c.bf16 %v1097, %v1095
      %v1130 = vunpack.c.l.b16 %v1002
      %v1131 = vunpack.c.l.b16 %v1003
      %v1132 = vpack.c.b16 %v1131, %v1130
      %1133 = vrot.lane.b32.xlu0 %v1132, 104
      %v1134 = vpop.permute.xlu0 %1133
      %v1137 = vsel %vm487, %v1127, 0
      %1139 = vmatprep.subr.bf16.mxu0 0
      %1140 = vmatpush1.bf16.msra.mxu0 %v1134
      %1141 = vmatprep.subr.bf16.mxu0 0
      %1142 = vmatpush1.bf16.msra.mxu0 0
      %1143 = vmatprep.subr.bf16.mxu0 0
      %1144 = vmatpush1.bf16.msra.mxu0 0
      %1145 = vmatprep.subr.bf16.mxu0 0
      %1146 = vmatpush1.bf16.msra.mxu0 0
      %1147 = vmatprep.subr.bf16.mxu0 0
      %1148 = vmatpush1.bf16.msra.mxu0 0
      %1149 = vmatprep.subr.bf16.mxu0 0
      %1150 = vmatpush1.bf16.msra.mxu0 0
      %1151 = vmatprep.subr.bf16.mxu0 0
      %1152 = vmatpush1.bf16.msra.mxu0 0
      %1153 = vmatprep.subr.bf16.mxu0 0
      %1154 = vmatpush1.bf16.msra.mxu0 0
      %1155 = vmatprep.subr.bf16.mxu0 0
      %1156 = vmatpush1.bf16.msra.mxu0 0
      %1157 = vmatprep.subr.bf16.mxu0 0
      %1158 = vmatpush1.bf16.msra.mxu0 0
      %1159 = vmatprep.subr.bf16.mxu0 0
      %1160 = vmatpush1.bf16.msra.mxu0 0
      %1161 = vmatprep.subr.bf16.mxu0 0
      %1162 = vmatpush1.bf16.msra.mxu0 0
      %1163 = vmatprep.subr.bf16.mxu0 0
      %1164 = vmatpush1.bf16.msra.mxu0 0
      %1165 = vmatprep.subr.bf16.mxu0 0
      %1166 = vmatpush1.bf16.msra.mxu0 0
      %1167 = vmatprep.subr.bf16.mxu0 0
      %1168 = vmatpush1.bf16.msra.mxu0 0
      %1169 = vmatprep.subr.bf16.mxu0 0
      %1170 = vmatpush1.bf16.msra.mxu0 0
      %1171 = vmatprep.mubr.bf16.mxu0 0
      %1172 = vmatmul.mubr.bf16.gmra.mrb[0].mxu0 %v1137
      %v1173 = vpop.f32.mrb[0].mxu0
      %v1174 = vadd.f32 0.0, %v1173
      %v1175 = vpop.f32.mrb[0].mxu0
      %v1176 = vpop.f32.mrb[0].mxu0
      %v1177 = vadd.f32 0.0, %v1176
      %v1178 = vpop.f32.mrb[0].mxu0
      %1179 = vdwg.mxu0
      %1182 = vrot.lane.b32.xlu0 %v1174, 24
      %v1183 = vpop.permute.xlu0 %1182
      %1184 = vrot.lane.b32.xlu0 %v1177, 24
      %v1185 = vpop.permute.xlu0 %1184
      %v1188 = vadd.f32 %v1125, %v1183
      %v1189 = vadd.f32 %v1126, %v1185
      %vm1190 = vcmask 261312
      %1191 = vst.msk [vmem:[#allocation4] sm:$0xff] %vm1190, %v1188
      %1192 = vst.msk [vmem:[#allocation4 + $0x8] sm:$0xff] %vm1190, %v1189
      %1193 = vst.msk [vmem:[%s1065] sm:$0xff] %vm530, %v1074
      %1194 = vst.msk [vmem:[%s1065 + $0x8] sm:$0xff] %vm530, %v1075
      // Predicated region
      $region41: #{transformer_forward.38} parent=35 // pred_check
        %p1195 = pneg %p390
      $region42: #{transformer_forward.38} parent=35 // pred_check_branch
        %1197 = sbr.rel (%p1195) target = $region44
      $region43: #{transformer_forward.38} parent=35 // pred_region
        %v1198 = vld [vmem:[#allocation4] sm:$0xff]
        %v1199 = vld [vmem:[#allocation4 + $0x8] sm:$0xff]
        %v1200 = vld [vmem:[#allocation3] sm:$0xff]
        %v1201 = vld [vmem:[#allocation3 + $0x8] sm:$0xff]
        %1203 = vset.pattern.permute.xlu0 0
        %1204 = vperm.xlu0 %1203, %v1200
        %v1205 = vpop.permute.xlu0 %1204
        %1208 = vset.pattern.permute.xlu0 0
        %1209 = vperm.xlu0 %1208, %v1201
        %v1210 = vpop.permute.xlu0 %1209
        %v1212 = vrcp.pop %v1205
        %v1213 = vmul.f32 %v1198, %v1212
        %v1214 = vrcp.pop %v1210
        %v1215 = vmul.f32 %v1199, %v1214
        %v1216 = vpack.c.bf16 %v1215, %v1213
        %v1218 = vunpack.c.l.b16 %v1216
        %v1219 = vunpack.c.h.b16 %v1216
        %v1220 = vpack.c.b16 %v1218, %v1218
        %v1221 = vpack.c.b16 %v1219, %v1219
        %vm1224 = vcmask 60416
        %1225 = vst.msk [vmem:[%s387] sm:$0xf] %vm1224, %v1220
        %1226 = vst.msk [vmem:[%s387 + $0x4] sm:$0xf] %vm1224, %v1221
        %v1227 = vld [vmem:[#allocation4] sm:$0xff]
        %v1228 = vld [vmem:[#allocation4 + $0x8] sm:$0xff]
        %v1229 = vld [vmem:[%s704] sm:$0xff]
        %v1230 = vld [vmem:[%s704 + $0x8] sm:$0xff]
        %1232 = vset.pattern.permute.xlu0 0
        %1233 = vperm.xlu0 %1232, %v1229
        %v1234 = vpop.permute.xlu0 %1233
        %1237 = vset.pattern.permute.xlu0 0
        %1238 = vperm.xlu0 %1237, %v1230
        %v1239 = vpop.permute.xlu0 %1238
        %v1241 = vrcp.pop %v1234
        %v1242 = vmul.f32 %v1227, %v1241
        %v1243 = vrcp.pop %v1239
        %v1244 = vmul.f32 %v1228, %v1243
        %v1245 = vpack.c.bf16 %v1244, %v1242
        %v1247 = vunpack.c.l.b16 %v1245
        %v1248 = vunpack.c.h.b16 %v1245
        %v1249 = vpack.c.b16 %v1247, %v1247
        %v1250 = vpack.c.b16 %v1248, %v1248
        %vm1253 = vcmask 126016
        %1254 = vst.msk [vmem:[%s387] sm:$0xf] %vm1253, %v1249
        %1255 = vst.msk [vmem:[%s387 + $0x4] sm:$0xf] %vm1253, %v1250
        %v1256 = vld [vmem:[#allocation4] sm:$0xff]
        %v1257 = vld [vmem:[#allocation4 + $0x8] sm:$0xff]
        %v1258 = vld [vmem:[%s901] sm:$0xff]
        %v1259 = vld [vmem:[%s901 + $0x8] sm:$0xff]
        %1261 = vset.pattern.permute.xlu0 0
        %1262 = vperm.xlu0 %1261, %v1258
        %v1263 = vpop.permute.xlu0 %1262
        %1266 = vset.pattern.permute.xlu0 0
        %1267 = vperm.xlu0 %1266, %v1259
        %v1268 = vpop.permute.xlu0 %1267
        %v1270 = vrcp.pop %v1263
        %v1271 = vmul.f32 %v1256, %v1270
        %v1272 = vrcp.pop %v1268
        %v1273 = vmul.f32 %v1257, %v1272
        %v1274 = vpack.c.bf16 %v1273, %v1271
        %v1276 = vunpack.c.l.b16 %v1274
        %v1277 = vunpack.c.h.b16 %v1274
        %v1278 = vpack.c.b16 %v1276, %v1276
        %v1279 = vpack.c.b16 %v1277, %v1277
        %vm1282 = vcmask 191616
        %1283 = vst.msk [vmem:[%s387] sm:$0xf] %vm1282, %v1278
        %1284 = vst.msk [vmem:[%s387 + $0x4] sm:$0xf] %vm1282, %v1279
        %v1285 = vld [vmem:[#allocation4] sm:$0xff]
        %v1286 = vld [vmem:[#allocation4 + $0x8] sm:$0xff]
        %v1287 = vld [vmem:[%s1098] sm:$0xff]
        %v1288 = vld [vmem:[%s1098 + $0x8] sm:$0xff]
        %1290 = vset.pattern.permute.xlu0 0
        %1291 = vperm.xlu0 %1290, %v1287
        %v1292 = vpop.permute.xlu0 %1291
        %1295 = vset.pattern.permute.xlu0 0
        %1296 = vperm.xlu0 %1295, %v1288
        %v1297 = vpop.permute.xlu0 %1296
        %v1299 = vrcp.pop %v1292
        %v1300 = vmul.f32 %v1285, %v1299
        %v1301 = vrcp.pop %v1297
        %v1302 = vmul.f32 %v1286, %v1301
        %v1303 = vpack.c.bf16 %v1302, %v1300
        %v1305 = vunpack.c.l.b16 %v1303
        %v1306 = vunpack.c.h.b16 %v1303
        %v1307 = vpack.c.b16 %v1305, %v1305
        %v1308 = vpack.c.b16 %v1306, %v1306
        %vm1311 = vcmask 257216
        %1312 = vst.msk [vmem:[%s387] sm:$0xf] %vm1311, %v1307
        %1313 = vst.msk [vmem:[%s387 + $0x4] sm:$0xf] %vm1311, %v1308
      $region44: #{transformer_forward.38} parent=35 // pred_fallthru
        _
      %s1314 = smul.u32 2, %s23
      %p1315 = scmp.lt.s32.totalorder %s21, 1
      %s1316 = scalar_select %p1315, %s21, 1
      %p1317 = scmp.lt.s32.totalorder %s1314, 1
      %s1318 = scalar_select %p1317, %s1314, 1
      %p1319 = scmp.lt.s32.totalorder %s22, 0
      %s1320 = scalar_select %p1319, %s22, 0
      %s1321 = sadd.s32 %s1320, %s1318
      %s1322 = smul.addr %s1316, 2
      %s1323 = sadd.s32 %s1321, %s1322
      %s1324 = smul.addr %s1323, 4
      %s1325 = scalar_lea.vmem %s4, %s1324
      // Predicated region
      $region45: #{transformer_forward.38} parent=35 // pred_check
        %p1326 = pneg %p181
      $region46: #{transformer_forward.38} parent=35 // pred_check_branch
        %1328 = sbr.rel (%p1326) target = $region48
      $region47: #{transformer_forward.38} parent=35 // pred_region
        %s1329 = smul.u32 2, %s23
      $region48: #{transformer_forward.38} parent=35 // pred_fallthru
        _
    $region36: #{transformer_forward.38} parent=5 // pred_fallthru
      _
    %p1330 = scmp.le.s32.totalorder 2, %s10
    // Predicated region
    $region49: #{transformer_forward.38} parent=5 // pred_check
      %p1331 = pneg %p1330
    $region50: #{transformer_forward.38} parent=5 // pred_check_branch
      %1333 = sbr.rel (%p1331) target = $region52
    $region51: #{transformer_forward.38} parent=5 // pred_region
      %s1334 = ssub.s32 %s10, 2
      // Predicated region
      $region53: #{transformer_forward.38} parent=51 // pred_check
        %p1335 = pneg %p187
      $region54: #{transformer_forward.38} parent=51 // pred_check_branch
        %1337 = sbr.rel (%p1335) target = $region56
      $region55: #{transformer_forward.38} parent=51 // pred_region
        %s1338 = smul.u32 2, %s27
        %p1339 = scmp.lt.s32.totalorder %s25, 1
        %s1340 = scalar_select %p1339, %s25, 1
        %p1341 = scmp.lt.s32.totalorder %s1338, 1
        %s1342 = scalar_select %p1341, %s1338, 1
        %p1343 = scmp.lt.s32.totalorder %s26, 0
        %s1344 = scalar_select %p1343, %s26, 0
        %s1345 = sadd.s32 %s1344, %s1342
        %s1346 = smul.addr %s1340, 2
        %s1347 = sadd.s32 %s1345, %s1346
        %s1348 = smul.addr %s1347, 4
        %s1349 = scalar_lea.vmem %s4, %s1348
      $region56: #{transformer_forward.38} parent=51 // pred_fallthru
        _
    $region52: #{transformer_forward.38} parent=5 // pred_fallthru
      _
  $region6: #{transformer_forward.38} parent=0 // loop_footer
    %s14 = sadd.s32 1, %s10
  $region7: #{transformer_forward.38} parent=0 // loop_footer_branch
    %9 = sbr.rel target = $region3
  $region8: #{transformer_forward.38} parent=0 // loop_exit
    _

</llo_original>
